<compile_context>
chip_gen: v7x
topology: tpu7x:2x2x1
jax: 0.10.0
libtpu: 0.0.40
codegen_flags: <defaults>
</compile_context>

<pallas_src>
import functools

import jax
import jax.numpy as jnp
import numpy as np
from jax.experimental import pallas as pl
from jax.experimental.pallas import tpu as pltpu

# ---------------------------------------------------------------------------
# Problem sizes (consistent with the module's __init__)
# ---------------------------------------------------------------------------
NUM_HEADS = 4
KEY_DIM = 32                      # key_dim
HEAD_SIZE = KEY_DIM // NUM_HEADS  # 8
HIDDEN = 4 * KEY_DIM              # FFN inner dim = 128
LN_EPS = 1e-3


def _layer_norm(x, gamma, beta):
    mu = jnp.mean(x, axis=-1, keepdims=True)
    var = jnp.mean((x - mu) ** 2, axis=-1, keepdims=True)  # biased var (PyTorch LayerNorm)
    return (x - mu) * jax.lax.rsqrt(var + LN_EPS) * gamma + beta


def _elu(x):
    # ELU(alpha=1). TODO(synk): jnp.expm1 would be marginally more accurate for tiny negative
    # inputs; exp(x)-1 is kept to guarantee a plain EUP-exp Mosaic lowering.
    return jnp.where(x > 0, x, jnp.exp(jnp.minimum(x, 0.0)) - 1.0)


# ---------------------------------------------------------------------------
# Fused kernel: one grid step per batch BLOCK (Bb batch elements, rows flattened)
# ---------------------------------------------------------------------------
def cross_attention_kernel(x_ref, y_ref,
                           wqk_ref, bqk_ref, wvo_ref, vecs_ref,
                           w1_ref, b1_ref, w2_ref,
                           o_ref, attn_ref, *, Bb, Lq, Lk):
    f32 = jnp.float32
    H = NUM_HEADS

    x = x_ref[...].astype(f32)        # (Bb*Lq, D)
    y = y_ref[...].astype(f32)        # (Bb*Lk, D)

    wq_all = wqk_ref[0]               # (H, D, hd)  (pre-scaled by 1/sqrt(hd))
    wk_all = wqk_ref[1]               # (H, D, hd)
    bq_all = bqk_ref[0]               # (H, 1, hd)  (pre-scaled)
    bk_all = bqk_ref[1]               # (H, 1, hd)

    # Zero the (Bb*Lq, D) attention accumulator scratch; heads accumulate directly into it.
    attn_ref[...] = jnp.zeros_like(attn_ref)

    # Head loop OUTER: only one head's Q/K/VW activations are live at a time.
    for h in range(H):                # static unroll; weights were pre-split -> no lane slicing
        q_h = jnp.dot(x, wq_all[h], preferred_element_type=f32) + bq_all[h]   # (Rq, hd)
        k_h = jnp.dot(y, wk_all[h], preferred_element_type=f32) + bk_all[h]   # (Rk, hd)
        vw_h = jnp.dot(y, wvo_ref[h], preferred_element_type=f32)             # (Rk, D)
        for b in range(Bb):           # static unroll; sublane-aligned row slices (Lq = 8)
            q0, k0 = b * Lq, b * Lk
            s = jnp.dot(q_h[q0:q0 + Lq], k_h[k0:k0 + Lk].T,
                        preferred_element_type=f32)                           # (Lq, Lk)
            s = s - jnp.max(s, axis=-1, keepdims=True)
            p = jnp.exp(s)
            p = p / jnp.sum(p, axis=-1, keepdims=True)     # exact divide (accuracy)
            attn_ref[q0:q0 + Lq, :] += jnp.dot(p, vw_h[k0:k0 + Lk],
                                               preferred_element_type=f32)    # (Lq, D)

    bo, g1, be1 = vecs_ref[0], vecs_ref[1], vecs_ref[2]   # each (1, D); bo includes bv @ Wo
    b2, g2, be2 = vecs_ref[3], vecs_ref[4], vecs_ref[5]

    val = attn_ref[...] + bo                               # out-proj (+ folded V) bias

    # norm1 -> FFN1(ELU) -> FFN2(ELU) -> norm2   (dropout = identity at inference)
    val = _layer_norm(val, g1, be1)
    h1 = _elu(jnp.dot(val, w1_ref[...], preferred_element_type=f32) + b1_ref[...])
    h2 = _elu(jnp.dot(h1, w2_ref[...], preferred_element_type=f32) + b2)
    val = _layer_norm(h2, g2, be2)

    o_ref[...] = val.astype(o_ref.dtype)


# ---------------------------------------------------------------------------
# Wrapper
# ---------------------------------------------------------------------------
def _pick_batch_block(B, Lq, row_cap=512, max_bb=16):
    """Largest divisor of B such that Bb*Lq <= row_cap and Bb <= max_bb (bounds the static
    per-batch unroll).  Fewest grid steps = least per-step pipeline overhead; this is the
    right default on single-TC v5e/v6e.  On dual-TC v7x with large B, pass batch_block
    explicitly so the grid keeps >= 2 balanced parallel steps."""
    best = 1
    for cand in range(1, min(B, max_bb) + 1):
        if B % cand == 0 and cand * Lq <= row_cap:
            best = cand
    return best


def prepare_params(p):
    """Pack / pre-fold the module parameters into 7 TPU-friendly slabs.
    Linear weights are stored (in, out); 1/sqrt(head_size) is folded into wq/bq;
    Wo is folded into Wv per head (Wvo_h = Wv_h @ Wo_h) and bv is folded through Wo into bo."""
    D, H, hd = KEY_DIM, NUM_HEADS, HEAD_SIZE
    scale = 1.0 / np.sqrt(float(hd))
    split_w = lambda w: jnp.transpose(w.reshape(D, H, hd), (1, 0, 2))   # (H, D, hd)
    split_b = lambda b: b.reshape(H, 1, hd)                             # (H, 1, hd)

    wqk = jnp.stack([split_w(p["wq"]) * scale, split_w(p["wk"])], axis=0)     # (2, H, D, hd)
    bqk = jnp.stack([split_b(p["bq"]) * scale, split_b(p["bk"])], axis=0)     # (2, H, 1, hd)

    wv_h = split_w(p["wv"])                                             # (H, D, hd)
    wo_h = p["wo"].reshape(H, hd, D)                                    # (H, hd, D)
    wvo = jnp.einsum("hdk,hkn->hdn", wv_h, wo_h)                        # (H, D, D)
    # softmax rows sum to 1 => P_h @ (bv_h @ Wo_h) broadcast == bv_h @ Wo_h; fold into bo.
    bo_total = p["bo"] + p["bv"] @ p["wo"]                              # (1, D)

    vecs = jnp.stack([bo_total, p["g1"], p["be1"], p["b2"], p["g2"], p["be2"]], axis=0)
    return {"wqk": wqk, "bqk": bqk, "wvo": wvo, "vecs": vecs,
            "w1": p["w1"], "b1": p["b1"], "w2": p["w2"]}


def _const_spec(arr):
    nd = arr.ndim
    return pl.BlockSpec(arr.shape, lambda i, _nd=nd: (0,) * _nd)


def _cost_estimate(B, Lq, Lk):
    D, H, hd, F = KEY_DIM, NUM_HEADS, HEAD_SIZE, HIDDEN
    mm = lambda m, k, n: 2 * m * k * n
    per_b = (H * (mm(Lq, D, hd) + mm(Lk, D, hd) + mm(Lk, D, D)
                  + mm(Lq, hd, Lk) + mm(Lq, Lk, D))
             + mm(Lq, D, F) + mm(Lq, F, D) + 24 * Lq * D)
    flops = B * per_b
    transcendentals = B * (H * Lq * Lk + Lq * (F + D) + 4 * Lq)
    bytes_accessed = 4 * (2 * B * Lq * D + B * Lk * D
                          + 2 * H * D * hd + 2 * H * hd + H * D * D
                          + 6 * D + D * F + F + F * D)
    return pl.CostEstimate(flops=int(flops), transcendentals=int(transcendentals),
                           bytes_accessed=int(bytes_accessed))


def cross_attention(query, key, params, *, batch_block=None):
    B, Lq, D = query.shape
    Bk, Lk, Dk = key.shape
    assert D == KEY_DIM and Dk == KEY_DIM and Bk == B

    packed = prepare_params(params)
    Bb = batch_block if batch_block is not None else _pick_batch_block(B, Lq)
    assert B % Bb == 0
    NB = B // Bb

    # Flatten batch into rows (layout plumbing only).
    x2 = query.reshape(B * Lq, D)
    y2 = key.reshape(B * Lk, D)

    weight_order = ("wqk", "bqk", "wvo", "vecs", "w1", "b1", "w2")
    weights = [packed[n] for n in weight_order]

    in_specs = [
        pl.BlockSpec((Bb * Lq, D), lambda i: (i, 0)),   # query rows of this batch block
        pl.BlockSpec((Bb * Lk, D), lambda i: (i, 0)),   # key rows of this batch block
    ] + [_const_spec(w) for w in weights]

    kern = functools.partial(cross_attention_kernel, Bb=Bb, Lq=Lq, Lk=Lk)

    out2 = pl.pallas_call(
        kern,
        out_shape=jax.ShapeDtypeStruct((B * Lq, D), jnp.float32),
        grid=(NB,),
        in_specs=in_specs,
        out_specs=pl.BlockSpec((Bb * Lq, D), lambda i: (i, 0)),
        scratch_shapes=[pltpu.VMEM((Bb * Lq, D), jnp.float32)],   # attention accumulator
        compiler_params=pltpu.CompilerParams(dimension_semantics=("parallel",)),
        cost_estimate=_cost_estimate(B, Lq, Lk),
    )(x2, y2, *weights)
    return out2.reshape(B, Lq, D)


# ---------------------------------------------------------------------------
# Pure-JAX reference (same math on the raw module-layout params)
# ---------------------------------------------------------------------------
def cross_attention_ref(query, key, p):
    def one(q, k):
        Q = q @ p["wq"] + p["bq"][0]
        K = k @ p["wk"] + p["bk"][0]
        V = k @ p["wv"] + p["bv"][0]
        scale = 1.0 / np.sqrt(float(HEAD_SIZE))
        outs = []
        for h in range(NUM_HEADS):
            lo, hi = h * HEAD_SIZE, (h + 1) * HEAD_SIZE
            s = (Q[:, lo:hi] @ K[:, lo:hi].T) * scale
            pr = jax.nn.softmax(s, axis=-1)
            outs.append(pr @ V[:, lo:hi])
        attn = jnp.concatenate(outs, axis=-1)
        val = attn @ p["wo"] + p["bo"][0]
        val = _layer_norm(val, p["g1"][0], p["be1"][0])
        h1 = _elu(val @ p["w1"] + p["b1"][0])
        h2 = _elu(h1 @ p["w2"] + p["b2"][0])
        return _layer_norm(h2, p["g2"][0], p["be2"][0])
    return jax.vmap(one)(query, key)


def make_params(rng):
    """Deterministic synthetic parameters in the module's natural layout:
    Linear weights (in, out); biases / LayerNorm params (1, N)."""
    ks = jax.random.split(rng, 10)
    D, HD, F = KEY_DIM, NUM_HEADS * HEAD_SIZE, HIDDEN
    s = 0.1
    return {
        "wq": s * jax.random.normal(ks[0], (D, HD), jnp.float32),
        "bq": s * jax.random.normal(ks[1], (1, HD), jnp.float32),
        "wk": s * jax.random.normal(ks[2], (D, HD), jnp.float32),
        "bk": jnp.zeros((1, HD), jnp.float32),
        "wv": s * jax.random.normal(ks[3], (D, HD), jnp.float32),
        "bv": s * jax.random.normal(ks[8], (1, HD), jnp.float32),
        "wo": s * jax.random.normal(ks[4], (HD, D), jnp.float32),
        "bo": s * jax.random.normal(ks[9], (1, D), jnp.float32),
        "g1": jnp.ones((1, D), jnp.float32),
        "be1": jnp.zeros((1, D), jnp.float32),
        "w1": s * jax.random.normal(ks[5], (D, F), jnp.float32),
        "b1": s * jax.random.normal(ks[6], (1, F), jnp.float32),
        "w2": s * jax.random.normal(ks[7], (F, D), jnp.float32),
        "b2": jnp.zeros((1, D), jnp.float32),
        "g2": jnp.ones((1, D), jnp.float32),
        "be2": jnp.zeros((1, D), jnp.float32),
    }


if __name__ == "__main__":
    root = jax.random.PRNGKey(0)
    k_q, k_k, k_p = jax.random.split(root, 3)

    B, Lq, Lk = 2, 8, 16
    query = jax.random.normal(k_q, (B, Lq, KEY_DIM), jnp.float32)
    key = jax.random.normal(k_k, (B, Lk, KEY_DIM), jnp.float32)
    params = make_params(k_p)

    out = cross_attention(query, key, params)
    out = jax.block_until_ready(out)

    ref = cross_attention_ref(query, key, params)
    np.testing.assert_allclose(np.asarray(out), np.asarray(ref), rtol=2e-3, atol=2e-3)

    print("KERNEL_OK")
</pallas_src>

<mosaic_0001>
module attributes {stable_mosaic.version = 11 : i64} {
  func.func @cross_attention_kernel(%arg0: i32, %arg1: memref<16x32xf32, #tpu.memory_space<vmem>>, %arg2: memref<32x32xf32, #tpu.memory_space<vmem>>, %arg3: memref<2x4x32x8xf32, #tpu.memory_space<vmem>>, %arg4: memref<2x4x1x8xf32, #tpu.memory_space<vmem>>, %arg5: memref<4x32x32xf32, #tpu.memory_space<vmem>>, %arg6: memref<6x1x32xf32, #tpu.memory_space<vmem>>, %arg7: memref<32x128xf32, #tpu.memory_space<vmem>>, %arg8: memref<1x128xf32, #tpu.memory_space<vmem>>, %arg9: memref<128x32xf32, #tpu.memory_space<vmem>>, %arg10: memref<16x32xf32, #tpu.memory_space<vmem>>, %arg11: memref<16x32xf32, #tpu.memory_space<vmem>>) attributes {dimension_semantics = [#tpu.dimension_semantics<parallel>], iteration_bounds = array<i64: 1>, scalar_prefetch = 0 : i64, scratch_operands = 1 : i64, tpu.core_type = #tpu.core_type<tc>, window_params = [{transform_indices = @transform_0, window_bounds = array<i64: 16, 32>}, {transform_indices = @transform_1, window_bounds = array<i64: 32, 32>}, {pipeline_mode = #tpu.pipeline_mode<synchronous>, transform_indices = @transform_2, window_bounds = array<i64: 2, 4, 32, 8>}, {pipeline_mode = #tpu.pipeline_mode<synchronous>, transform_indices = @transform_3, window_bounds = array<i64: 2, 4, 1, 8>}, {pipeline_mode = #tpu.pipeline_mode<synchronous>, transform_indices = @transform_4, window_bounds = array<i64: 4, 32, 32>}, {pipeline_mode = #tpu.pipeline_mode<synchronous>, transform_indices = @transform_5, window_bounds = array<i64: 6, 1, 32>}, {pipeline_mode = #tpu.pipeline_mode<synchronous>, transform_indices = @transform_6, window_bounds = array<i64: 32, 128>}, {pipeline_mode = #tpu.pipeline_mode<synchronous>, transform_indices = @transform_7, window_bounds = array<i64: 1, 128>}, {pipeline_mode = #tpu.pipeline_mode<synchronous>, transform_indices = @transform_8, window_bounds = array<i64: 128, 32>}, {transform_indices = @transform_9, window_bounds = array<i64: 16, 32>}]} {
    %c0 = arith.constant 0 : index
    %c0_0 = arith.constant 0 : index
    %0 = vector.load %arg1[%c0, %c0_0] : memref<16x32xf32, #tpu.memory_space<vmem>>, vector<16x32xf32>
    %c0_1 = arith.constant 0 : index
    %c0_2 = arith.constant 0 : index
    %1 = vector.load %arg2[%c0_1, %c0_2] : memref<32x32xf32, #tpu.memory_space<vmem>>, vector<32x32xf32>
    %c0_3 = arith.constant 0 : index
    %c0_4 = arith.constant 0 : index
    %c0_5 = arith.constant 0 : index
    %c0_6 = arith.constant 0 : index
    %2 = vector.load %arg3[%c0_3, %c0_4, %c0_5, %c0_6] : memref<2x4x32x8xf32, #tpu.memory_space<vmem>>, vector<1x4x32x8xf32>
    %3 = vector.shape_cast %2 : vector<1x4x32x8xf32> to vector<4x32x8xf32>
    %c1 = arith.constant 1 : index
    %c0_7 = arith.constant 0 : index
    %c0_8 = arith.constant 0 : index
    %c0_9 = arith.constant 0 : index
    %4 = vector.load %arg3[%c1, %c0_7, %c0_8, %c0_9] : memref<2x4x32x8xf32, #tpu.memory_space<vmem>>, vector<1x4x32x8xf32>
    %5 = vector.shape_cast %4 : vector<1x4x32x8xf32> to vector<4x32x8xf32>
    %c0_10 = arith.constant 0 : index
    %c0_11 = arith.constant 0 : index
    %c0_12 = arith.constant 0 : index
    %c0_13 = arith.constant 0 : index
    %6 = vector.load %arg4[%c0_10, %c0_11, %c0_12, %c0_13] : memref<2x4x1x8xf32, #tpu.memory_space<vmem>>, vector<1x4x1x8xf32>
    %7 = vector.shape_cast %6 : vector<1x4x1x8xf32> to vector<4x1x8xf32>
    %c1_14 = arith.constant 1 : index
    %c0_15 = arith.constant 0 : index
    %c0_16 = arith.constant 0 : index
    %c0_17 = arith.constant 0 : index
    %8 = vector.load %arg4[%c1_14, %c0_15, %c0_16, %c0_17] : memref<2x4x1x8xf32, #tpu.memory_space<vmem>>, vector<1x4x1x8xf32>
    %9 = vector.shape_cast %8 : vector<1x4x1x8xf32> to vector<4x1x8xf32>
    %cst = arith.constant 0.000000e+00 : f32
    %10 = vector.broadcast %cst : f32 to vector<16x32xf32>
    %c0_18 = arith.constant 0 : index
    %c0_19 = arith.constant 0 : index
    %11 = vector.load %arg11[%c0_18, %c0_19] : memref<16x32xf32, #tpu.memory_space<vmem>>, vector<16x32xf32>
    tpu.vector_store %arg11[%c0_18, %c0_19], %10 {strides = array<i32>} : memref<16x32xf32, #tpu.memory_space<vmem>>, vector<16x32xf32>,
    %12 = vector.extract_strided_slice %3 {offsets = [0, 0, 0], sizes = [1, 32, 8], strides = [1, 1, 1]} : vector<4x32x8xf32> to vector<1x32x8xf32>
    %13 = vector.shape_cast %12 : vector<1x32x8xf32> to vector<32x8xf32>
    %cst_20 = arith.constant dense<0.000000e+00> : vector<16x8xf32>
    %14 = tpu.matmul %0, %13, %cst_20 {dimension_numbers = #tpu.dot_dimension_numbers<[1], [0], [0], [1], [0, 0, 1, 1], [], []>} : vector<16x32xf32>, vector<32x8xf32>, vector<16x8xf32> -> vector<16x8xf32>
    %15 = vector.extract_strided_slice %7 {offsets = [0, 0, 0], sizes = [1, 1, 8], strides = [1, 1, 1]} : vector<4x1x8xf32> to vector<1x1x8xf32>
    %16 = vector.shape_cast %15 : vector<1x1x8xf32> to vector<1x8xf32>
    %17 = vector.broadcast %16 : vector<1x8xf32> to vector<16x8xf32>
    %18 = arith.addf %14, %17 : vector<16x8xf32>
    %19 = vector.extract_strided_slice %5 {offsets = [0, 0, 0], sizes = [1, 32, 8], strides = [1, 1, 1]} : vector<4x32x8xf32> to vector<1x32x8xf32>
    %20 = vector.shape_cast %19 : vector<1x32x8xf32> to vector<32x8xf32>
    %cst_21 = arith.constant dense<0.000000e+00> : vector<32x8xf32>
    %21 = tpu.matmul %1, %20, %cst_21 {dimension_numbers = #tpu.dot_dimension_numbers<[1], [0], [0], [1], [0, 0, 1, 1], [], []>} : vector<32x32xf32>, vector<32x8xf32>, vector<32x8xf32> -> vector<32x8xf32>
    %22 = vector.extract_strided_slice %9 {offsets = [0, 0, 0], sizes = [1, 1, 8], strides = [1, 1, 1]} : vector<4x1x8xf32> to vector<1x1x8xf32>
    %23 = vector.shape_cast %22 : vector<1x1x8xf32> to vector<1x8xf32>
    %24 = vector.broadcast %23 : vector<1x8xf32> to vector<32x8xf32>
    %25 = arith.addf %21, %24 : vector<32x8xf32>
    %c0_22 = arith.constant 0 : index
    %c0_23 = arith.constant 0 : index
    %c0_24 = arith.constant 0 : index
    %26 = vector.load %arg5[%c0_22, %c0_23, %c0_24] : memref<4x32x32xf32, #tpu.memory_space<vmem>>, vector<1x32x32xf32>
    %27 = vector.shape_cast %26 : vector<1x32x32xf32> to vector<32x32xf32>
    %cst_25 = arith.constant dense<0.000000e+00> : vector<32x32xf32>
    %28 = tpu.matmul %1, %27, %cst_25 {dimension_numbers = #tpu.dot_dimension_numbers<[1], [0], [0], [1], [0, 0, 1, 1], [], []>} : vector<32x32xf32>, vector<32x32xf32>, vector<32x32xf32> -> vector<32x32xf32>
    %29 = vector.extract_strided_slice %18 {offsets = [0, 0], sizes = [8, 8], strides = [1, 1]} : vector<16x8xf32> to vector<8x8xf32>
    %30 = vector.extract_strided_slice %25 {offsets = [0, 0], sizes = [16, 8], strides = [1, 1]} : vector<32x8xf32> to vector<16x8xf32>
    %31 = tpu.transpose %30, [1, 0] : vector<16x8xf32> -> vector<8x16xf32>
    %cst_26 = arith.constant dense<0.000000e+00> : vector<8x16xf32>
    %32 = tpu.matmul %29, %31, %cst_26 {dimension_numbers = #tpu.dot_dimension_numbers<[1], [0], [0], [1], [0, 0, 1, 1], [], []>} : vector<8x8xf32>, vector<8x16xf32>, vector<8x16xf32> -> vector<8x16xf32>
    %cst_27 = arith.constant dense<0xFF800000> : vector<8xf32>
    %33 = vector.multi_reduction <maximumf>, %32, %cst_27 [1] : vector<8x16xf32> to vector<8xf32>
    %34 = vector.shape_cast %33 : vector<8xf32> to vector<8x1xf32>
    %35 = vector.broadcast %34 : vector<8x1xf32> to vector<8x16xf32>
    %36 = arith.subf %32, %35 : vector<8x16xf32>
    %37 = math.exp %36 : vector<8x16xf32>
    %cst_28 = arith.constant dense<0.000000e+00> : vector<8xf32>
    %38 = vector.multi_reduction <add>, %37, %cst_28 [1] : vector<8x16xf32> to vector<8xf32>
    %39 = vector.shape_cast %38 : vector<8xf32> to vector<8x1xf32>
    %40 = vector.broadcast %39 : vector<8x1xf32> to vector<8x16xf32>
    %41 = arith.divf %37, %40 : vector<8x16xf32>
    %c0_29 = arith.constant 0 : index
    %c0_30 = arith.constant 0 : index
    %42 = vector.load %arg11[%c0_29, %c0_30] : memref<16x32xf32, #tpu.memory_space<vmem>>, vector<8x32xf32>
    %43 = vector.extract_strided_slice %28 {offsets = [0, 0], sizes = [16, 32], strides = [1, 1]} : vector<32x32xf32> to vector<16x32xf32>
    %cst_31 = arith.constant dense<0.000000e+00> : vector<8x32xf32>
    %44 = tpu.matmul %41, %43, %cst_31 {dimension_numbers = #tpu.dot_dimension_numbers<[1], [0], [0], [1], [0, 0, 1, 1], [], []>} : vector<8x16xf32>, vector<16x32xf32>, vector<8x32xf32> -> vector<8x32xf32>
    %45 = arith.addf %42, %44 : vector<8x32xf32>
    %c0_32 = arith.constant 0 : index
    %c0_33 = arith.constant 0 : index
    %46 = vector.load %arg11[%c0_32, %c0_33] : memref<16x32xf32, #tpu.memory_space<vmem>>, vector<8x32xf32>
    tpu.vector_store %arg11[%c0_32, %c0_33], %45 {strides = array<i32>} : memref<16x32xf32, #tpu.memory_space<vmem>>, vector<8x32xf32>,
    %47 = vector.extract_strided_slice %18 {offsets = [8, 0], sizes = [8, 8], strides = [1, 1]} : vector<16x8xf32> to vector<8x8xf32>
    %48 = vector.extract_strided_slice %25 {offsets = [16, 0], sizes = [16, 8], strides = [1, 1]} : vector<32x8xf32> to vector<16x8xf32>
    %49 = tpu.transpose %48, [1, 0] : vector<16x8xf32> -> vector<8x16xf32>
    %cst_34 = arith.constant dense<0.000000e+00> : vector<8x16xf32>
    %50 = tpu.matmul %47, %49, %cst_34 {dimension_numbers = #tpu.dot_dimension_numbers<[1], [0], [0], [1], [0, 0, 1, 1], [], []>} : vector<8x8xf32>, vector<8x16xf32>, vector<8x16xf32> -> vector<8x16xf32>
    %cst_35 = arith.constant dense<0xFF800000> : vector<8xf32>
    %51 = vector.multi_reduction <maximumf>, %50, %cst_35 [1] : vector<8x16xf32> to vector<8xf32>
    %52 = vector.shape_cast %51 : vector<8xf32> to vector<8x1xf32>
    %53 = vector.broadcast %52 : vector<8x1xf32> to vector<8x16xf32>
    %54 = arith.subf %50, %53 : vector<8x16xf32>
    %55 = math.exp %54 : vector<8x16xf32>
    %cst_36 = arith.constant dense<0.000000e+00> : vector<8xf32>
    %56 = vector.multi_reduction <add>, %55, %cst_36 [1] : vector<8x16xf32> to vector<8xf32>
    %57 = vector.shape_cast %56 : vector<8xf32> to vector<8x1xf32>
    %58 = vector.broadcast %57 : vector<8x1xf32> to vector<8x16xf32>
    %59 = arith.divf %55, %58 : vector<8x16xf32>
    %c8 = arith.constant 8 : index
    %c0_37 = arith.constant 0 : index
    %60 = vector.load %arg11[%c8, %c0_37] : memref<16x32xf32, #tpu.memory_space<vmem>>, vector<8x32xf32>
    %61 = vector.extract_strided_slice %28 {offsets = [16, 0], sizes = [16, 32], strides = [1, 1]} : vector<32x32xf32> to vector<16x32xf32>
    %cst_38 = arith.constant dense<0.000000e+00> : vector<8x32xf32>
    %62 = tpu.matmul %59, %61, %cst_38 {dimension_numbers = #tpu.dot_dimension_numbers<[1], [0], [0], [1], [0, 0, 1, 1], [], []>} : vector<8x16xf32>, vector<16x32xf32>, vector<8x32xf32> -> vector<8x32xf32>
    %63 = arith.addf %60, %62 : vector<8x32xf32>
    %c8_39 = arith.constant 8 : index
    %c0_40 = arith.constant 0 : index
    %64 = vector.load %arg11[%c8_39, %c0_40] : memref<16x32xf32, #tpu.memory_space<vmem>>, vector<8x32xf32>
    tpu.vector_store %arg11[%c8_39, %c0_40], %63 {strides = array<i32>} : memref<16x32xf32, #tpu.memory_space<vmem>>, vector<8x32xf32>,
    %65 = vector.extract_strided_slice %3 {offsets = [1, 0, 0], sizes = [1, 32, 8], strides = [1, 1, 1]} : vector<4x32x8xf32> to vector<1x32x8xf32>
    %66 = vector.shape_cast %65 : vector<1x32x8xf32> to vector<32x8xf32>
    %cst_41 = arith.constant dense<0.000000e+00> : vector<16x8xf32>
    %67 = tpu.matmul %0, %66, %cst_41 {dimension_numbers = #tpu.dot_dimension_numbers<[1], [0], [0], [1], [0, 0, 1, 1], [], []>} : vector<16x32xf32>, vector<32x8xf32>, vector<16x8xf32> -> vector<16x8xf32>
    %68 = vector.extract_strided_slice %7 {offsets = [1, 0, 0], sizes = [1, 1, 8], strides = [1, 1, 1]} : vector<4x1x8xf32> to vector<1x1x8xf32>
    %69 = vector.shape_cast %68 : vector<1x1x8xf32> to vector<1x8xf32>
    %70 = vector.broadcast %69 : vector<1x8xf32> to vector<16x8xf32>
    %71 = arith.addf %67, %70 : vector<16x8xf32>
    %72 = vector.extract_strided_slice %5 {offsets = [1, 0, 0], sizes = [1, 32, 8], strides = [1, 1, 1]} : vector<4x32x8xf32> to vector<1x32x8xf32>
    %73 = vector.shape_cast %72 : vector<1x32x8xf32> to vector<32x8xf32>
    %cst_42 = arith.constant dense<0.000000e+00> : vector<32x8xf32>
    %74 = tpu.matmul %1, %73, %cst_42 {dimension_numbers = #tpu.dot_dimension_numbers<[1], [0], [0], [1], [0, 0, 1, 1], [], []>} : vector<32x32xf32>, vector<32x8xf32>, vector<32x8xf32> -> vector<32x8xf32>
    %75 = vector.extract_strided_slice %9 {offsets = [1, 0, 0], sizes = [1, 1, 8], strides = [1, 1, 1]} : vector<4x1x8xf32> to vector<1x1x8xf32>
    %76 = vector.shape_cast %75 : vector<1x1x8xf32> to vector<1x8xf32>
    %77 = vector.broadcast %76 : vector<1x8xf32> to vector<32x8xf32>
    %78 = arith.addf %74, %77 : vector<32x8xf32>
    %c1_43 = arith.constant 1 : index
    %c0_44 = arith.constant 0 : index
    %c0_45 = arith.constant 0 : index
    %79 = vector.load %arg5[%c1_43, %c0_44, %c0_45] : memref<4x32x32xf32, #tpu.memory_space<vmem>>, vector<1x32x32xf32>
    %80 = vector.shape_cast %79 : vector<1x32x32xf32> to vector<32x32xf32>
    %cst_46 = arith.constant dense<0.000000e+00> : vector<32x32xf32>
    %81 = tpu.matmul %1, %80, %cst_46 {dimension_numbers = #tpu.dot_dimension_numbers<[1], [0], [0], [1], [0, 0, 1, 1], [], []>} : vector<32x32xf32>, vector<32x32xf32>, vector<32x32xf32> -> vector<32x32xf32>
    %82 = vector.extract_strided_slice %71 {offsets = [0, 0], sizes = [8, 8], strides = [1, 1]} : vector<16x8xf32> to vector<8x8xf32>
    %83 = vector.extract_strided_slice %78 {offsets = [0, 0], sizes = [16, 8], strides = [1, 1]} : vector<32x8xf32> to vector<16x8xf32>
    %84 = tpu.transpose %83, [1, 0] : vector<16x8xf32> -> vector<8x16xf32>
    %cst_47 = arith.constant dense<0.000000e+00> : vector<8x16xf32>
    %85 = tpu.matmul %82, %84, %cst_47 {dimension_numbers = #tpu.dot_dimension_numbers<[1], [0], [0], [1], [0, 0, 1, 1], [], []>} : vector<8x8xf32>, vector<8x16xf32>, vector<8x16xf32> -> vector<8x16xf32>
    %cst_48 = arith.constant dense<0xFF800000> : vector<8xf32>
    %86 = vector.multi_reduction <maximumf>, %85, %cst_48 [1] : vector<8x16xf32> to vector<8xf32>
    %87 = vector.shape_cast %86 : vector<8xf32> to vector<8x1xf32>
    %88 = vector.broadcast %87 : vector<8x1xf32> to vector<8x16xf32>
    %89 = arith.subf %85, %88 : vector<8x16xf32>
    %90 = math.exp %89 : vector<8x16xf32>
    %cst_49 = arith.constant dense<0.000000e+00> : vector<8xf32>
    %91 = vector.multi_reduction <add>, %90, %cst_49 [1] : vector<8x16xf32> to vector<8xf32>
    %92 = vector.shape_cast %91 : vector<8xf32> to vector<8x1xf32>
    %93 = vector.broadcast %92 : vector<8x1xf32> to vector<8x16xf32>
    %94 = arith.divf %90, %93 : vector<8x16xf32>
    %c0_50 = arith.constant 0 : index
    %c0_51 = arith.constant 0 : index
    %95 = vector.load %arg11[%c0_50, %c0_51] : memref<16x32xf32, #tpu.memory_space<vmem>>, vector<8x32xf32>
    %96 = vector.extract_strided_slice %81 {offsets = [0, 0], sizes = [16, 32], strides = [1, 1]} : vector<32x32xf32> to vector<16x32xf32>
    %cst_52 = arith.constant dense<0.000000e+00> : vector<8x32xf32>
    %97 = tpu.matmul %94, %96, %cst_52 {dimension_numbers = #tpu.dot_dimension_numbers<[1], [0], [0], [1], [0, 0, 1, 1], [], []>} : vector<8x16xf32>, vector<16x32xf32>, vector<8x32xf32> -> vector<8x32xf32>
    %98 = arith.addf %95, %97 : vector<8x32xf32>
    %c0_53 = arith.constant 0 : index
    %c0_54 = arith.constant 0 : index
    %99 = vector.load %arg11[%c0_53, %c0_54] : memref<16x32xf32, #tpu.memory_space<vmem>>, vector<8x32xf32>
    tpu.vector_store %arg11[%c0_53, %c0_54], %98 {strides = array<i32>} : memref<16x32xf32, #tpu.memory_space<vmem>>, vector<8x32xf32>,
    %100 = vector.extract_strided_slice %71 {offsets = [8, 0], sizes = [8, 8], strides = [1, 1]} : vector<16x8xf32> to vector<8x8xf32>
    %101 = vector.extract_strided_slice %78 {offsets = [16, 0], sizes = [16, 8], strides = [1, 1]} : vector<32x8xf32> to vector<16x8xf32>
    %102 = tpu.transpose %101, [1, 0] : vector<16x8xf32> -> vector<8x16xf32>
    %cst_55 = arith.constant dense<0.000000e+00> : vector<8x16xf32>
    %103 = tpu.matmul %100, %102, %cst_55 {dimension_numbers = #tpu.dot_dimension_numbers<[1], [0], [0], [1], [0, 0, 1, 1], [], []>} : vector<8x8xf32>, vector<8x16xf32>, vector<8x16xf32> -> vector<8x16xf32>
    %cst_56 = arith.constant dense<0xFF800000> : vector<8xf32>
    %104 = vector.multi_reduction <maximumf>, %103, %cst_56 [1] : vector<8x16xf32> to vector<8xf32>
    %105 = vector.shape_cast %104 : vector<8xf32> to vector<8x1xf32>
    %106 = vector.broadcast %105 : vector<8x1xf32> to vector<8x16xf32>
    %107 = arith.subf %103, %106 : vector<8x16xf32>
    %108 = math.exp %107 : vector<8x16xf32>
    %cst_57 = arith.constant dense<0.000000e+00> : vector<8xf32>
    %109 = vector.multi_reduction <add>, %108, %cst_57 [1] : vector<8x16xf32> to vector<8xf32>
    %110 = vector.shape_cast %109 : vector<8xf32> to vector<8x1xf32>
    %111 = vector.broadcast %110 : vector<8x1xf32> to vector<8x16xf32>
    %112 = arith.divf %108, %111 : vector<8x16xf32>
    %c8_58 = arith.constant 8 : index
    %c0_59 = arith.constant 0 : index
    %113 = vector.load %arg11[%c8_58, %c0_59] : memref<16x32xf32, #tpu.memory_space<vmem>>, vector<8x32xf32>
    %114 = vector.extract_strided_slice %81 {offsets = [16, 0], sizes = [16, 32], strides = [1, 1]} : vector<32x32xf32> to vector<16x32xf32>
    %cst_60 = arith.constant dense<0.000000e+00> : vector<8x32xf32>
    %115 = tpu.matmul %112, %114, %cst_60 {dimension_numbers = #tpu.dot_dimension_numbers<[1], [0], [0], [1], [0, 0, 1, 1], [], []>} : vector<8x16xf32>, vector<16x32xf32>, vector<8x32xf32> -> vector<8x32xf32>
    %116 = arith.addf %113, %115 : vector<8x32xf32>
    %c8_61 = arith.constant 8 : index
    %c0_62 = arith.constant 0 : index
    %117 = vector.load %arg11[%c8_61, %c0_62] : memref<16x32xf32, #tpu.memory_space<vmem>>, vector<8x32xf32>
    tpu.vector_store %arg11[%c8_61, %c0_62], %116 {strides = array<i32>} : memref<16x32xf32, #tpu.memory_space<vmem>>, vector<8x32xf32>,
    %118 = vector.extract_strided_slice %3 {offsets = [2, 0, 0], sizes = [1, 32, 8], strides = [1, 1, 1]} : vector<4x32x8xf32> to vector<1x32x8xf32>
    %119 = vector.shape_cast %118 : vector<1x32x8xf32> to vector<32x8xf32>
    %cst_63 = arith.constant dense<0.000000e+00> : vector<16x8xf32>
    %120 = tpu.matmul %0, %119, %cst_63 {dimension_numbers = #tpu.dot_dimension_numbers<[1], [0], [0], [1], [0, 0, 1, 1], [], []>} : vector<16x32xf32>, vector<32x8xf32>, vector<16x8xf32> -> vector<16x8xf32>
    %121 = vector.extract_strided_slice %7 {offsets = [2, 0, 0], sizes = [1, 1, 8], strides = [1, 1, 1]} : vector<4x1x8xf32> to vector<1x1x8xf32>
    %122 = vector.shape_cast %121 : vector<1x1x8xf32> to vector<1x8xf32>
    %123 = vector.broadcast %122 : vector<1x8xf32> to vector<16x8xf32>
    %124 = arith.addf %120, %123 : vector<16x8xf32>
    %125 = vector.extract_strided_slice %5 {offsets = [2, 0, 0], sizes = [1, 32, 8], strides = [1, 1, 1]} : vector<4x32x8xf32> to vector<1x32x8xf32>
    %126 = vector.shape_cast %125 : vector<1x32x8xf32> to vector<32x8xf32>
    %cst_64 = arith.constant dense<0.000000e+00> : vector<32x8xf32>
    %127 = tpu.matmul %1, %126, %cst_64 {dimension_numbers = #tpu.dot_dimension_numbers<[1], [0], [0], [1], [0, 0, 1, 1], [], []>} : vector<32x32xf32>, vector<32x8xf32>, vector<32x8xf32> -> vector<32x8xf32>
    %128 = vector.extract_strided_slice %9 {offsets = [2, 0, 0], sizes = [1, 1, 8], strides = [1, 1, 1]} : vector<4x1x8xf32> to vector<1x1x8xf32>
    %129 = vector.shape_cast %128 : vector<1x1x8xf32> to vector<1x8xf32>
    %130 = vector.broadcast %129 : vector<1x8xf32> to vector<32x8xf32>
    %131 = arith.addf %127, %130 : vector<32x8xf32>
    %c2 = arith.constant 2 : index
    %c0_65 = arith.constant 0 : index
    %c0_66 = arith.constant 0 : index
    %132 = vector.load %arg5[%c2, %c0_65, %c0_66] : memref<4x32x32xf32, #tpu.memory_space<vmem>>, vector<1x32x32xf32>
    %133 = vector.shape_cast %132 : vector<1x32x32xf32> to vector<32x32xf32>
    %cst_67 = arith.constant dense<0.000000e+00> : vector<32x32xf32>
    %134 = tpu.matmul %1, %133, %cst_67 {dimension_numbers = #tpu.dot_dimension_numbers<[1], [0], [0], [1], [0, 0, 1, 1], [], []>} : vector<32x32xf32>, vector<32x32xf32>, vector<32x32xf32> -> vector<32x32xf32>
    %135 = vector.extract_strided_slice %124 {offsets = [0, 0], sizes = [8, 8], strides = [1, 1]} : vector<16x8xf32> to vector<8x8xf32>
    %136 = vector.extract_strided_slice %131 {offsets = [0, 0], sizes = [16, 8], strides = [1, 1]} : vector<32x8xf32> to vector<16x8xf32>
    %137 = tpu.transpose %136, [1, 0] : vector<16x8xf32> -> vector<8x16xf32>
    %cst_68 = arith.constant dense<0.000000e+00> : vector<8x16xf32>
    %138 = tpu.matmul %135, %137, %cst_68 {dimension_numbers = #tpu.dot_dimension_numbers<[1], [0], [0], [1], [0, 0, 1, 1], [], []>} : vector<8x8xf32>, vector<8x16xf32>, vector<8x16xf32> -> vector<8x16xf32>
    %cst_69 = arith.constant dense<0xFF800000> : vector<8xf32>
    %139 = vector.multi_reduction <maximumf>, %138, %cst_69 [1] : vector<8x16xf32> to vector<8xf32>
    %140 = vector.shape_cast %139 : vector<8xf32> to vector<8x1xf32>
    %141 = vector.broadcast %140 : vector<8x1xf32> to vector<8x16xf32>
    %142 = arith.subf %138, %141 : vector<8x16xf32>
    %143 = math.exp %142 : vector<8x16xf32>
    %cst_70 = arith.constant dense<0.000000e+00> : vector<8xf32>
    %144 = vector.multi_reduction <add>, %143, %cst_70 [1] : vector<8x16xf32> to vector<8xf32>
    %145 = vector.shape_cast %144 : vector<8xf32> to vector<8x1xf32>
    %146 = vector.broadcast %145 : vector<8x1xf32> to vector<8x16xf32>
    %147 = arith.divf %143, %146 : vector<8x16xf32>
    %c0_71 = arith.constant 0 : index
    %c0_72 = arith.constant 0 : index
    %148 = vector.load %arg11[%c0_71, %c0_72] : memref<16x32xf32, #tpu.memory_space<vmem>>, vector<8x32xf32>
    %149 = vector.extract_strided_slice %134 {offsets = [0, 0], sizes = [16, 32], strides = [1, 1]} : vector<32x32xf32> to vector<16x32xf32>
    %cst_73 = arith.constant dense<0.000000e+00> : vector<8x32xf32>
    %150 = tpu.matmul %147, %149, %cst_73 {dimension_numbers = #tpu.dot_dimension_numbers<[1], [0], [0], [1], [0, 0, 1, 1], [], []>} : vector<8x16xf32>, vector<16x32xf32>, vector<8x32xf32> -> vector<8x32xf32>
    %151 = arith.addf %148, %150 : vector<8x32xf32>
    %c0_74 = arith.constant 0 : index
    %c0_75 = arith.constant 0 : index
    %152 = vector.load %arg11[%c0_74, %c0_75] : memref<16x32xf32, #tpu.memory_space<vmem>>, vector<8x32xf32>
    tpu.vector_store %arg11[%c0_74, %c0_75], %151 {strides = array<i32>} : memref<16x32xf32, #tpu.memory_space<vmem>>, vector<8x32xf32>,
    %153 = vector.extract_strided_slice %124 {offsets = [8, 0], sizes = [8, 8], strides = [1, 1]} : vector<16x8xf32> to vector<8x8xf32>
    %154 = vector.extract_strided_slice %131 {offsets = [16, 0], sizes = [16, 8], strides = [1, 1]} : vector<32x8xf32> to vector<16x8xf32>
    %155 = tpu.transpose %154, [1, 0] : vector<16x8xf32> -> vector<8x16xf32>
    %cst_76 = arith.constant dense<0.000000e+00> : vector<8x16xf32>
    %156 = tpu.matmul %153, %155, %cst_76 {dimension_numbers = #tpu.dot_dimension_numbers<[1], [0], [0], [1], [0, 0, 1, 1], [], []>} : vector<8x8xf32>, vector<8x16xf32>, vector<8x16xf32> -> vector<8x16xf32>
    %cst_77 = arith.constant dense<0xFF800000> : vector<8xf32>
    %157 = vector.multi_reduction <maximumf>, %156, %cst_77 [1] : vector<8x16xf32> to vector<8xf32>
    %158 = vector.shape_cast %157 : vector<8xf32> to vector<8x1xf32>
    %159 = vector.broadcast %158 : vector<8x1xf32> to vector<8x16xf32>
    %160 = arith.subf %156, %159 : vector<8x16xf32>
    %161 = math.exp %160 : vector<8x16xf32>
    %cst_78 = arith.constant dense<0.000000e+00> : vector<8xf32>
    %162 = vector.multi_reduction <add>, %161, %cst_78 [1] : vector<8x16xf32> to vector<8xf32>
    %163 = vector.shape_cast %162 : vector<8xf32> to vector<8x1xf32>
    %164 = vector.broadcast %163 : vector<8x1xf32> to vector<8x16xf32>
    %165 = arith.divf %161, %164 : vector<8x16xf32>
    %c8_79 = arith.constant 8 : index
    %c0_80 = arith.constant 0 : index
    %166 = vector.load %arg11[%c8_79, %c0_80] : memref<16x32xf32, #tpu.memory_space<vmem>>, vector<8x32xf32>
    %167 = vector.extract_strided_slice %134 {offsets = [16, 0], sizes = [16, 32], strides = [1, 1]} : vector<32x32xf32> to vector<16x32xf32>
    %cst_81 = arith.constant dense<0.000000e+00> : vector<8x32xf32>
    %168 = tpu.matmul %165, %167, %cst_81 {dimension_numbers = #tpu.dot_dimension_numbers<[1], [0], [0], [1], [0, 0, 1, 1], [], []>} : vector<8x16xf32>, vector<16x32xf32>, vector<8x32xf32> -> vector<8x32xf32>
    %169 = arith.addf %166, %168 : vector<8x32xf32>
    %c8_82 = arith.constant 8 : index
    %c0_83 = arith.constant 0 : index
    %170 = vector.load %arg11[%c8_82, %c0_83] : memref<16x32xf32, #tpu.memory_space<vmem>>, vector<8x32xf32>
    tpu.vector_store %arg11[%c8_82, %c0_83], %169 {strides = array<i32>} : memref<16x32xf32, #tpu.memory_space<vmem>>, vector<8x32xf32>,
    %171 = vector.extract_strided_slice %3 {offsets = [3, 0, 0], sizes = [1, 32, 8], strides = [1, 1, 1]} : vector<4x32x8xf32> to vector<1x32x8xf32>
    %172 = vector.shape_cast %171 : vector<1x32x8xf32> to vector<32x8xf32>
    %cst_84 = arith.constant dense<0.000000e+00> : vector<16x8xf32>
    %173 = tpu.matmul %0, %172, %cst_84 {dimension_numbers = #tpu.dot_dimension_numbers<[1], [0], [0], [1], [0, 0, 1, 1], [], []>} : vector<16x32xf32>, vector<32x8xf32>, vector<16x8xf32> -> vector<16x8xf32>
    %174 = vector.extract_strided_slice %7 {offsets = [3, 0, 0], sizes = [1, 1, 8], strides = [1, 1, 1]} : vector<4x1x8xf32> to vector<1x1x8xf32>
    %175 = vector.shape_cast %174 : vector<1x1x8xf32> to vector<1x8xf32>
    %176 = vector.broadcast %175 : vector<1x8xf32> to vector<16x8xf32>
    %177 = arith.addf %173, %176 : vector<16x8xf32>
    %178 = vector.extract_strided_slice %5 {offsets = [3, 0, 0], sizes = [1, 32, 8], strides = [1, 1, 1]} : vector<4x32x8xf32> to vector<1x32x8xf32>
    %179 = vector.shape_cast %178 : vector<1x32x8xf32> to vector<32x8xf32>
    %cst_85 = arith.constant dense<0.000000e+00> : vector<32x8xf32>
    %180 = tpu.matmul %1, %179, %cst_85 {dimension_numbers = #tpu.dot_dimension_numbers<[1], [0], [0], [1], [0, 0, 1, 1], [], []>} : vector<32x32xf32>, vector<32x8xf32>, vector<32x8xf32> -> vector<32x8xf32>
    %181 = vector.extract_strided_slice %9 {offsets = [3, 0, 0], sizes = [1, 1, 8], strides = [1, 1, 1]} : vector<4x1x8xf32> to vector<1x1x8xf32>
    %182 = vector.shape_cast %181 : vector<1x1x8xf32> to vector<1x8xf32>
    %183 = vector.broadcast %182 : vector<1x8xf32> to vector<32x8xf32>
    %184 = arith.addf %180, %183 : vector<32x8xf32>
    %c3 = arith.constant 3 : index
    %c0_86 = arith.constant 0 : index
    %c0_87 = arith.constant 0 : index
    %185 = vector.load %arg5[%c3, %c0_86, %c0_87] : memref<4x32x32xf32, #tpu.memory_space<vmem>>, vector<1x32x32xf32>
    %186 = vector.shape_cast %185 : vector<1x32x32xf32> to vector<32x32xf32>
    %cst_88 = arith.constant dense<0.000000e+00> : vector<32x32xf32>
    %187 = tpu.matmul %1, %186, %cst_88 {dimension_numbers = #tpu.dot_dimension_numbers<[1], [0], [0], [1], [0, 0, 1, 1], [], []>} : vector<32x32xf32>, vector<32x32xf32>, vector<32x32xf32> -> vector<32x32xf32>
    %188 = vector.extract_strided_slice %177 {offsets = [0, 0], sizes = [8, 8], strides = [1, 1]} : vector<16x8xf32> to vector<8x8xf32>
    %189 = vector.extract_strided_slice %184 {offsets = [0, 0], sizes = [16, 8], strides = [1, 1]} : vector<32x8xf32> to vector<16x8xf32>
    %190 = tpu.transpose %189, [1, 0] : vector<16x8xf32> -> vector<8x16xf32>
    %cst_89 = arith.constant dense<0.000000e+00> : vector<8x16xf32>
    %191 = tpu.matmul %188, %190, %cst_89 {dimension_numbers = #tpu.dot_dimension_numbers<[1], [0], [0], [1], [0, 0, 1, 1], [], []>} : vector<8x8xf32>, vector<8x16xf32>, vector<8x16xf32> -> vector<8x16xf32>
    %cst_90 = arith.constant dense<0xFF800000> : vector<8xf32>
    %192 = vector.multi_reduction <maximumf>, %191, %cst_90 [1] : vector<8x16xf32> to vector<8xf32>
    %193 = vector.shape_cast %192 : vector<8xf32> to vector<8x1xf32>
    %194 = vector.broadcast %193 : vector<8x1xf32> to vector<8x16xf32>
    %195 = arith.subf %191, %194 : vector<8x16xf32>
    %196 = math.exp %195 : vector<8x16xf32>
    %cst_91 = arith.constant dense<0.000000e+00> : vector<8xf32>
    %197 = vector.multi_reduction <add>, %196, %cst_91 [1] : vector<8x16xf32> to vector<8xf32>
    %198 = vector.shape_cast %197 : vector<8xf32> to vector<8x1xf32>
    %199 = vector.broadcast %198 : vector<8x1xf32> to vector<8x16xf32>
    %200 = arith.divf %196, %199 : vector<8x16xf32>
    %c0_92 = arith.constant 0 : index
    %c0_93 = arith.constant 0 : index
    %201 = vector.load %arg11[%c0_92, %c0_93] : memref<16x32xf32, #tpu.memory_space<vmem>>, vector<8x32xf32>
    %202 = vector.extract_strided_slice %187 {offsets = [0, 0], sizes = [16, 32], strides = [1, 1]} : vector<32x32xf32> to vector<16x32xf32>
    %cst_94 = arith.constant dense<0.000000e+00> : vector<8x32xf32>
    %203 = tpu.matmul %200, %202, %cst_94 {dimension_numbers = #tpu.dot_dimension_numbers<[1], [0], [0], [1], [0, 0, 1, 1], [], []>} : vector<8x16xf32>, vector<16x32xf32>, vector<8x32xf32> -> vector<8x32xf32>
    %204 = arith.addf %201, %203 : vector<8x32xf32>
    %c0_95 = arith.constant 0 : index
    %c0_96 = arith.constant 0 : index
    %205 = vector.load %arg11[%c0_95, %c0_96] : memref<16x32xf32, #tpu.memory_space<vmem>>, vector<8x32xf32>
    tpu.vector_store %arg11[%c0_95, %c0_96], %204 {strides = array<i32>} : memref<16x32xf32, #tpu.memory_space<vmem>>, vector<8x32xf32>,
    %206 = vector.extract_strided_slice %177 {offsets = [8, 0], sizes = [8, 8], strides = [1, 1]} : vector<16x8xf32> to vector<8x8xf32>
    %207 = vector.extract_strided_slice %184 {offsets = [16, 0], sizes = [16, 8], strides = [1, 1]} : vector<32x8xf32> to vector<16x8xf32>
    %208 = tpu.transpose %207, [1, 0] : vector<16x8xf32> -> vector<8x16xf32>
    %cst_97 = arith.constant dense<0.000000e+00> : vector<8x16xf32>
    %209 = tpu.matmul %206, %208, %cst_97 {dimension_numbers = #tpu.dot_dimension_numbers<[1], [0], [0], [1], [0, 0, 1, 1], [], []>} : vector<8x8xf32>, vector<8x16xf32>, vector<8x16xf32> -> vector<8x16xf32>
    %cst_98 = arith.constant dense<0xFF800000> : vector<8xf32>
    %210 = vector.multi_reduction <maximumf>, %209, %cst_98 [1] : vector<8x16xf32> to vector<8xf32>
    %211 = vector.shape_cast %210 : vector<8xf32> to vector<8x1xf32>
    %212 = vector.broadcast %211 : vector<8x1xf32> to vector<8x16xf32>
    %213 = arith.subf %209, %212 : vector<8x16xf32>
    %214 = math.exp %213 : vector<8x16xf32>
    %cst_99 = arith.constant dense<0.000000e+00> : vector<8xf32>
    %215 = vector.multi_reduction <add>, %214, %cst_99 [1] : vector<8x16xf32> to vector<8xf32>
    %216 = vector.shape_cast %215 : vector<8xf32> to vector<8x1xf32>
    %217 = vector.broadcast %216 : vector<8x1xf32> to vector<8x16xf32>
    %218 = arith.divf %214, %217 : vector<8x16xf32>
    %c8_100 = arith.constant 8 : index
    %c0_101 = arith.constant 0 : index
    %219 = vector.load %arg11[%c8_100, %c0_101] : memref<16x32xf32, #tpu.memory_space<vmem>>, vector<8x32xf32>
    %220 = vector.extract_strided_slice %187 {offsets = [16, 0], sizes = [16, 32], strides = [1, 1]} : vector<32x32xf32> to vector<16x32xf32>
    %cst_102 = arith.constant dense<0.000000e+00> : vector<8x32xf32>
    %221 = tpu.matmul %218, %220, %cst_102 {dimension_numbers = #tpu.dot_dimension_numbers<[1], [0], [0], [1], [0, 0, 1, 1], [], []>} : vector<8x16xf32>, vector<16x32xf32>, vector<8x32xf32> -> vector<8x32xf32>
    %222 = arith.addf %219, %221 : vector<8x32xf32>
    %c8_103 = arith.constant 8 : index
    %c0_104 = arith.constant 0 : index
    %223 = vector.load %arg11[%c8_103, %c0_104] : memref<16x32xf32, #tpu.memory_space<vmem>>, vector<8x32xf32>
    tpu.vector_store %arg11[%c8_103, %c0_104], %222 {strides = array<i32>} : memref<16x32xf32, #tpu.memory_space<vmem>>, vector<8x32xf32>,
    %c0_105 = arith.constant 0 : index
    %c0_106 = arith.constant 0 : index
    %c0_107 = arith.constant 0 : index
    %224 = vector.load %arg6[%c0_105, %c0_106, %c0_107] : memref<6x1x32xf32, #tpu.memory_space<vmem>>, vector<1x1x32xf32>
    %225 = vector.shape_cast %224 : vector<1x1x32xf32> to vector<1x32xf32>
    %c1_108 = arith.constant 1 : index
    %c0_109 = arith.constant 0 : index
    %c0_110 = arith.constant 0 : index
    %226 = vector.load %arg6[%c1_108, %c0_109, %c0_110] : memref<6x1x32xf32, #tpu.memory_space<vmem>>, vector<1x1x32xf32>
    %227 = vector.shape_cast %226 : vector<1x1x32xf32> to vector<1x32xf32>
    %c2_111 = arith.constant 2 : index
    %c0_112 = arith.constant 0 : index
    %c0_113 = arith.constant 0 : index
    %228 = vector.load %arg6[%c2_111, %c0_112, %c0_113] : memref<6x1x32xf32, #tpu.memory_space<vmem>>, vector<1x1x32xf32>
    %229 = vector.shape_cast %228 : vector<1x1x32xf32> to vector<1x32xf32>
    %c3_114 = arith.constant 3 : index
    %c0_115 = arith.constant 0 : index
    %c0_116 = arith.constant 0 : index
    %230 = vector.load %arg6[%c3_114, %c0_115, %c0_116] : memref<6x1x32xf32, #tpu.memory_space<vmem>>, vector<1x1x32xf32>
    %231 = vector.shape_cast %230 : vector<1x1x32xf32> to vector<1x32xf32>
    %c4 = arith.constant 4 : index
    %c0_117 = arith.constant 0 : index
    %c0_118 = arith.constant 0 : index
    %232 = vector.load %arg6[%c4, %c0_117, %c0_118] : memref<6x1x32xf32, #tpu.memory_space<vmem>>, vector<1x1x32xf32>
    %233 = vector.shape_cast %232 : vector<1x1x32xf32> to vector<1x32xf32>
    %c5 = arith.constant 5 : index
    %c0_119 = arith.constant 0 : index
    %c0_120 = arith.constant 0 : index
    %234 = vector.load %arg6[%c5, %c0_119, %c0_120] : memref<6x1x32xf32, #tpu.memory_space<vmem>>, vector<1x1x32xf32>
    %235 = vector.shape_cast %234 : vector<1x1x32xf32> to vector<1x32xf32>
    %c0_121 = arith.constant 0 : index
    %c0_122 = arith.constant 0 : index
    %236 = vector.load %arg11[%c0_121, %c0_122] : memref<16x32xf32, #tpu.memory_space<vmem>>, vector<16x32xf32>
    %237 = vector.broadcast %225 : vector<1x32xf32> to vector<16x32xf32>
    %238 = arith.addf %236, %237 : vector<16x32xf32>
    %cst_123 = arith.constant dense<0.000000e+00> : vector<16xf32>
    %239 = vector.multi_reduction <add>, %238, %cst_123 [1] : vector<16x32xf32> to vector<16xf32>
    %240 = vector.shape_cast %239 : vector<16xf32> to vector<16x1xf32>
    %cst_124 = arith.constant 3.200000e+01 : f32
    %241 = vector.broadcast %cst_124 : f32 to vector<16x1xf32>
    %242 = arith.divf %240, %241 : vector<16x1xf32>
    %243 = vector.broadcast %242 : vector<16x1xf32> to vector<16x32xf32>
    %244 = arith.subf %238, %243 : vector<16x32xf32>
    %245 = arith.mulf %244, %244 : vector<16x32xf32>
    %cst_125 = arith.constant dense<0.000000e+00> : vector<16xf32>
    %246 = vector.multi_reduction <add>, %245, %cst_125 [1] : vector<16x32xf32> to vector<16xf32>
    %247 = vector.shape_cast %246 : vector<16xf32> to vector<16x1xf32>
    %cst_126 = arith.constant 3.200000e+01 : f32
    %248 = vector.broadcast %cst_126 : f32 to vector<16x1xf32>
    %249 = arith.divf %247, %248 : vector<16x1xf32>
    %250 = vector.broadcast %242 : vector<16x1xf32> to vector<16x32xf32>
    %251 = arith.subf %238, %250 : vector<16x32xf32>
    %cst_127 = arith.constant 1.000000e-03 : f32
    %252 = vector.broadcast %cst_127 : f32 to vector<16x1xf32>
    %253 = arith.addf %249, %252 : vector<16x1xf32>
    %254 = math.rsqrt %253 : vector<16x1xf32>
    %255 = vector.broadcast %254 : vector<16x1xf32> to vector<16x32xf32>
    %256 = arith.mulf %251, %255 : vector<16x32xf32>
    %257 = vector.broadcast %227 : vector<1x32xf32> to vector<16x32xf32>
    %258 = arith.mulf %256, %257 : vector<16x32xf32>
    %259 = vector.broadcast %229 : vector<1x32xf32> to vector<16x32xf32>
    %260 = arith.addf %258, %259 : vector<16x32xf32>
    %c0_128 = arith.constant 0 : index
    %c0_129 = arith.constant 0 : index
    %261 = vector.load %arg7[%c0_128, %c0_129] : memref<32x128xf32, #tpu.memory_space<vmem>>, vector<32x128xf32>
    %cst_130 = arith.constant dense<0.000000e+00> : vector<16x128xf32>
    %262 = tpu.matmul %260, %261, %cst_130 {dimension_numbers = #tpu.dot_dimension_numbers<[1], [0], [0], [1], [0, 0, 1, 1], [], []>} : vector<16x32xf32>, vector<32x128xf32>, vector<16x128xf32> -> vector<16x128xf32>
    %c0_131 = arith.constant 0 : index
    %c0_132 = arith.constant 0 : index
    %263 = vector.load %arg8[%c0_131, %c0_132] : memref<1x128xf32, #tpu.memory_space<vmem>>, vector<1x128xf32>
    %264 = vector.broadcast %263 : vector<1x128xf32> to vector<16x128xf32>
    %265 = arith.addf %262, %264 : vector<16x128xf32>
    %cst_133 = arith.constant 0.000000e+00 : f32
    %266 = vector.broadcast %cst_133 : f32 to vector<16x128xf32>
    %267 = arith.cmpf ogt, %265, %266 : vector<16x128xf32>
    %cst_134 = arith.constant 0.000000e+00 : f32
    %268 = vector.broadcast %cst_134 : f32 to vector<16x128xf32>
    %269 = arith.minimumf %265, %268 : vector<16x128xf32>
    %270 = math.exp %269 : vector<16x128xf32>
    %cst_135 = arith.constant 1.000000e+00 : f32
    %271 = vector.broadcast %cst_135 : f32 to vector<16x128xf32>
    %272 = arith.subf %270, %271 : vector<16x128xf32>
    %273 = arith.select %267, %265, %272 : vector<16x128xi1>, vector<16x128xf32>
    %c0_136 = arith.constant 0 : index
    %c0_137 = arith.constant 0 : index
    %274 = vector.load %arg9[%c0_136, %c0_137] : memref<128x32xf32, #tpu.memory_space<vmem>>, vector<128x32xf32>
    %cst_138 = arith.constant dense<0.000000e+00> : vector<16x32xf32>
    %275 = tpu.matmul %273, %274, %cst_138 {dimension_numbers = #tpu.dot_dimension_numbers<[1], [0], [0], [1], [0, 0, 1, 1], [], []>} : vector<16x128xf32>, vector<128x32xf32>, vector<16x32xf32> -> vector<16x32xf32>
    %276 = vector.broadcast %231 : vector<1x32xf32> to vector<16x32xf32>
    %277 = arith.addf %275, %276 : vector<16x32xf32>
    %cst_139 = arith.constant 0.000000e+00 : f32
    %278 = vector.broadcast %cst_139 : f32 to vector<16x32xf32>
    %279 = arith.cmpf ogt, %277, %278 : vector<16x32xf32>
    %cst_140 = arith.constant 0.000000e+00 : f32
    %280 = vector.broadcast %cst_140 : f32 to vector<16x32xf32>
    %281 = arith.minimumf %277, %280 : vector<16x32xf32>
    %282 = math.exp %281 : vector<16x32xf32>
    %cst_141 = arith.constant 1.000000e+00 : f32
    %283 = vector.broadcast %cst_141 : f32 to vector<16x32xf32>
    %284 = arith.subf %282, %283 : vector<16x32xf32>
    %285 = arith.select %279, %277, %284 : vector<16x32xi1>, vector<16x32xf32>
    %cst_142 = arith.constant dense<0.000000e+00> : vector<16xf32>
    %286 = vector.multi_reduction <add>, %285, %cst_142 [1] : vector<16x32xf32> to vector<16xf32>
    %287 = vector.shape_cast %286 : vector<16xf32> to vector<16x1xf32>
    %cst_143 = arith.constant 3.200000e+01 : f32
    %288 = vector.broadcast %cst_143 : f32 to vector<16x1xf32>
    %289 = arith.divf %287, %288 : vector<16x1xf32>
    %290 = vector.broadcast %289 : vector<16x1xf32> to vector<16x32xf32>
    %291 = arith.subf %285, %290 : vector<16x32xf32>
    %292 = arith.mulf %291, %291 : vector<16x32xf32>
    %cst_144 = arith.constant dense<0.000000e+00> : vector<16xf32>
    %293 = vector.multi_reduction <add>, %292, %cst_144 [1] : vector<16x32xf32> to vector<16xf32>
    %294 = vector.shape_cast %293 : vector<16xf32> to vector<16x1xf32>
    %cst_145 = arith.constant 3.200000e+01 : f32
    %295 = vector.broadcast %cst_145 : f32 to vector<16x1xf32>
    %296 = arith.divf %294, %295 : vector<16x1xf32>
    %297 = vector.broadcast %289 : vector<16x1xf32> to vector<16x32xf32>
    %298 = arith.subf %285, %297 : vector<16x32xf32>
    %cst_146 = arith.constant 1.000000e-03 : f32
    %299 = vector.broadcast %cst_146 : f32 to vector<16x1xf32>
    %300 = arith.addf %296, %299 : vector<16x1xf32>
    %301 = math.rsqrt %300 : vector<16x1xf32>
    %302 = vector.broadcast %301 : vector<16x1xf32> to vector<16x32xf32>
    %303 = arith.mulf %298, %302 : vector<16x32xf32>
    %304 = vector.broadcast %233 : vector<1x32xf32> to vector<16x32xf32>
    %305 = arith.mulf %303, %304 : vector<16x32xf32>
    %306 = vector.broadcast %235 : vector<1x32xf32> to vector<16x32xf32>
    %307 = arith.addf %305, %306 : vector<16x32xf32>
    %c0_147 = arith.constant 0 : index
    %c0_148 = arith.constant 0 : index
    %308 = vector.load %arg10[%c0_147, %c0_148] : memref<16x32xf32, #tpu.memory_space<vmem>>, vector<16x32xf32>
    tpu.vector_store %arg10[%c0_147, %c0_148], %307 {strides = array<i32>} : memref<16x32xf32, #tpu.memory_space<vmem>>, vector<16x32xf32>,
    return
  }
  func.func @transform_0(%arg0: i32) -> (i32, i32) {
    %c0_i32 = arith.constant 0 : i32
    %c0_i32_0 = arith.constant 0 : i32
    return %arg0, %c0_i32 : i32, i32
  }
  func.func @transform_1(%arg0: i32) -> (i32, i32) {
    %c0_i32 = arith.constant 0 : i32
    %c0_i32_0 = arith.constant 0 : i32
    return %arg0, %c0_i32 : i32, i32
  }
  func.func @transform_2(%arg0: i32) -> (i32, i32, i32, i32) {
    %c0_i32 = arith.constant 0 : i32
    %c0_i32_0 = arith.constant 0 : i32
    %c0_i32_1 = arith.constant 0 : i32
    %c0_i32_2 = arith.constant 0 : i32
    %c0_i32_3 = arith.constant 0 : i32
    return %c0_i32, %c0_i32_0, %c0_i32_1, %c0_i32_2 : i32, i32, i32, i32
  }
  func.func @transform_3(%arg0: i32) -> (i32, i32, i32, i32) {
    %c0_i32 = arith.constant 0 : i32
    %c0_i32_0 = arith.constant 0 : i32
    %c0_i32_1 = arith.constant 0 : i32
    %c0_i32_2 = arith.constant 0 : i32
    %c0_i32_3 = arith.constant 0 : i32
    return %c0_i32, %c0_i32_0, %c0_i32_1, %c0_i32_2 : i32, i32, i32, i32
  }
  func.func @transform_4(%arg0: i32) -> (i32, i32, i32) {
    %c0_i32 = arith.constant 0 : i32
    %c0_i32_0 = arith.constant 0 : i32
    %c0_i32_1 = arith.constant 0 : i32
    %c0_i32_2 = arith.constant 0 : i32
    return %c0_i32, %c0_i32_0, %c0_i32_1 : i32, i32, i32
  }
  func.func @transform_5(%arg0: i32) -> (i32, i32, i32) {
    %c0_i32 = arith.constant 0 : i32
    %c0_i32_0 = arith.constant 0 : i32
    %c0_i32_1 = arith.constant 0 : i32
    %c0_i32_2 = arith.constant 0 : i32
    return %c0_i32, %c0_i32_0, %c0_i32_1 : i32, i32, i32
  }
  func.func @transform_6(%arg0: i32) -> (i32, i32) {
    %c0_i32 = arith.constant 0 : i32
    %c0_i32_0 = arith.constant 0 : i32
    %c0_i32_1 = arith.constant 0 : i32
    return %c0_i32, %c0_i32_0 : i32, i32
  }
  func.func @transform_7(%arg0: i32) -> (i32, i32) {
    %c0_i32 = arith.constant 0 : i32
    %c0_i32_0 = arith.constant 0 : i32
    %c0_i32_1 = arith.constant 0 : i32
    return %c0_i32, %c0_i32_0 : i32, i32
  }
  func.func @transform_8(%arg0: i32) -> (i32, i32) {
    %c0_i32 = arith.constant 0 : i32
    %c0_i32_0 = arith.constant 0 : i32
    %c0_i32_1 = arith.constant 0 : i32
    return %c0_i32, %c0_i32_0 : i32, i32
  }
  func.func @transform_9(%arg0: i32) -> (i32, i32) {
    %c0_i32 = arith.constant 0 : i32
    %c0_i32_0 = arith.constant 0 : i32
    return %arg0, %c0_i32 : i32, i32
  }
}

</mosaic_0001>

<llo_original>
// kernel: tpu_custom_call.1
$region0: #{tpu_custom_call.1}
  #allocation0 [shape = 'u32[]', space=smem, size = 0x4, offset = 0x4, fixed_abs, tag = 'smem constant byte address 0x4 - core index']
  #allocation1 [shape = 'u32[144,128]{1,0:T(1,128)}', space=vmem, size = 0x12000, scoped, tag = 'internal scratch']
  #allocation2 [shape = 'f32[16,32]{1,0:T(8,128)}', space=vmem, size = 0x2000, scoped, tag = 'scratch operand']
  %s0 = inlined_call_operand.vmem [shape: f32[16,32], index: 0, kind: input, shape index: {}]
  %s1 = inlined_call_operand.vmem [shape: f32[32,32], index: 1, kind: input, shape index: {}]
  %s2 = inlined_call_operand.vmem [shape: f32[2,4,32,8], index: 2, kind: input, shape index: {}]
  %s3 = inlined_call_operand.vmem [shape: f32[2,4,1,8], index: 3, kind: input, shape index: {}]
  %s4 = inlined_call_operand.vmem [shape: f32[4,32,32], index: 4, kind: input, shape index: {}]
  %s5 = inlined_call_operand.vmem [shape: f32[6,1,32], index: 5, kind: input, shape index: {}]
  %s6 = inlined_call_operand.vmem [shape: f32[32,128], index: 6, kind: input, shape index: {}]
  %s7 = inlined_call_operand.vmem [shape: f32[1,128], index: 7, kind: input, shape index: {}]
  %s8 = inlined_call_operand.vmem [shape: f32[128,32], index: 8, kind: input, shape index: {}]
  %s9 = inlined_call_operand.hbm [shape: f32[16,32], index: 9, kind: output, shape index: {}]
  %s10 = sld [smem:[#allocation0]]
  $region46: #{tpu_custom_call.1} parent=0
    _
  %s12 = ssub.s32 1, %s10
  %s13 = scalar_select 0, %s12, %s10
  $region1: #{tpu_custom_call.1} parent=0
    #allocation3 [shape = 'u8[8192]{0}', space=vmem, size = 0x2000, scoped, tag = 'output window, operand 0, single buffered']
    #allocation4 [shape = 's32[1]{0}', space=sflag, size = 0x4, scoped, tag = 'scoped memory for tpu_custom_call.1']
    %14 = vsyncpa [#allocation4], 0
    // Predicated region
    $region2: #{tpu_custom_call.1} parent=1 // pred_check
      _
    $region3: #{tpu_custom_call.1} parent=1 // pred_check_branch
      %16 = sbr.rel (0) target = $region5
    $region4: #{tpu_custom_call.1} parent=1 // pred_region
      _
    $region5: #{tpu_custom_call.1} parent=1 // pred_fallthru
      _
    // Predicated region
    $region6: #{tpu_custom_call.1} parent=1 // pred_check
      _
    $region7: #{tpu_custom_call.1} parent=1 // pred_check_branch
      %18 = sbr.rel (0) target = $region9
    $region8: #{tpu_custom_call.1} parent=1 // pred_region
      _
    $region9: #{tpu_custom_call.1} parent=1 // pred_fallthru
      _
    // Predicated region
    $region10: #{tpu_custom_call.1} parent=1 // pred_check
      _
    $region11: #{tpu_custom_call.1} parent=1 // pred_check_branch
      %20 = sbr.rel (0) target = $region13
    $region12: #{tpu_custom_call.1} parent=1 // pred_region
      _
    $region13: #{tpu_custom_call.1} parent=1 // pred_fallthru
      _
    // Predicated region
    $region14: #{tpu_custom_call.1} parent=1 // pred_check
      _
    $region15: #{tpu_custom_call.1} parent=1 // pred_check_branch
      %22 = sbr.rel (0) target = $region17
    $region16: #{tpu_custom_call.1} parent=1 // pred_region
      _
    $region17: #{tpu_custom_call.1} parent=1 // pred_fallthru
      _
    // Predicated region
    $region18: #{tpu_custom_call.1} parent=1 // pred_check
      _
    $region19: #{tpu_custom_call.1} parent=1 // pred_check_branch
      %24 = sbr.rel (0) target = $region21
    $region20: #{tpu_custom_call.1} parent=1 // pred_region
      _
    $region21: #{tpu_custom_call.1} parent=1 // pred_fallthru
      _
    // Predicated region
    $region22: #{tpu_custom_call.1} parent=1 // pred_check
      _
    $region23: #{tpu_custom_call.1} parent=1 // pred_check_branch
      %26 = sbr.rel (0) target = $region25
    $region24: #{tpu_custom_call.1} parent=1 // pred_region
      _
    $region25: #{tpu_custom_call.1} parent=1 // pred_fallthru
      _
    // Predicated region
    $region26: #{tpu_custom_call.1} parent=1 // pred_check
      _
    $region27: #{tpu_custom_call.1} parent=1 // pred_check_branch
      %28 = sbr.rel (0) target = $region29
    $region28: #{tpu_custom_call.1} parent=1 // pred_region
      _
    $region29: #{tpu_custom_call.1} parent=1 // pred_fallthru
      _
    // Predicated region
    $region30: #{tpu_custom_call.1} parent=1 // pred_check
      _
    $region31: #{tpu_custom_call.1} parent=1 // pred_check_branch
      %30 = sbr.rel (0) target = $region33
    $region32: #{tpu_custom_call.1} parent=1 // pred_region
      _
    $region33: #{tpu_custom_call.1} parent=1 // pred_fallthru
      _
    // Predicated region
    $region34: #{tpu_custom_call.1} parent=1 // pred_check
      _
    $region35: #{tpu_custom_call.1} parent=1 // pred_check_branch
      %32 = sbr.rel (0) target = $region37
    $region36: #{tpu_custom_call.1} parent=1 // pred_region
      _
    $region37: #{tpu_custom_call.1} parent=1 // pred_fallthru
      _
    %v33 = vld [vmem:[%s0] sm:$0xff]
    %v34 = vld [vmem:[%s0 + $0x8] sm:$0xff]
    %v35 = vld [vmem:[%s1] sm:$0xff]
    %v36 = vld [vmem:[%s1 + $0x8] sm:$0xff]
    %v37 = vld [vmem:[%s1 + $0x10] sm:$0xff]
    %v38 = vld [vmem:[%s1 + $0x18] sm:$0xff]
    %v39 = vld [vmem:[%s2] sm:$0xff]
    %v40 = vld [vmem:[%s2 + $0x8] sm:$0xff]
    %v41 = vld [vmem:[%s2 + $0x10] sm:$0xff]
    %v42 = vld [vmem:[%s2 + $0x18] sm:$0xff]
    %v43 = vld [vmem:[%s2 + $0x20] sm:$0xff]
    %v44 = vld [vmem:[%s2 + $0x28] sm:$0xff]
    %v45 = vld [vmem:[%s2 + $0x30] sm:$0xff]
    %v46 = vld [vmem:[%s2 + $0x38] sm:$0xff]
    %v47 = vld [vmem:[%s2 + $0x40] sm:$0xff]
    %v48 = vld [vmem:[%s2 + $0x48] sm:$0xff]
    %v49 = vld [vmem:[%s2 + $0x50] sm:$0xff]
    %v50 = vld [vmem:[%s2 + $0x58] sm:$0xff]
    %v51 = vld [vmem:[%s2 + $0x60] sm:$0xff]
    %v52 = vld [vmem:[%s2 + $0x68] sm:$0xff]
    %v53 = vld [vmem:[%s2 + $0x70] sm:$0xff]
    %v54 = vld [vmem:[%s2 + $0x78] sm:$0xff]
    %s55 = scalar_lea.vmem %s2, 128
    %v56 = vld [vmem:[%s55] sm:$0xff]
    %v57 = vld [vmem:[%s55 + $0x8] sm:$0xff]
    %v58 = vld [vmem:[%s55 + $0x10] sm:$0xff]
    %v59 = vld [vmem:[%s55 + $0x18] sm:$0xff]
    %v60 = vld [vmem:[%s55 + $0x20] sm:$0xff]
    %v61 = vld [vmem:[%s55 + $0x28] sm:$0xff]
    %v62 = vld [vmem:[%s55 + $0x30] sm:$0xff]
    %v63 = vld [vmem:[%s55 + $0x38] sm:$0xff]
    %v64 = vld [vmem:[%s55 + $0x40] sm:$0xff]
    %v65 = vld [vmem:[%s55 + $0x48] sm:$0xff]
    %v66 = vld [vmem:[%s55 + $0x50] sm:$0xff]
    %v67 = vld [vmem:[%s55 + $0x58] sm:$0xff]
    %v68 = vld [vmem:[%s55 + $0x60] sm:$0xff]
    %v69 = vld [vmem:[%s55 + $0x68] sm:$0xff]
    %v70 = vld [vmem:[%s55 + $0x70] sm:$0xff]
    %v71 = vld [vmem:[%s55 + $0x78] sm:$0xff]
    %v72 = vld [vmem:[%s3] sm:$0x1]
    %v73 = vld [vmem:[%s3 + $0x1] sm:$0x1]
    %v74 = vld [vmem:[%s3 + $0x2] sm:$0x1]
    %v75 = vld [vmem:[%s3 + $0x3] sm:$0x1]
    %s76 = scalar_lea.vmem %s3, 4
    %v77 = vld [vmem:[%s76] sm:$0x1]
    %v78 = vld [vmem:[%s76 + $0x1] sm:$0x1]
    %v79 = vld [vmem:[%s76 + $0x2] sm:$0x1]
    %v80 = vld [vmem:[%s76 + $0x3] sm:$0x1]
    %vm81 = vcmask 261120
    %82 = vst.msk [vmem:[#allocation2] sm:$0xff] %vm81, 0.0
    %83 = vst.msk [vmem:[#allocation2 + $0x8] sm:$0xff] %vm81, 0.0
    %v85 = vlaneseq
    %v86 = vshrl.u32 %v85, 7
    %v87 = vsub.s32 0, %v86
    %v88 = vrot.slane %v72, %v87
    %v91 = vsel %vm81, %v33, 0
    %v94 = vsel %vm81, %v34, 0
    %96 = vmatprep.subr.mxu0 0.0
    %97 = vmatpush1.msra.mxu0 %v39
    %98 = vmatprep.subr.mxu0 0.0
    %99 = vmatpush1.msra.mxu0 %v40
    %100 = vmatprep.subr.mxu0 0.0
    %101 = vmatpush1.msra.mxu0 %v41
    %102 = vmatprep.subr.mxu0 0.0
    %103 = vmatpush1.msra.mxu0 %v42
    %104 = vmatprep.subr.mxu0 0.0
    %105 = vmatpush1.msra.mxu0 0.0
    %106 = vmatprep.subr.mxu0 0.0
    %107 = vmatpush1.msra.mxu0 0.0
    %108 = vmatprep.subr.mxu0 0.0
    %109 = vmatpush1.msra.mxu0 0.0
    %110 = vmatprep.subr.mxu0 0.0
    %111 = vmatpush1.msra.mxu0 0.0
    %112 = vmatprep.subr.mxu0 0.0
    %113 = vmatpush1.msra.mxu0 0.0
    %114 = vmatprep.subr.mxu0 0.0
    %115 = vmatpush1.msra.mxu0 0.0
    %116 = vmatprep.subr.mxu0 0.0
    %117 = vmatpush1.msra.mxu0 0.0
    %118 = vmatprep.subr.mxu0 0.0
    %119 = vmatpush1.msra.mxu0 0.0
    %120 = vmatprep.subr.mxu0 0.0
    %121 = vmatpush1.msra.mxu0 0.0
    %122 = vmatprep.subr.mxu0 0.0
    %123 = vmatpush1.msra.mxu0 0.0
    %124 = vmatprep.subr.mxu0 0.0
    %125 = vmatpush1.msra.mxu0 0.0
    %126 = vmatprep.subr.mxu0 0.0
    %127 = vmatpush1.msra.mxu0 0.0
    %128 = vmatprep.subr.mxu0 0.0
    %129 = vmatpush1.msra.mxu0 0.0
    %130 = vmatprep.subr.mxu0 0.0
    %131 = vmatpush1.msra.mxu0 0.0
    %132 = vmatprep.subr.mxu0 0.0
    %133 = vmatpush1.msra.mxu0 0.0
    %134 = vmatprep.subr.mxu0 0.0
    %135 = vmatpush1.msra.mxu0 0.0
    %136 = vmatprep.subr.mxu0 0.0
    %137 = vmatpush1.msra.mxu0 0.0
    %138 = vmatprep.subr.mxu0 0.0
    %139 = vmatpush1.msra.mxu0 0.0
    %140 = vmatprep.subr.mxu0 0.0
    %141 = vmatpush1.msra.mxu0 0.0
    %142 = vmatprep.subr.mxu0 0.0
    %143 = vmatpush1.msra.mxu0 0.0
    %144 = vmatprep.subr.mxu0 0.0
    %145 = vmatpush1.msra.mxu0 0.0
    %146 = vmatprep.subr.mxu0 0.0
    %147 = vmatpush1.msra.mxu0 0.0
    %148 = vmatprep.subr.mxu0 0.0
    %149 = vmatpush1.msra.mxu0 0.0
    %150 = vmatprep.subr.mxu0 0.0
    %151 = vmatpush1.msra.mxu0 0.0
    %152 = vmatprep.subr.mxu0 0.0
    %153 = vmatpush1.msra.mxu0 0.0
    %154 = vmatprep.subr.mxu0 0.0
    %155 = vmatpush1.msra.mxu0 0.0
    %156 = vmatprep.subr.mxu0 0.0
    %157 = vmatpush1.msra.mxu0 0.0
    %158 = vmatprep.subr.mxu0 0.0
    %159 = vmatpush1.msra.mxu0 0.0
    %160 = vmatprep.mubr.f32.mxu0 0.0
    %161 = vmatmul.mubr.f32.gmra.mrb[0].mxu0 %v91
    %v162 = vpop.f32.mrb[0].mxu0
    %v163 = vadd.f32 %v88, %v162
    %v164 = vpop.f32.mrb[0].mxu0
    %165 = vmatprep.mubr.f32.mxu0 0.0
    %166 = vmatmul.mubr.f32.gmra.mrb[0].mxu0 %v94
    %v167 = vpop.f32.mrb[0].mxu0
    %v168 = vadd.f32 %v88, %v167
    %v169 = vpop.f32.mrb[0].mxu0
    %170 = vdwg.mxu0
    %v172 = vlaneseq
    %v173 = vshrl.u32 %v172, 7
    %v174 = vsub.s32 0, %v173
    %v175 = vrot.slane %v77, %v174
    %v178 = vsel %vm81, %v35, 0
    %v181 = vsel %vm81, %v36, 0
    %v184 = vsel %vm81, %v37, 0
    %v187 = vsel %vm81, %v38, 0
    %189 = vmatprep.subr.mxu0 0.0
    %190 = vmatpush1.msra.mxu0 %v56
    %191 = vmatprep.subr.mxu0 0.0
    %192 = vmatpush1.msra.mxu0 %v57
    %193 = vmatprep.subr.mxu0 0.0
    %194 = vmatpush1.msra.mxu0 %v58
    %195 = vmatprep.subr.mxu0 0.0
    %196 = vmatpush1.msra.mxu0 %v59
    %197 = vmatprep.subr.mxu0 0.0
    %198 = vmatpush1.msra.mxu0 0.0
    %199 = vmatprep.subr.mxu0 0.0
    %200 = vmatpush1.msra.mxu0 0.0
    %201 = vmatprep.subr.mxu0 0.0
    %202 = vmatpush1.msra.mxu0 0.0
    %203 = vmatprep.subr.mxu0 0.0
    %204 = vmatpush1.msra.mxu0 0.0
    %205 = vmatprep.subr.mxu0 0.0
    %206 = vmatpush1.msra.mxu0 0.0
    %207 = vmatprep.subr.mxu0 0.0
    %208 = vmatpush1.msra.mxu0 0.0
    %209 = vmatprep.subr.mxu0 0.0
    %210 = vmatpush1.msra.mxu0 0.0
    %211 = vmatprep.subr.mxu0 0.0
    %212 = vmatpush1.msra.mxu0 0.0
    %213 = vmatprep.subr.mxu0 0.0
    %214 = vmatpush1.msra.mxu0 0.0
    %215 = vmatprep.subr.mxu0 0.0
    %216 = vmatpush1.msra.mxu0 0.0
    %217 = vmatprep.subr.mxu0 0.0
    %218 = vmatpush1.msra.mxu0 0.0
    %219 = vmatprep.subr.mxu0 0.0
    %220 = vmatpush1.msra.mxu0 0.0
    %221 = vmatprep.subr.mxu0 0.0
    %222 = vmatpush1.msra.mxu0 0.0
    %223 = vmatprep.subr.mxu0 0.0
    %224 = vmatpush1.msra.mxu0 0.0
    %225 = vmatprep.subr.mxu0 0.0
    %226 = vmatpush1.msra.mxu0 0.0
    %227 = vmatprep.subr.mxu0 0.0
    %228 = vmatpush1.msra.mxu0 0.0
    %229 = vmatprep.subr.mxu0 0.0
    %230 = vmatpush1.msra.mxu0 0.0
    %231 = vmatprep.subr.mxu0 0.0
    %232 = vmatpush1.msra.mxu0 0.0
    %233 = vmatprep.subr.mxu0 0.0
    %234 = vmatpush1.msra.mxu0 0.0
    %235 = vmatprep.subr.mxu0 0.0
    %236 = vmatpush1.msra.mxu0 0.0
    %237 = vmatprep.subr.mxu0 0.0
    %238 = vmatpush1.msra.mxu0 0.0
    %239 = vmatprep.subr.mxu0 0.0
    %240 = vmatpush1.msra.mxu0 0.0
    %241 = vmatprep.subr.mxu0 0.0
    %242 = vmatpush1.msra.mxu0 0.0
    %243 = vmatprep.subr.mxu0 0.0
    %244 = vmatpush1.msra.mxu0 0.0
    %245 = vmatprep.subr.mxu0 0.0
    %246 = vmatpush1.msra.mxu0 0.0
    %247 = vmatprep.subr.mxu0 0.0
    %248 = vmatpush1.msra.mxu0 0.0
    %249 = vmatprep.subr.mxu0 0.0
    %250 = vmatpush1.msra.mxu0 0.0
    %251 = vmatprep.subr.mxu0 0.0
    %252 = vmatpush1.msra.mxu0 0.0
    %253 = vmatprep.mubr.f32.mxu0 0.0
    %254 = vmatmul.mubr.f32.gmra.mrb[0].mxu0 %v178
    %v255 = vpop.f32.mrb[0].mxu0
    %v256 = vadd.f32 %v175, %v255
    %v257 = vpop.f32.mrb[0].mxu0
    %258 = vmatprep.mubr.f32.mxu0 0.0
    %259 = vmatmul.mubr.f32.gmra.mrb[0].mxu0 %v181
    %v260 = vpop.f32.mrb[0].mxu0
    %v261 = vadd.f32 %v175, %v260
    %v262 = vpop.f32.mrb[0].mxu0
    %263 = vmatprep.mubr.f32.mxu0 0.0
    %264 = vmatmul.mubr.f32.gmra.mrb[0].mxu0 %v184
    %v265 = vpop.f32.mrb[0].mxu0
    %v266 = vadd.f32 %v175, %v265
    %v267 = vpop.f32.mrb[0].mxu0
    %268 = vmatprep.mubr.f32.mxu0 0.0
    %269 = vmatmul.mubr.f32.gmra.mrb[0].mxu0 %v187
    %v270 = vpop.f32.mrb[0].mxu0
    %v271 = vadd.f32 %v175, %v270
    %v272 = vpop.f32.mrb[0].mxu0
    %273 = vdwg.mxu0
    %v274 = vld [vmem:[%s4] sm:$0xff]
    %v275 = vld [vmem:[%s4 + $0x8] sm:$0xff]
    %v276 = vld [vmem:[%s4 + $0x10] sm:$0xff]
    %v277 = vld [vmem:[%s4 + $0x18] sm:$0xff]
    %278 = vmatprep.subr.mxu0 0.0
    %279 = vmatpush1.msra.mxu0 %v274
    %280 = vmatprep.subr.mxu0 0.0
    %281 = vmatpush1.msra.mxu0 %v275
    %282 = vmatprep.subr.mxu0 0.0
    %283 = vmatpush1.msra.mxu0 %v276
    %284 = vmatprep.subr.mxu0 0.0
    %285 = vmatpush1.msra.mxu0 %v277
    %286 = vmatprep.subr.mxu0 0.0
    %287 = vmatpush1.msra.mxu0 0.0
    %288 = vmatprep.subr.mxu0 0.0
    %289 = vmatpush1.msra.mxu0 0.0
    %290 = vmatprep.subr.mxu0 0.0
    %291 = vmatpush1.msra.mxu0 0.0
    %292 = vmatprep.subr.mxu0 0.0
    %293 = vmatpush1.msra.mxu0 0.0
    %294 = vmatprep.subr.mxu0 0.0
    %295 = vmatpush1.msra.mxu0 0.0
    %296 = vmatprep.subr.mxu0 0.0
    %297 = vmatpush1.msra.mxu0 0.0
    %298 = vmatprep.subr.mxu0 0.0
    %299 = vmatpush1.msra.mxu0 0.0
    %300 = vmatprep.subr.mxu0 0.0
    %301 = vmatpush1.msra.mxu0 0.0
    %302 = vmatprep.subr.mxu0 0.0
    %303 = vmatpush1.msra.mxu0 0.0
    %304 = vmatprep.subr.mxu0 0.0
    %305 = vmatpush1.msra.mxu0 0.0
    %306 = vmatprep.subr.mxu0 0.0
    %307 = vmatpush1.msra.mxu0 0.0
    %308 = vmatprep.subr.mxu0 0.0
    %309 = vmatpush1.msra.mxu0 0.0
    %310 = vmatprep.subr.mxu0 0.0
    %311 = vmatpush1.msra.mxu0 0.0
    %312 = vmatprep.subr.mxu0 0.0
    %313 = vmatpush1.msra.mxu0 0.0
    %314 = vmatprep.subr.mxu0 0.0
    %315 = vmatpush1.msra.mxu0 0.0
    %316 = vmatprep.subr.mxu0 0.0
    %317 = vmatpush1.msra.mxu0 0.0
    %318 = vmatprep.subr.mxu0 0.0
    %319 = vmatpush1.msra.mxu0 0.0
    %320 = vmatprep.subr.mxu0 0.0
    %321 = vmatpush1.msra.mxu0 0.0
    %322 = vmatprep.subr.mxu0 0.0
    %323 = vmatpush1.msra.mxu0 0.0
    %324 = vmatprep.subr.mxu0 0.0
    %325 = vmatpush1.msra.mxu0 0.0
    %326 = vmatprep.subr.mxu0 0.0
    %327 = vmatpush1.msra.mxu0 0.0
    %328 = vmatprep.subr.mxu0 0.0
    %329 = vmatpush1.msra.mxu0 0.0
    %330 = vmatprep.subr.mxu0 0.0
    %331 = vmatpush1.msra.mxu0 0.0
    %332 = vmatprep.subr.mxu0 0.0
    %333 = vmatpush1.msra.mxu0 0.0
    %334 = vmatprep.subr.mxu0 0.0
    %335 = vmatpush1.msra.mxu0 0.0
    %336 = vmatprep.subr.mxu0 0.0
    %337 = vmatpush1.msra.mxu0 0.0
    %338 = vmatprep.subr.mxu0 0.0
    %339 = vmatpush1.msra.mxu0 0.0
    %340 = vmatprep.subr.mxu0 0.0
    %341 = vmatpush1.msra.mxu0 0.0
    %342 = vmatprep.mubr.f32.mxu0 0.0
    %343 = vmatmul.mubr.f32.gmra.mrb[0].mxu0 %v178
    %v344 = vpop.f32.mrb[0].mxu0
    %v345 = vadd.f32 0.0, %v344
    %v346 = vpop.f32.mrb[0].mxu0
    %347 = vmatprep.mubr.f32.mxu0 0.0
    %348 = vmatmul.mubr.f32.gmra.mrb[0].mxu0 %v181
    %v349 = vpop.f32.mrb[0].mxu0
    %v350 = vadd.f32 0.0, %v349
    %v351 = vpop.f32.mrb[0].mxu0
    %352 = vmatprep.mubr.f32.mxu0 0.0
    %353 = vmatmul.mubr.f32.gmra.mrb[0].mxu0 %v184
    %v354 = vpop.f32.mrb[0].mxu0
    %v355 = vadd.f32 0.0, %v354
    %v356 = vpop.f32.mrb[0].mxu0
    %357 = vmatprep.mubr.f32.mxu0 0.0
    %358 = vmatmul.mubr.f32.gmra.mrb[0].mxu0 %v187
    %v359 = vpop.f32.mrb[0].mxu0
    %v360 = vadd.f32 0.0, %v359
    %v361 = vpop.f32.mrb[0].mxu0
    %362 = vdwg.mxu0
    %vm363 = vcmask 64512
    %v365 = vsel %vm363, %v163, 0
    %v368 = vsel %vm363, %v256, 0
    %v371 = vsel %vm363, %v261, 0
    %373 = vmatprep.subr.mxu0 0.0
    %374 = vmatpush1.xpose.msra.mxu0 %v368
    %375 = vmatprep.subr.mxu0 0.0
    %376 = vmatpush1.xpose.msra.mxu0 %v371
    %377 = vmatprep.subr.mxu0 0.0
    %378 = vmatpush1.xpose.msra.mxu0 0.0
    %379 = vmatprep.subr.mxu0 0.0
    %380 = vmatpush1.xpose.msra.mxu0 0.0
    %381 = vmatprep.subr.mxu0 0.0
    %382 = vmatpush1.xpose.msra.mxu0 0.0
    %383 = vmatprep.subr.mxu0 0.0
    %384 = vmatpush1.xpose.msra.mxu0 0.0
    %385 = vmatprep.subr.mxu0 0.0
    %386 = vmatpush1.xpose.msra.mxu0 0.0
    %387 = vmatprep.subr.mxu0 0.0
    %388 = vmatpush1.xpose.msra.mxu0 0.0
    %389 = vmatprep.subr.mxu0 0.0
    %390 = vmatpush1.xpose.msra.mxu0 0.0
    %391 = vmatprep.subr.mxu0 0.0
    %392 = vmatpush1.xpose.msra.mxu0 0.0
    %393 = vmatprep.subr.mxu0 0.0
    %394 = vmatpush1.xpose.msra.mxu0 0.0
    %395 = vmatprep.subr.mxu0 0.0
    %396 = vmatpush1.xpose.msra.mxu0 0.0
    %397 = vmatprep.subr.mxu0 0.0
    %398 = vmatpush1.xpose.msra.mxu0 0.0
    %399 = vmatprep.subr.mxu0 0.0
    %400 = vmatpush1.xpose.msra.mxu0 0.0
    %401 = vmatprep.subr.mxu0 0.0
    %402 = vmatpush1.xpose.msra.mxu0 0.0
    %403 = vmatprep.subr.mxu0 0.0
    %404 = vmatpush1.xpose.msra.mxu0 0.0
    %405 = vmatprep.subr.mxu0 0.0
    %406 = vmatpush1.xpose.msra.mxu0 0.0
    %407 = vmatprep.subr.mxu0 0.0
    %408 = vmatpush1.xpose.msra.mxu0 0.0
    %409 = vmatprep.subr.mxu0 0.0
    %410 = vmatpush1.xpose.msra.mxu0 0.0
    %411 = vmatprep.subr.mxu0 0.0
    %412 = vmatpush1.xpose.msra.mxu0 0.0
    %413 = vmatprep.subr.mxu0 0.0
    %414 = vmatpush1.xpose.msra.mxu0 0.0
    %415 = vmatprep.subr.mxu0 0.0
    %416 = vmatpush1.xpose.msra.mxu0 0.0
    %417 = vmatprep.subr.mxu0 0.0
    %418 = vmatpush1.xpose.msra.mxu0 0.0
    %419 = vmatprep.subr.mxu0 0.0
    %420 = vmatpush1.xpose.msra.mxu0 0.0
    %421 = vmatprep.subr.mxu0 0.0
    %422 = vmatpush1.xpose.msra.mxu0 0.0
    %423 = vmatprep.subr.mxu0 0.0
    %424 = vmatpush1.xpose.msra.mxu0 0.0
    %425 = vmatprep.subr.mxu0 0.0
    %426 = vmatpush1.xpose.msra.mxu0 0.0
    %427 = vmatprep.subr.mxu0 0.0
    %428 = vmatpush1.xpose.msra.mxu0 0.0
    %429 = vmatprep.subr.mxu0 0.0
    %430 = vmatpush1.xpose.msra.mxu0 0.0
    %431 = vmatprep.subr.mxu0 0.0
    %432 = vmatpush1.xpose.msra.mxu0 0.0
    %433 = vmatprep.subr.mxu0 0.0
    %434 = vmatpush1.xpose.msra.mxu0 0.0
    %435 = vmatprep.subr.mxu0 0.0
    %436 = vmatpush1.xpose.msra.mxu0 0.0
    %437 = vmatprep.mubr.f32.mxu0 0.0
    %438 = vmatmul.mubr.f32.gmra.mrb[0].mxu0 %v365
    %v439 = vpop.f32.mrb[0].mxu0
    %v440 = vadd.f32 0.0, %v439
    %v441 = vpop.f32.mrb[0].mxu0
    %442 = vdwg.mxu0
    %vm443 = vcmask 130048
    %v444 = vsel %vm443, %v440, -inf
    %445 = vmax.xlane.f32.xlu0 %v444
    %v446 = vpop.xlane.xlu0 %445
    %v447 = vsub.f32 %v440, %v446
    %v448 = vmul.f32 %v447, 1.442695
    %v449 = vpow.pop %v448
    %v450 = vsel %vm443, %v449, 0.0
    %451 = vadd.xlane.f32.xlu0 %v450
    %v452 = vpop.xlane.xlu0 %451
    %v453 = vrcp.pop %v452
    %v454 = vmul.f32 %v449, %v453
    %v455 = vld [vmem:[#allocation2] sm:$0xff]
    %v457 = vsel %vm443, %v454, 0
    %459 = vmatprep.subr.mxu0 0.0
    %460 = vmatpush1.msra.mxu0 %v345
    %461 = vmatprep.subr.mxu0 0.0
    %462 = vmatpush1.msra.mxu0 %v350
    %463 = vmatprep.subr.mxu0 0.0
    %464 = vmatpush1.msra.mxu0 0.0
    %465 = vmatprep.subr.mxu0 0.0
    %466 = vmatpush1.msra.mxu0 0.0
    %467 = vmatprep.subr.mxu0 0.0
    %468 = vmatpush1.msra.mxu0 0.0
    %469 = vmatprep.subr.mxu0 0.0
    %470 = vmatpush1.msra.mxu0 0.0
    %471 = vmatprep.subr.mxu0 0.0
    %472 = vmatpush1.msra.mxu0 0.0
    %473 = vmatprep.subr.mxu0 0.0
    %474 = vmatpush1.msra.mxu0 0.0
    %475 = vmatprep.subr.mxu0 0.0
    %476 = vmatpush1.msra.mxu0 0.0
    %477 = vmatprep.subr.mxu0 0.0
    %478 = vmatpush1.msra.mxu0 0.0
    %479 = vmatprep.subr.mxu0 0.0
    %480 = vmatpush1.msra.mxu0 0.0
    %481 = vmatprep.subr.mxu0 0.0
    %482 = vmatpush1.msra.mxu0 0.0
    %483 = vmatprep.subr.mxu0 0.0
    %484 = vmatpush1.msra.mxu0 0.0
    %485 = vmatprep.subr.mxu0 0.0
    %486 = vmatpush1.msra.mxu0 0.0
    %487 = vmatprep.subr.mxu0 0.0
    %488 = vmatpush1.msra.mxu0 0.0
    %489 = vmatprep.subr.mxu0 0.0
    %490 = vmatpush1.msra.mxu0 0.0
    %491 = vmatprep.subr.mxu0 0.0
    %492 = vmatpush1.msra.mxu0 0.0
    %493 = vmatprep.subr.mxu0 0.0
    %494 = vmatpush1.msra.mxu0 0.0
    %495 = vmatprep.subr.mxu0 0.0
    %496 = vmatpush1.msra.mxu0 0.0
    %497 = vmatprep.subr.mxu0 0.0
    %498 = vmatpush1.msra.mxu0 0.0
    %499 = vmatprep.subr.mxu0 0.0
    %500 = vmatpush1.msra.mxu0 0.0
    %501 = vmatprep.subr.mxu0 0.0
    %502 = vmatpush1.msra.mxu0 0.0
    %503 = vmatprep.subr.mxu0 0.0
    %504 = vmatpush1.msra.mxu0 0.0
    %505 = vmatprep.subr.mxu0 0.0
    %506 = vmatpush1.msra.mxu0 0.0
    %507 = vmatprep.subr.mxu0 0.0
    %508 = vmatpush1.msra.mxu0 0.0
    %509 = vmatprep.subr.mxu0 0.0
    %510 = vmatpush1.msra.mxu0 0.0
    %511 = vmatprep.subr.mxu0 0.0
    %512 = vmatpush1.msra.mxu0 0.0
    %513 = vmatprep.subr.mxu0 0.0
    %514 = vmatpush1.msra.mxu0 0.0
    %515 = vmatprep.subr.mxu0 0.0
    %516 = vmatpush1.msra.mxu0 0.0
    %517 = vmatprep.subr.mxu0 0.0
    %518 = vmatpush1.msra.mxu0 0.0
    %519 = vmatprep.subr.mxu0 0.0
    %520 = vmatpush1.msra.mxu0 0.0
    %521 = vmatprep.subr.mxu0 0.0
    %522 = vmatpush1.msra.mxu0 0.0
    %523 = vmatprep.mubr.f32.mxu0 0.0
    %524 = vmatmul.mubr.f32.gmra.mrb[0].mxu0 %v457
    %v525 = vpop.f32.mrb[0].mxu0
    %v526 = vadd.f32 0.0, %v525
    %v527 = vpop.f32.mrb[0].mxu0
    %528 = vdwg.mxu0
    %v529 = vadd.f32 %v455, %v526
    %530 = vst.msk [vmem:[#allocation2] sm:$0xff] %vm81, %v529
    %v532 = vsel %vm363, %v168, 0
    %v535 = vsel %vm363, %v266, 0
    %v538 = vsel %vm363, %v271, 0
    %540 = vmatprep.subr.mxu0 0.0
    %541 = vmatpush1.xpose.msra.mxu0 %v535
    %542 = vmatprep.subr.mxu0 0.0
    %543 = vmatpush1.xpose.msra.mxu0 %v538
    %544 = vmatprep.subr.mxu0 0.0
    %545 = vmatpush1.xpose.msra.mxu0 0.0
    %546 = vmatprep.subr.mxu0 0.0
    %547 = vmatpush1.xpose.msra.mxu0 0.0
    %548 = vmatprep.subr.mxu0 0.0
    %549 = vmatpush1.xpose.msra.mxu0 0.0
    %550 = vmatprep.subr.mxu0 0.0
    %551 = vmatpush1.xpose.msra.mxu0 0.0
    %552 = vmatprep.subr.mxu0 0.0
    %553 = vmatpush1.xpose.msra.mxu0 0.0
    %554 = vmatprep.subr.mxu0 0.0
    %555 = vmatpush1.xpose.msra.mxu0 0.0
    %556 = vmatprep.subr.mxu0 0.0
    %557 = vmatpush1.xpose.msra.mxu0 0.0
    %558 = vmatprep.subr.mxu0 0.0
    %559 = vmatpush1.xpose.msra.mxu0 0.0
    %560 = vmatprep.subr.mxu0 0.0
    %561 = vmatpush1.xpose.msra.mxu0 0.0
    %562 = vmatprep.subr.mxu0 0.0
    %563 = vmatpush1.xpose.msra.mxu0 0.0
    %564 = vmatprep.subr.mxu0 0.0
    %565 = vmatpush1.xpose.msra.mxu0 0.0
    %566 = vmatprep.subr.mxu0 0.0
    %567 = vmatpush1.xpose.msra.mxu0 0.0
    %568 = vmatprep.subr.mxu0 0.0
    %569 = vmatpush1.xpose.msra.mxu0 0.0
    %570 = vmatprep.subr.mxu0 0.0
    %571 = vmatpush1.xpose.msra.mxu0 0.0
    %572 = vmatprep.subr.mxu0 0.0
    %573 = vmatpush1.xpose.msra.mxu0 0.0
    %574 = vmatprep.subr.mxu0 0.0
    %575 = vmatpush1.xpose.msra.mxu0 0.0
    %576 = vmatprep.subr.mxu0 0.0
    %577 = vmatpush1.xpose.msra.mxu0 0.0
    %578 = vmatprep.subr.mxu0 0.0
    %579 = vmatpush1.xpose.msra.mxu0 0.0
    %580 = vmatprep.subr.mxu0 0.0
    %581 = vmatpush1.xpose.msra.mxu0 0.0
    %582 = vmatprep.subr.mxu0 0.0
    %583 = vmatpush1.xpose.msra.mxu0 0.0
    %584 = vmatprep.subr.mxu0 0.0
    %585 = vmatpush1.xpose.msra.mxu0 0.0
    %586 = vmatprep.subr.mxu0 0.0
    %587 = vmatpush1.xpose.msra.mxu0 0.0
    %588 = vmatprep.subr.mxu0 0.0
    %589 = vmatpush1.xpose.msra.mxu0 0.0
    %590 = vmatprep.subr.mxu0 0.0
    %591 = vmatpush1.xpose.msra.mxu0 0.0
    %592 = vmatprep.subr.mxu0 0.0
    %593 = vmatpush1.xpose.msra.mxu0 0.0
    %594 = vmatprep.subr.mxu0 0.0
    %595 = vmatpush1.xpose.msra.mxu0 0.0
    %596 = vmatprep.subr.mxu0 0.0
    %597 = vmatpush1.xpose.msra.mxu0 0.0
    %598 = vmatprep.subr.mxu0 0.0
    %599 = vmatpush1.xpose.msra.mxu0 0.0
    %600 = vmatprep.subr.mxu0 0.0
    %601 = vmatpush1.xpose.msra.mxu0 0.0
    %602 = vmatprep.subr.mxu0 0.0
    %603 = vmatpush1.xpose.msra.mxu0 0.0
    %604 = vmatprep.mubr.f32.mxu0 0.0
    %605 = vmatmul.mubr.f32.gmra.mrb[0].mxu0 %v532
    %v606 = vpop.f32.mrb[0].mxu0
    %v607 = vadd.f32 0.0, %v606
    %v608 = vpop.f32.mrb[0].mxu0
    %609 = vdwg.mxu0
    %v610 = vsel %vm443, %v607, -inf
    %611 = vmax.xlane.f32.xlu0 %v610
    %v612 = vpop.xlane.xlu0 %611
    %v613 = vsub.f32 %v607, %v612
    %v614 = vmul.f32 %v613, 1.442695
    %v615 = vpow.pop %v614
    %v616 = vsel %vm443, %v615, 0.0
    %617 = vadd.xlane.f32.xlu0 %v616
    %v618 = vpop.xlane.xlu0 %617
    %v619 = vrcp.pop %v618
    %v620 = vmul.f32 %v615, %v619
    %v621 = vld [vmem:[#allocation2 + $0x8] sm:$0xff]
    %v623 = vsel %vm443, %v620, 0
    %625 = vmatprep.subr.mxu0 0.0
    %626 = vmatpush1.msra.mxu0 %v355
    %627 = vmatprep.subr.mxu0 0.0
    %628 = vmatpush1.msra.mxu0 %v360
    %629 = vmatprep.subr.mxu0 0.0
    %630 = vmatpush1.msra.mxu0 0.0
    %631 = vmatprep.subr.mxu0 0.0
    %632 = vmatpush1.msra.mxu0 0.0
    %633 = vmatprep.subr.mxu0 0.0
    %634 = vmatpush1.msra.mxu0 0.0
    %635 = vmatprep.subr.mxu0 0.0
    %636 = vmatpush1.msra.mxu0 0.0
    %637 = vmatprep.subr.mxu0 0.0
    %638 = vmatpush1.msra.mxu0 0.0
    %639 = vmatprep.subr.mxu0 0.0
    %640 = vmatpush1.msra.mxu0 0.0
    %641 = vmatprep.subr.mxu0 0.0
    %642 = vmatpush1.msra.mxu0 0.0
    %643 = vmatprep.subr.mxu0 0.0
    %644 = vmatpush1.msra.mxu0 0.0
    %645 = vmatprep.subr.mxu0 0.0
    %646 = vmatpush1.msra.mxu0 0.0
    %647 = vmatprep.subr.mxu0 0.0
    %648 = vmatpush1.msra.mxu0 0.0
    %649 = vmatprep.subr.mxu0 0.0
    %650 = vmatpush1.msra.mxu0 0.0
    %651 = vmatprep.subr.mxu0 0.0
    %652 = vmatpush1.msra.mxu0 0.0
    %653 = vmatprep.subr.mxu0 0.0
    %654 = vmatpush1.msra.mxu0 0.0
    %655 = vmatprep.subr.mxu0 0.0
    %656 = vmatpush1.msra.mxu0 0.0
    %657 = vmatprep.subr.mxu0 0.0
    %658 = vmatpush1.msra.mxu0 0.0
    %659 = vmatprep.subr.mxu0 0.0
    %660 = vmatpush1.msra.mxu0 0.0
    %661 = vmatprep.subr.mxu0 0.0
    %662 = vmatpush1.msra.mxu0 0.0
    %663 = vmatprep.subr.mxu0 0.0
    %664 = vmatpush1.msra.mxu0 0.0
    %665 = vmatprep.subr.mxu0 0.0
    %666 = vmatpush1.msra.mxu0 0.0
    %667 = vmatprep.subr.mxu0 0.0
    %668 = vmatpush1.msra.mxu0 0.0
    %669 = vmatprep.subr.mxu0 0.0
    %670 = vmatpush1.msra.mxu0 0.0
    %671 = vmatprep.subr.mxu0 0.0
    %672 = vmatpush1.msra.mxu0 0.0
    %673 = vmatprep.subr.mxu0 0.0
    %674 = vmatpush1.msra.mxu0 0.0
    %675 = vmatprep.subr.mxu0 0.0
    %676 = vmatpush1.msra.mxu0 0.0
    %677 = vmatprep.subr.mxu0 0.0
    %678 = vmatpush1.msra.mxu0 0.0
    %679 = vmatprep.subr.mxu0 0.0
    %680 = vmatpush1.msra.mxu0 0.0
    %681 = vmatprep.subr.mxu0 0.0
    %682 = vmatpush1.msra.mxu0 0.0
    %683 = vmatprep.subr.mxu0 0.0
    %684 = vmatpush1.msra.mxu0 0.0
    %685 = vmatprep.subr.mxu0 0.0
    %686 = vmatpush1.msra.mxu0 0.0
    %687 = vmatprep.subr.mxu0 0.0
    %688 = vmatpush1.msra.mxu0 0.0
    %689 = vmatprep.mubr.f32.mxu0 0.0
    %690 = vmatmul.mubr.f32.gmra.mrb[0].mxu0 %v623
    %v691 = vpop.f32.mrb[0].mxu0
    %v692 = vadd.f32 0.0, %v691
    %v693 = vpop.f32.mrb[0].mxu0
    %694 = vdwg.mxu0
    %v695 = vadd.f32 %v621, %v692
    %696 = vst.msk [vmem:[#allocation2 + $0x8] sm:$0xff] %vm81, %v695
    %v698 = vlaneseq
    %v699 = vshrl.u32 %v698, 7
    %v700 = vsub.s32 0, %v699
    %v701 = vrot.slane %v73, %v700
    %703 = vmatprep.subr.mxu0 0.0
    %704 = vmatpush1.msra.mxu0 %v43
    %705 = vmatprep.subr.mxu0 0.0
    %706 = vmatpush1.msra.mxu0 %v44
    %707 = vmatprep.subr.mxu0 0.0
    %708 = vmatpush1.msra.mxu0 %v45
    %709 = vmatprep.subr.mxu0 0.0
    %710 = vmatpush1.msra.mxu0 %v46
    %711 = vmatprep.subr.mxu0 0.0
    %712 = vmatpush1.msra.mxu0 0.0
    %713 = vmatprep.subr.mxu0 0.0
    %714 = vmatpush1.msra.mxu0 0.0
    %715 = vmatprep.subr.mxu0 0.0
    %716 = vmatpush1.msra.mxu0 0.0
    %717 = vmatprep.subr.mxu0 0.0
    %718 = vmatpush1.msra.mxu0 0.0
    %719 = vmatprep.subr.mxu0 0.0
    %720 = vmatpush1.msra.mxu0 0.0
    %721 = vmatprep.subr.mxu0 0.0
    %722 = vmatpush1.msra.mxu0 0.0
    %723 = vmatprep.subr.mxu0 0.0
    %724 = vmatpush1.msra.mxu0 0.0
    %725 = vmatprep.subr.mxu0 0.0
    %726 = vmatpush1.msra.mxu0 0.0
    %727 = vmatprep.subr.mxu0 0.0
    %728 = vmatpush1.msra.mxu0 0.0
    %729 = vmatprep.subr.mxu0 0.0
    %730 = vmatpush1.msra.mxu0 0.0
    %731 = vmatprep.subr.mxu0 0.0
    %732 = vmatpush1.msra.mxu0 0.0
    %733 = vmatprep.subr.mxu0 0.0
    %734 = vmatpush1.msra.mxu0 0.0
    %735 = vmatprep.subr.mxu0 0.0
    %736 = vmatpush1.msra.mxu0 0.0
    %737 = vmatprep.subr.mxu0 0.0
    %738 = vmatpush1.msra.mxu0 0.0
    %739 = vmatprep.subr.mxu0 0.0
    %740 = vmatpush1.msra.mxu0 0.0
    %741 = vmatprep.subr.mxu0 0.0
    %742 = vmatpush1.msra.mxu0 0.0
    %743 = vmatprep.subr.mxu0 0.0
    %744 = vmatpush1.msra.mxu0 0.0
    %745 = vmatprep.subr.mxu0 0.0
    %746 = vmatpush1.msra.mxu0 0.0
    %747 = vmatprep.subr.mxu0 0.0
    %748 = vmatpush1.msra.mxu0 0.0
    %749 = vmatprep.subr.mxu0 0.0
    %750 = vmatpush1.msra.mxu0 0.0
    %751 = vmatprep.subr.mxu0 0.0
    %752 = vmatpush1.msra.mxu0 0.0
    %753 = vmatprep.subr.mxu0 0.0
    %754 = vmatpush1.msra.mxu0 0.0
    %755 = vmatprep.subr.mxu0 0.0
    %756 = vmatpush1.msra.mxu0 0.0
    %757 = vmatprep.subr.mxu0 0.0
    %758 = vmatpush1.msra.mxu0 0.0
    %759 = vmatprep.subr.mxu0 0.0
    %760 = vmatpush1.msra.mxu0 0.0
    %761 = vmatprep.subr.mxu0 0.0
    %762 = vmatpush1.msra.mxu0 0.0
    %763 = vmatprep.subr.mxu0 0.0
    %764 = vmatpush1.msra.mxu0 0.0
    %765 = vmatprep.subr.mxu0 0.0
    %766 = vmatpush1.msra.mxu0 0.0
    %767 = vmatprep.mubr.f32.mxu0 0.0
    %768 = vmatmul.mubr.f32.gmra.mrb[0].mxu0 %v91
    %v769 = vpop.f32.mrb[0].mxu0
    %v770 = vadd.f32 %v701, %v769
    %v771 = vpop.f32.mrb[0].mxu0
    %772 = vmatprep.mubr.f32.mxu0 0.0
    %773 = vmatmul.mubr.f32.gmra.mrb[0].mxu0 %v94
    %v774 = vpop.f32.mrb[0].mxu0
    %v775 = vadd.f32 %v701, %v774
    %v776 = vpop.f32.mrb[0].mxu0
    %777 = vdwg.mxu0
    %v779 = vlaneseq
    %v780 = vshrl.u32 %v779, 7
    %v781 = vsub.s32 0, %v780
    %v782 = vrot.slane %v78, %v781
    %784 = vmatprep.subr.mxu0 0.0
    %785 = vmatpush1.msra.mxu0 %v60
    %786 = vmatprep.subr.mxu0 0.0
    %787 = vmatpush1.msra.mxu0 %v61
    %788 = vmatprep.subr.mxu0 0.0
    %789 = vmatpush1.msra.mxu0 %v62
    %790 = vmatprep.subr.mxu0 0.0
    %791 = vmatpush1.msra.mxu0 %v63
    %792 = vmatprep.subr.mxu0 0.0
    %793 = vmatpush1.msra.mxu0 0.0
    %794 = vmatprep.subr.mxu0 0.0
    %795 = vmatpush1.msra.mxu0 0.0
    %796 = vmatprep.subr.mxu0 0.0
    %797 = vmatpush1.msra.mxu0 0.0
    %798 = vmatprep.subr.mxu0 0.0
    %799 = vmatpush1.msra.mxu0 0.0
    %800 = vmatprep.subr.mxu0 0.0
    %801 = vmatpush1.msra.mxu0 0.0
    %802 = vmatprep.subr.mxu0 0.0
    %803 = vmatpush1.msra.mxu0 0.0
    %804 = vmatprep.subr.mxu0 0.0
    %805 = vmatpush1.msra.mxu0 0.0
    %806 = vmatprep.subr.mxu0 0.0
    %807 = vmatpush1.msra.mxu0 0.0
    %808 = vmatprep.subr.mxu0 0.0
    %809 = vmatpush1.msra.mxu0 0.0
    %810 = vmatprep.subr.mxu0 0.0
    %811 = vmatpush1.msra.mxu0 0.0
    %812 = vmatprep.subr.mxu0 0.0
    %813 = vmatpush1.msra.mxu0 0.0
    %814 = vmatprep.subr.mxu0 0.0
    %815 = vmatpush1.msra.mxu0 0.0
    %816 = vmatprep.subr.mxu0 0.0
    %817 = vmatpush1.msra.mxu0 0.0
    %818 = vmatprep.subr.mxu0 0.0
    %819 = vmatpush1.msra.mxu0 0.0
    %820 = vmatprep.subr.mxu0 0.0
    %821 = vmatpush1.msra.mxu0 0.0
    %822 = vmatprep.subr.mxu0 0.0
    %823 = vmatpush1.msra.mxu0 0.0
    %824 = vmatprep.subr.mxu0 0.0
    %825 = vmatpush1.msra.mxu0 0.0
    %826 = vmatprep.subr.mxu0 0.0
    %827 = vmatpush1.msra.mxu0 0.0
    %828 = vmatprep.subr.mxu0 0.0
    %829 = vmatpush1.msra.mxu0 0.0
    %830 = vmatprep.subr.mxu0 0.0
    %831 = vmatpush1.msra.mxu0 0.0
    %832 = vmatprep.subr.mxu0 0.0
    %833 = vmatpush1.msra.mxu0 0.0
    %834 = vmatprep.subr.mxu0 0.0
    %835 = vmatpush1.msra.mxu0 0.0
    %836 = vmatprep.subr.mxu0 0.0
    %837 = vmatpush1.msra.mxu0 0.0
    %838 = vmatprep.subr.mxu0 0.0
    %839 = vmatpush1.msra.mxu0 0.0
    %840 = vmatprep.subr.mxu0 0.0
    %841 = vmatpush1.msra.mxu0 0.0
    %842 = vmatprep.subr.mxu0 0.0
    %843 = vmatpush1.msra.mxu0 0.0
    %844 = vmatprep.subr.mxu0 0.0
    %845 = vmatpush1.msra.mxu0 0.0
    %846 = vmatprep.subr.mxu0 0.0
    %847 = vmatpush1.msra.mxu0 0.0
    %848 = vmatprep.mubr.f32.mxu0 0.0
    %849 = vmatmul.mubr.f32.gmra.mrb[0].mxu0 %v178
    %v850 = vpop.f32.mrb[0].mxu0
    %v851 = vadd.f32 %v782, %v850
    %v852 = vpop.f32.mrb[0].mxu0
    %853 = vmatprep.mubr.f32.mxu0 0.0
    %854 = vmatmul.mubr.f32.gmra.mrb[0].mxu0 %v181
    %v855 = vpop.f32.mrb[0].mxu0
    %v856 = vadd.f32 %v782, %v855
    %v857 = vpop.f32.mrb[0].mxu0
    %858 = vmatprep.mubr.f32.mxu0 0.0
    %859 = vmatmul.mubr.f32.gmra.mrb[0].mxu0 %v184
    %v860 = vpop.f32.mrb[0].mxu0
    %v861 = vadd.f32 %v782, %v860
    %v862 = vpop.f32.mrb[0].mxu0
    %863 = vmatprep.mubr.f32.mxu0 0.0
    %864 = vmatmul.mubr.f32.gmra.mrb[0].mxu0 %v187
    %v865 = vpop.f32.mrb[0].mxu0
    %v866 = vadd.f32 %v782, %v865
    %v867 = vpop.f32.mrb[0].mxu0
    %868 = vdwg.mxu0
    %s869 = scalar_lea.vmem %s4, 32
    %v870 = vld [vmem:[%s869] sm:$0xff]
    %v871 = vld [vmem:[%s869 + $0x8] sm:$0xff]
    %v872 = vld [vmem:[%s869 + $0x10] sm:$0xff]
    %v873 = vld [vmem:[%s869 + $0x18] sm:$0xff]
    %874 = vmatprep.subr.mxu0 0.0
    %875 = vmatpush1.msra.mxu0 %v870
    %876 = vmatprep.subr.mxu0 0.0
    %877 = vmatpush1.msra.mxu0 %v871
    %878 = vmatprep.subr.mxu0 0.0
    %879 = vmatpush1.msra.mxu0 %v872
    %880 = vmatprep.subr.mxu0 0.0
    %881 = vmatpush1.msra.mxu0 %v873
    %882 = vmatprep.subr.mxu0 0.0
    %883 = vmatpush1.msra.mxu0 0.0
    %884 = vmatprep.subr.mxu0 0.0
    %885 = vmatpush1.msra.mxu0 0.0
    %886 = vmatprep.subr.mxu0 0.0
    %887 = vmatpush1.msra.mxu0 0.0
    %888 = vmatprep.subr.mxu0 0.0
    %889 = vmatpush1.msra.mxu0 0.0
    %890 = vmatprep.subr.mxu0 0.0
    %891 = vmatpush1.msra.mxu0 0.0
    %892 = vmatprep.subr.mxu0 0.0
    %893 = vmatpush1.msra.mxu0 0.0
    %894 = vmatprep.subr.mxu0 0.0
    %895 = vmatpush1.msra.mxu0 0.0
    %896 = vmatprep.subr.mxu0 0.0
    %897 = vmatpush1.msra.mxu0 0.0
    %898 = vmatprep.subr.mxu0 0.0
    %899 = vmatpush1.msra.mxu0 0.0
    %900 = vmatprep.subr.mxu0 0.0
    %901 = vmatpush1.msra.mxu0 0.0
    %902 = vmatprep.subr.mxu0 0.0
    %903 = vmatpush1.msra.mxu0 0.0
    %904 = vmatprep.subr.mxu0 0.0
    %905 = vmatpush1.msra.mxu0 0.0
    %906 = vmatprep.subr.mxu0 0.0
    %907 = vmatpush1.msra.mxu0 0.0
    %908 = vmatprep.subr.mxu0 0.0
    %909 = vmatpush1.msra.mxu0 0.0
    %910 = vmatprep.subr.mxu0 0.0
    %911 = vmatpush1.msra.mxu0 0.0
    %912 = vmatprep.subr.mxu0 0.0
    %913 = vmatpush1.msra.mxu0 0.0
    %914 = vmatprep.subr.mxu0 0.0
    %915 = vmatpush1.msra.mxu0 0.0
    %916 = vmatprep.subr.mxu0 0.0
    %917 = vmatpush1.msra.mxu0 0.0
    %918 = vmatprep.subr.mxu0 0.0
    %919 = vmatpush1.msra.mxu0 0.0
    %920 = vmatprep.subr.mxu0 0.0
    %921 = vmatpush1.msra.mxu0 0.0
    %922 = vmatprep.subr.mxu0 0.0
    %923 = vmatpush1.msra.mxu0 0.0
    %924 = vmatprep.subr.mxu0 0.0
    %925 = vmatpush1.msra.mxu0 0.0
    %926 = vmatprep.subr.mxu0 0.0
    %927 = vmatpush1.msra.mxu0 0.0
    %928 = vmatprep.subr.mxu0 0.0
    %929 = vmatpush1.msra.mxu0 0.0
    %930 = vmatprep.subr.mxu0 0.0
    %931 = vmatpush1.msra.mxu0 0.0
    %932 = vmatprep.subr.mxu0 0.0
    %933 = vmatpush1.msra.mxu0 0.0
    %934 = vmatprep.subr.mxu0 0.0
    %935 = vmatpush1.msra.mxu0 0.0
    %936 = vmatprep.subr.mxu0 0.0
    %937 = vmatpush1.msra.mxu0 0.0
    %938 = vmatprep.mubr.f32.mxu0 0.0
    %939 = vmatmul.mubr.f32.gmra.mrb[0].mxu0 %v178
    %v940 = vpop.f32.mrb[0].mxu0
    %v941 = vadd.f32 0.0, %v940
    %v942 = vpop.f32.mrb[0].mxu0
    %943 = vmatprep.mubr.f32.mxu0 0.0
    %944 = vmatmul.mubr.f32.gmra.mrb[0].mxu0 %v181
    %v945 = vpop.f32.mrb[0].mxu0
    %v946 = vadd.f32 0.0, %v945
    %v947 = vpop.f32.mrb[0].mxu0
    %948 = vmatprep.mubr.f32.mxu0 0.0
    %949 = vmatmul.mubr.f32.gmra.mrb[0].mxu0 %v184
    %v950 = vpop.f32.mrb[0].mxu0
    %v951 = vadd.f32 0.0, %v950
    %v952 = vpop.f32.mrb[0].mxu0
    %953 = vmatprep.mubr.f32.mxu0 0.0
    %954 = vmatmul.mubr.f32.gmra.mrb[0].mxu0 %v187
    %v955 = vpop.f32.mrb[0].mxu0
    %v956 = vadd.f32 0.0, %v955
    %v957 = vpop.f32.mrb[0].mxu0
    %958 = vdwg.mxu0
    %v960 = vsel %vm363, %v770, 0
    %v963 = vsel %vm363, %v851, 0
    %v966 = vsel %vm363, %v856, 0
    %968 = vmatprep.subr.mxu0 0.0
    %969 = vmatpush1.xpose.msra.mxu0 %v963
    %970 = vmatprep.subr.mxu0 0.0
    %971 = vmatpush1.xpose.msra.mxu0 %v966
    %972 = vmatprep.subr.mxu0 0.0
    %973 = vmatpush1.xpose.msra.mxu0 0.0
    %974 = vmatprep.subr.mxu0 0.0
    %975 = vmatpush1.xpose.msra.mxu0 0.0
    %976 = vmatprep.subr.mxu0 0.0
    %977 = vmatpush1.xpose.msra.mxu0 0.0
    %978 = vmatprep.subr.mxu0 0.0
    %979 = vmatpush1.xpose.msra.mxu0 0.0
    %980 = vmatprep.subr.mxu0 0.0
    %981 = vmatpush1.xpose.msra.mxu0 0.0
    %982 = vmatprep.subr.mxu0 0.0
    %983 = vmatpush1.xpose.msra.mxu0 0.0
    %984 = vmatprep.subr.mxu0 0.0
    %985 = vmatpush1.xpose.msra.mxu0 0.0
    %986 = vmatprep.subr.mxu0 0.0
    %987 = vmatpush1.xpose.msra.mxu0 0.0
    %988 = vmatprep.subr.mxu0 0.0
    %989 = vmatpush1.xpose.msra.mxu0 0.0
    %990 = vmatprep.subr.mxu0 0.0
    %991 = vmatpush1.xpose.msra.mxu0 0.0
    %992 = vmatprep.subr.mxu0 0.0
    %993 = vmatpush1.xpose.msra.mxu0 0.0
    %994 = vmatprep.subr.mxu0 0.0
    %995 = vmatpush1.xpose.msra.mxu0 0.0
    %996 = vmatprep.subr.mxu0 0.0
    %997 = vmatpush1.xpose.msra.mxu0 0.0
    %998 = vmatprep.subr.mxu0 0.0
    %999 = vmatpush1.xpose.msra.mxu0 0.0
    %1000 = vmatprep.subr.mxu0 0.0
    %1001 = vmatpush1.xpose.msra.mxu0 0.0
    %1002 = vmatprep.subr.mxu0 0.0
    %1003 = vmatpush1.xpose.msra.mxu0 0.0
    %1004 = vmatprep.subr.mxu0 0.0
    %1005 = vmatpush1.xpose.msra.mxu0 0.0
    %1006 = vmatprep.subr.mxu0 0.0
    %1007 = vmatpush1.xpose.msra.mxu0 0.0
    %1008 = vmatprep.subr.mxu0 0.0
    %1009 = vmatpush1.xpose.msra.mxu0 0.0
    %1010 = vmatprep.subr.mxu0 0.0
    %1011 = vmatpush1.xpose.msra.mxu0 0.0
    %1012 = vmatprep.subr.mxu0 0.0
    %1013 = vmatpush1.xpose.msra.mxu0 0.0
    %1014 = vmatprep.subr.mxu0 0.0
    %1015 = vmatpush1.xpose.msra.mxu0 0.0
    %1016 = vmatprep.subr.mxu0 0.0
    %1017 = vmatpush1.xpose.msra.mxu0 0.0
    %1018 = vmatprep.subr.mxu0 0.0
    %1019 = vmatpush1.xpose.msra.mxu0 0.0
    %1020 = vmatprep.subr.mxu0 0.0
    %1021 = vmatpush1.xpose.msra.mxu0 0.0
    %1022 = vmatprep.subr.mxu0 0.0
    %1023 = vmatpush1.xpose.msra.mxu0 0.0
    %1024 = vmatprep.subr.mxu0 0.0
    %1025 = vmatpush1.xpose.msra.mxu0 0.0
    %1026 = vmatprep.subr.mxu0 0.0
    %1027 = vmatpush1.xpose.msra.mxu0 0.0
    %1028 = vmatprep.subr.mxu0 0.0
    %1029 = vmatpush1.xpose.msra.mxu0 0.0
    %1030 = vmatprep.subr.mxu0 0.0
    %1031 = vmatpush1.xpose.msra.mxu0 0.0
    %1032 = vmatprep.mubr.f32.mxu0 0.0
    %1033 = vmatmul.mubr.f32.gmra.mrb[0].mxu0 %v960
    %v1034 = vpop.f32.mrb[0].mxu0
    %v1035 = vadd.f32 0.0, %v1034
    %v1036 = vpop.f32.mrb[0].mxu0
    %1037 = vdwg.mxu0
    %v1038 = vsel %vm443, %v1035, -inf
    %1039 = vmax.xlane.f32.xlu0 %v1038
    %v1040 = vpop.xlane.xlu0 %1039
    %v1041 = vsub.f32 %v1035, %v1040
    %v1042 = vmul.f32 %v1041, 1.442695
    %v1043 = vpow.pop %v1042
    %v1044 = vsel %vm443, %v1043, 0.0
    %1045 = vadd.xlane.f32.xlu0 %v1044
    %v1046 = vpop.xlane.xlu0 %1045
    %v1047 = vrcp.pop %v1046
    %v1048 = vmul.f32 %v1043, %v1047
    %v1049 = vld [vmem:[#allocation2] sm:$0xff]
    %v1051 = vsel %vm443, %v1048, 0
    %1053 = vmatprep.subr.mxu0 0.0
    %1054 = vmatpush1.msra.mxu0 %v941
    %1055 = vmatprep.subr.mxu0 0.0
    %1056 = vmatpush1.msra.mxu0 %v946
    %1057 = vmatprep.subr.mxu0 0.0
    %1058 = vmatpush1.msra.mxu0 0.0
    %1059 = vmatprep.subr.mxu0 0.0
    %1060 = vmatpush1.msra.mxu0 0.0
    %1061 = vmatprep.subr.mxu0 0.0
    %1062 = vmatpush1.msra.mxu0 0.0
    %1063 = vmatprep.subr.mxu0 0.0
    %1064 = vmatpush1.msra.mxu0 0.0
    %1065 = vmatprep.subr.mxu0 0.0
    %1066 = vmatpush1.msra.mxu0 0.0
    %1067 = vmatprep.subr.mxu0 0.0
    %1068 = vmatpush1.msra.mxu0 0.0
    %1069 = vmatprep.subr.mxu0 0.0
    %1070 = vmatpush1.msra.mxu0 0.0
    %1071 = vmatprep.subr.mxu0 0.0
    %1072 = vmatpush1.msra.mxu0 0.0
    %1073 = vmatprep.subr.mxu0 0.0
    %1074 = vmatpush1.msra.mxu0 0.0
    %1075 = vmatprep.subr.mxu0 0.0
    %1076 = vmatpush1.msra.mxu0 0.0
    %1077 = vmatprep.subr.mxu0 0.0
    %1078 = vmatpush1.msra.mxu0 0.0
    %1079 = vmatprep.subr.mxu0 0.0
    %1080 = vmatpush1.msra.mxu0 0.0
    %1081 = vmatprep.subr.mxu0 0.0
    %1082 = vmatpush1.msra.mxu0 0.0
    %1083 = vmatprep.subr.mxu0 0.0
    %1084 = vmatpush1.msra.mxu0 0.0
    %1085 = vmatprep.subr.mxu0 0.0
    %1086 = vmatpush1.msra.mxu0 0.0
    %1087 = vmatprep.subr.mxu0 0.0
    %1088 = vmatpush1.msra.mxu0 0.0
    %1089 = vmatprep.subr.mxu0 0.0
    %1090 = vmatpush1.msra.mxu0 0.0
    %1091 = vmatprep.subr.mxu0 0.0
    %1092 = vmatpush1.msra.mxu0 0.0
    %1093 = vmatprep.subr.mxu0 0.0
    %1094 = vmatpush1.msra.mxu0 0.0
    %1095 = vmatprep.subr.mxu0 0.0
    %1096 = vmatpush1.msra.mxu0 0.0
    %1097 = vmatprep.subr.mxu0 0.0
    %1098 = vmatpush1.msra.mxu0 0.0
    %1099 = vmatprep.subr.mxu0 0.0
    %1100 = vmatpush1.msra.mxu0 0.0
    %1101 = vmatprep.subr.mxu0 0.0
    %1102 = vmatpush1.msra.mxu0 0.0
    %1103 = vmatprep.subr.mxu0 0.0
    %1104 = vmatpush1.msra.mxu0 0.0
    %1105 = vmatprep.subr.mxu0 0.0
    %1106 = vmatpush1.msra.mxu0 0.0
    %1107 = vmatprep.subr.mxu0 0.0
    %1108 = vmatpush1.msra.mxu0 0.0
    %1109 = vmatprep.subr.mxu0 0.0
    %1110 = vmatpush1.msra.mxu0 0.0
    %1111 = vmatprep.subr.mxu0 0.0
    %1112 = vmatpush1.msra.mxu0 0.0
    %1113 = vmatprep.subr.mxu0 0.0
    %1114 = vmatpush1.msra.mxu0 0.0
    %1115 = vmatprep.subr.mxu0 0.0
    %1116 = vmatpush1.msra.mxu0 0.0
    %1117 = vmatprep.mubr.f32.mxu0 0.0
    %1118 = vmatmul.mubr.f32.gmra.mrb[0].mxu0 %v1051
    %v1119 = vpop.f32.mrb[0].mxu0
    %v1120 = vadd.f32 0.0, %v1119
    %v1121 = vpop.f32.mrb[0].mxu0
    %1122 = vdwg.mxu0
    %v1123 = vadd.f32 %v1049, %v1120
    %1124 = vst.msk [vmem:[#allocation2] sm:$0xff] %vm81, %v1123
    %v1126 = vsel %vm363, %v775, 0
    %v1129 = vsel %vm363, %v861, 0
    %v1132 = vsel %vm363, %v866, 0
    %1134 = vmatprep.subr.mxu0 0.0
    %1135 = vmatpush1.xpose.msra.mxu0 %v1129
    %1136 = vmatprep.subr.mxu0 0.0
    %1137 = vmatpush1.xpose.msra.mxu0 %v1132
    %1138 = vmatprep.subr.mxu0 0.0
    %1139 = vmatpush1.xpose.msra.mxu0 0.0
    %1140 = vmatprep.subr.mxu0 0.0
    %1141 = vmatpush1.xpose.msra.mxu0 0.0
    %1142 = vmatprep.subr.mxu0 0.0
    %1143 = vmatpush1.xpose.msra.mxu0 0.0
    %1144 = vmatprep.subr.mxu0 0.0
    %1145 = vmatpush1.xpose.msra.mxu0 0.0
    %1146 = vmatprep.subr.mxu0 0.0
    %1147 = vmatpush1.xpose.msra.mxu0 0.0
    %1148 = vmatprep.subr.mxu0 0.0
    %1149 = vmatpush1.xpose.msra.mxu0 0.0
    %1150 = vmatprep.subr.mxu0 0.0
    %1151 = vmatpush1.xpose.msra.mxu0 0.0
    %1152 = vmatprep.subr.mxu0 0.0
    %1153 = vmatpush1.xpose.msra.mxu0 0.0
    %1154 = vmatprep.subr.mxu0 0.0
    %1155 = vmatpush1.xpose.msra.mxu0 0.0
    %1156 = vmatprep.subr.mxu0 0.0
    %1157 = vmatpush1.xpose.msra.mxu0 0.0
    %1158 = vmatprep.subr.mxu0 0.0
    %1159 = vmatpush1.xpose.msra.mxu0 0.0
    %1160 = vmatprep.subr.mxu0 0.0
    %1161 = vmatpush1.xpose.msra.mxu0 0.0
    %1162 = vmatprep.subr.mxu0 0.0
    %1163 = vmatpush1.xpose.msra.mxu0 0.0
    %1164 = vmatprep.subr.mxu0 0.0
    %1165 = vmatpush1.xpose.msra.mxu0 0.0
    %1166 = vmatprep.subr.mxu0 0.0
    %1167 = vmatpush1.xpose.msra.mxu0 0.0
    %1168 = vmatprep.subr.mxu0 0.0
    %1169 = vmatpush1.xpose.msra.mxu0 0.0
    %1170 = vmatprep.subr.mxu0 0.0
    %1171 = vmatpush1.xpose.msra.mxu0 0.0
    %1172 = vmatprep.subr.mxu0 0.0
    %1173 = vmatpush1.xpose.msra.mxu0 0.0
    %1174 = vmatprep.subr.mxu0 0.0
    %1175 = vmatpush1.xpose.msra.mxu0 0.0
    %1176 = vmatprep.subr.mxu0 0.0
    %1177 = vmatpush1.xpose.msra.mxu0 0.0
    %1178 = vmatprep.subr.mxu0 0.0
    %1179 = vmatpush1.xpose.msra.mxu0 0.0
    %1180 = vmatprep.subr.mxu0 0.0
    %1181 = vmatpush1.xpose.msra.mxu0 0.0
    %1182 = vmatprep.subr.mxu0 0.0
    %1183 = vmatpush1.xpose.msra.mxu0 0.0
    %1184 = vmatprep.subr.mxu0 0.0
    %1185 = vmatpush1.xpose.msra.mxu0 0.0
    %1186 = vmatprep.subr.mxu0 0.0
    %1187 = vmatpush1.xpose.msra.mxu0 0.0
    %1188 = vmatprep.subr.mxu0 0.0
    %1189 = vmatpush1.xpose.msra.mxu0 0.0
    %1190 = vmatprep.subr.mxu0 0.0
    %1191 = vmatpush1.xpose.msra.mxu0 0.0
    %1192 = vmatprep.subr.mxu0 0.0
    %1193 = vmatpush1.xpose.msra.mxu0 0.0
    %1194 = vmatprep.subr.mxu0 0.0
    %1195 = vmatpush1.xpose.msra.mxu0 0.0
    %1196 = vmatprep.subr.mxu0 0.0
    %1197 = vmatpush1.xpose.msra.mxu0 0.0
    %1198 = vmatprep.mubr.f32.mxu0 0.0
    %1199 = vmatmul.mubr.f32.gmra.mrb[0].mxu0 %v1126
    %v1200 = vpop.f32.mrb[0].mxu0
    %v1201 = vadd.f32 0.0, %v1200
    %v1202 = vpop.f32.mrb[0].mxu0
    %1203 = vdwg.mxu0
    %v1204 = vsel %vm443, %v1201, -inf
    %1205 = vmax.xlane.f32.xlu0 %v1204
    %v1206 = vpop.xlane.xlu0 %1205
    %v1207 = vsub.f32 %v1201, %v1206
    %v1208 = vmul.f32 %v1207, 1.442695
    %v1209 = vpow.pop %v1208
    %v1210 = vsel %vm443, %v1209, 0.0
    %1211 = vadd.xlane.f32.xlu0 %v1210
    %v1212 = vpop.xlane.xlu0 %1211
    %v1213 = vrcp.pop %v1212
    %v1214 = vmul.f32 %v1209, %v1213
    %v1215 = vld [vmem:[#allocation2 + $0x8] sm:$0xff]
    %v1217 = vsel %vm443, %v1214, 0
    %1219 = vmatprep.subr.mxu0 0.0
    %1220 = vmatpush1.msra.mxu0 %v951
    %1221 = vmatprep.subr.mxu0 0.0
    %1222 = vmatpush1.msra.mxu0 %v956
    %1223 = vmatprep.subr.mxu0 0.0
    %1224 = vmatpush1.msra.mxu0 0.0
    %1225 = vmatprep.subr.mxu0 0.0
    %1226 = vmatpush1.msra.mxu0 0.0
    %1227 = vmatprep.subr.mxu0 0.0
    %1228 = vmatpush1.msra.mxu0 0.0
    %1229 = vmatprep.subr.mxu0 0.0
    %1230 = vmatpush1.msra.mxu0 0.0
    %1231 = vmatprep.subr.mxu0 0.0
    %1232 = vmatpush1.msra.mxu0 0.0
    %1233 = vmatprep.subr.mxu0 0.0
    %1234 = vmatpush1.msra.mxu0 0.0
    %1235 = vmatprep.subr.mxu0 0.0
    %1236 = vmatpush1.msra.mxu0 0.0
    %1237 = vmatprep.subr.mxu0 0.0
    %1238 = vmatpush1.msra.mxu0 0.0
    %1239 = vmatprep.subr.mxu0 0.0
    %1240 = vmatpush1.msra.mxu0 0.0
    %1241 = vmatprep.subr.mxu0 0.0
    %1242 = vmatpush1.msra.mxu0 0.0
    %1243 = vmatprep.subr.mxu0 0.0
    %1244 = vmatpush1.msra.mxu0 0.0
    %1245 = vmatprep.subr.mxu0 0.0
    %1246 = vmatpush1.msra.mxu0 0.0
    %1247 = vmatprep.subr.mxu0 0.0
    %1248 = vmatpush1.msra.mxu0 0.0
    %1249 = vmatprep.subr.mxu0 0.0
    %1250 = vmatpush1.msra.mxu0 0.0
    %1251 = vmatprep.subr.mxu0 0.0
    %1252 = vmatpush1.msra.mxu0 0.0
    %1253 = vmatprep.subr.mxu0 0.0
    %1254 = vmatpush1.msra.mxu0 0.0
    %1255 = vmatprep.subr.mxu0 0.0
    %1256 = vmatpush1.msra.mxu0 0.0
    %1257 = vmatprep.subr.mxu0 0.0
    %1258 = vmatpush1.msra.mxu0 0.0
    %1259 = vmatprep.subr.mxu0 0.0
    %1260 = vmatpush1.msra.mxu0 0.0
    %1261 = vmatprep.subr.mxu0 0.0
    %1262 = vmatpush1.msra.mxu0 0.0
    %1263 = vmatprep.subr.mxu0 0.0
    %1264 = vmatpush1.msra.mxu0 0.0
    %1265 = vmatprep.subr.mxu0 0.0
    %1266 = vmatpush1.msra.mxu0 0.0
    %1267 = vmatprep.subr.mxu0 0.0
    %1268 = vmatpush1.msra.mxu0 0.0
    %1269 = vmatprep.subr.mxu0 0.0
    %1270 = vmatpush1.msra.mxu0 0.0
    %1271 = vmatprep.subr.mxu0 0.0
    %1272 = vmatpush1.msra.mxu0 0.0
    %1273 = vmatprep.subr.mxu0 0.0
    %1274 = vmatpush1.msra.mxu0 0.0
    %1275 = vmatprep.subr.mxu0 0.0
    %1276 = vmatpush1.msra.mxu0 0.0
    %1277 = vmatprep.subr.mxu0 0.0
    %1278 = vmatpush1.msra.mxu0 0.0
    %1279 = vmatprep.subr.mxu0 0.0
    %1280 = vmatpush1.msra.mxu0 0.0
    %1281 = vmatprep.subr.mxu0 0.0
    %1282 = vmatpush1.msra.mxu0 0.0
    %1283 = vmatprep.mubr.f32.mxu0 0.0
    %1284 = vmatmul.mubr.f32.gmra.mrb[0].mxu0 %v1217
    %v1285 = vpop.f32.mrb[0].mxu0
    %v1286 = vadd.f32 0.0, %v1285
    %v1287 = vpop.f32.mrb[0].mxu0
    %1288 = vdwg.mxu0
    %v1289 = vadd.f32 %v1215, %v1286
    %1290 = vst.msk [vmem:[#allocation2 + $0x8] sm:$0xff] %vm81, %v1289
    %v1292 = vlaneseq
    %v1293 = vshrl.u32 %v1292, 7
    %v1294 = vsub.s32 0, %v1293
    %v1295 = vrot.slane %v74, %v1294
    %1297 = vmatprep.subr.mxu0 0.0
    %1298 = vmatpush1.msra.mxu0 %v47
    %1299 = vmatprep.subr.mxu0 0.0
    %1300 = vmatpush1.msra.mxu0 %v48
    %1301 = vmatprep.subr.mxu0 0.0
    %1302 = vmatpush1.msra.mxu0 %v49
    %1303 = vmatprep.subr.mxu0 0.0
    %1304 = vmatpush1.msra.mxu0 %v50
    %1305 = vmatprep.subr.mxu0 0.0
    %1306 = vmatpush1.msra.mxu0 0.0
    %1307 = vmatprep.subr.mxu0 0.0
    %1308 = vmatpush1.msra.mxu0 0.0
    %1309 = vmatprep.subr.mxu0 0.0
    %1310 = vmatpush1.msra.mxu0 0.0
    %1311 = vmatprep.subr.mxu0 0.0
    %1312 = vmatpush1.msra.mxu0 0.0
    %1313 = vmatprep.subr.mxu0 0.0
    %1314 = vmatpush1.msra.mxu0 0.0
    %1315 = vmatprep.subr.mxu0 0.0
    %1316 = vmatpush1.msra.mxu0 0.0
    %1317 = vmatprep.subr.mxu0 0.0
    %1318 = vmatpush1.msra.mxu0 0.0
    %1319 = vmatprep.subr.mxu0 0.0
    %1320 = vmatpush1.msra.mxu0 0.0
    %1321 = vmatprep.subr.mxu0 0.0
    %1322 = vmatpush1.msra.mxu0 0.0
    %1323 = vmatprep.subr.mxu0 0.0
    %1324 = vmatpush1.msra.mxu0 0.0
    %1325 = vmatprep.subr.mxu0 0.0
    %1326 = vmatpush1.msra.mxu0 0.0
    %1327 = vmatprep.subr.mxu0 0.0
    %1328 = vmatpush1.msra.mxu0 0.0
    %1329 = vmatprep.subr.mxu0 0.0
    %1330 = vmatpush1.msra.mxu0 0.0
    %1331 = vmatprep.subr.mxu0 0.0
    %1332 = vmatpush1.msra.mxu0 0.0
    %1333 = vmatprep.subr.mxu0 0.0
    %1334 = vmatpush1.msra.mxu0 0.0
    %1335 = vmatprep.subr.mxu0 0.0
    %1336 = vmatpush1.msra.mxu0 0.0
    %1337 = vmatprep.subr.mxu0 0.0
    %1338 = vmatpush1.msra.mxu0 0.0
    %1339 = vmatprep.subr.mxu0 0.0
    %1340 = vmatpush1.msra.mxu0 0.0
    %1341 = vmatprep.subr.mxu0 0.0
    %1342 = vmatpush1.msra.mxu0 0.0
    %1343 = vmatprep.subr.mxu0 0.0
    %1344 = vmatpush1.msra.mxu0 0.0
    %1345 = vmatprep.subr.mxu0 0.0
    %1346 = vmatpush1.msra.mxu0 0.0
    %1347 = vmatprep.subr.mxu0 0.0
    %1348 = vmatpush1.msra.mxu0 0.0
    %1349 = vmatprep.subr.mxu0 0.0
    %1350 = vmatpush1.msra.mxu0 0.0
    %1351 = vmatprep.subr.mxu0 0.0
    %1352 = vmatpush1.msra.mxu0 0.0
    %1353 = vmatprep.subr.mxu0 0.0
    %1354 = vmatpush1.msra.mxu0 0.0
    %1355 = vmatprep.subr.mxu0 0.0
    %1356 = vmatpush1.msra.mxu0 0.0
    %1357 = vmatprep.subr.mxu0 0.0
    %1358 = vmatpush1.msra.mxu0 0.0
    %1359 = vmatprep.subr.mxu0 0.0
    %1360 = vmatpush1.msra.mxu0 0.0
    %1361 = vmatprep.mubr.f32.mxu0 0.0
    %1362 = vmatmul.mubr.f32.gmra.mrb[0].mxu0 %v91
    %v1363 = vpop.f32.mrb[0].mxu0
    %v1364 = vadd.f32 %v1295, %v1363
    %v1365 = vpop.f32.mrb[0].mxu0
    %1366 = vmatprep.mubr.f32.mxu0 0.0
    %1367 = vmatmul.mubr.f32.gmra.mrb[0].mxu0 %v94
    %v1368 = vpop.f32.mrb[0].mxu0
    %v1369 = vadd.f32 %v1295, %v1368
    %v1370 = vpop.f32.mrb[0].mxu0
    %1371 = vdwg.mxu0
    %v1373 = vlaneseq
    %v1374 = vshrl.u32 %v1373, 7
    %v1375 = vsub.s32 0, %v1374
    %v1376 = vrot.slane %v79, %v1375
    %1378 = vmatprep.subr.mxu0 0.0
    %1379 = vmatpush1.msra.mxu0 %v64
    %1380 = vmatprep.subr.mxu0 0.0
    %1381 = vmatpush1.msra.mxu0 %v65
    %1382 = vmatprep.subr.mxu0 0.0
    %1383 = vmatpush1.msra.mxu0 %v66
    %1384 = vmatprep.subr.mxu0 0.0
    %1385 = vmatpush1.msra.mxu0 %v67
    %1386 = vmatprep.subr.mxu0 0.0
    %1387 = vmatpush1.msra.mxu0 0.0
    %1388 = vmatprep.subr.mxu0 0.0
    %1389 = vmatpush1.msra.mxu0 0.0
    %1390 = vmatprep.subr.mxu0 0.0
    %1391 = vmatpush1.msra.mxu0 0.0
    %1392 = vmatprep.subr.mxu0 0.0
    %1393 = vmatpush1.msra.mxu0 0.0
    %1394 = vmatprep.subr.mxu0 0.0
    %1395 = vmatpush1.msra.mxu0 0.0
    %1396 = vmatprep.subr.mxu0 0.0
    %1397 = vmatpush1.msra.mxu0 0.0
    %1398 = vmatprep.subr.mxu0 0.0
    %1399 = vmatpush1.msra.mxu0 0.0
    %1400 = vmatprep.subr.mxu0 0.0
    %1401 = vmatpush1.msra.mxu0 0.0
    %1402 = vmatprep.subr.mxu0 0.0
    %1403 = vmatpush1.msra.mxu0 0.0
    %1404 = vmatprep.subr.mxu0 0.0
    %1405 = vmatpush1.msra.mxu0 0.0
    %1406 = vmatprep.subr.mxu0 0.0
    %1407 = vmatpush1.msra.mxu0 0.0
    %1408 = vmatprep.subr.mxu0 0.0
    %1409 = vmatpush1.msra.mxu0 0.0
    %1410 = vmatprep.subr.mxu0 0.0
    %1411 = vmatpush1.msra.mxu0 0.0
    %1412 = vmatprep.subr.mxu0 0.0
    %1413 = vmatpush1.msra.mxu0 0.0
    %1414 = vmatprep.subr.mxu0 0.0
    %1415 = vmatpush1.msra.mxu0 0.0
    %1416 = vmatprep.subr.mxu0 0.0
    %1417 = vmatpush1.msra.mxu0 0.0
    %1418 = vmatprep.subr.mxu0 0.0
    %1419 = vmatpush1.msra.mxu0 0.0
    %1420 = vmatprep.subr.mxu0 0.0
    %1421 = vmatpush1.msra.mxu0 0.0
    %1422 = vmatprep.subr.mxu0 0.0
    %1423 = vmatpush1.msra.mxu0 0.0
    %1424 = vmatprep.subr.mxu0 0.0
    %1425 = vmatpush1.msra.mxu0 0.0
    %1426 = vmatprep.subr.mxu0 0.0
    %1427 = vmatpush1.msra.mxu0 0.0
    %1428 = vmatprep.subr.mxu0 0.0
    %1429 = vmatpush1.msra.mxu0 0.0
    %1430 = vmatprep.subr.mxu0 0.0
    %1431 = vmatpush1.msra.mxu0 0.0
    %1432 = vmatprep.subr.mxu0 0.0
    %1433 = vmatpush1.msra.mxu0 0.0
    %1434 = vmatprep.subr.mxu0 0.0
    %1435 = vmatpush1.msra.mxu0 0.0
    %1436 = vmatprep.subr.mxu0 0.0
    %1437 = vmatpush1.msra.mxu0 0.0
    %1438 = vmatprep.subr.mxu0 0.0
    %1439 = vmatpush1.msra.mxu0 0.0
    %1440 = vmatprep.subr.mxu0 0.0
    %1441 = vmatpush1.msra.mxu0 0.0
    %1442 = vmatprep.mubr.f32.mxu0 0.0
    %1443 = vmatmul.mubr.f32.gmra.mrb[0].mxu0 %v178
    %v1444 = vpop.f32.mrb[0].mxu0
    %v1445 = vadd.f32 %v1376, %v1444
    %v1446 = vpop.f32.mrb[0].mxu0
    %1447 = vmatprep.mubr.f32.mxu0 0.0
    %1448 = vmatmul.mubr.f32.gmra.mrb[0].mxu0 %v181
    %v1449 = vpop.f32.mrb[0].mxu0
    %v1450 = vadd.f32 %v1376, %v1449
    %v1451 = vpop.f32.mrb[0].mxu0
    %1452 = vmatprep.mubr.f32.mxu0 0.0
    %1453 = vmatmul.mubr.f32.gmra.mrb[0].mxu0 %v184
    %v1454 = vpop.f32.mrb[0].mxu0
    %v1455 = vadd.f32 %v1376, %v1454
    %v1456 = vpop.f32.mrb[0].mxu0
    %1457 = vmatprep.mubr.f32.mxu0 0.0
    %1458 = vmatmul.mubr.f32.gmra.mrb[0].mxu0 %v187
    %v1459 = vpop.f32.mrb[0].mxu0
    %v1460 = vadd.f32 %v1376, %v1459
    %v1461 = vpop.f32.mrb[0].mxu0
    %1462 = vdwg.mxu0
    %s1463 = scalar_lea.vmem %s4, 64
    %v1464 = vld [vmem:[%s1463] sm:$0xff]
    %v1465 = vld [vmem:[%s1463 + $0x8] sm:$0xff]
    %v1466 = vld [vmem:[%s1463 + $0x10] sm:$0xff]
    %v1467 = vld [vmem:[%s1463 + $0x18] sm:$0xff]
    %1468 = vmatprep.subr.mxu0 0.0
    %1469 = vmatpush1.msra.mxu0 %v1464
    %1470 = vmatprep.subr.mxu0 0.0
    %1471 = vmatpush1.msra.mxu0 %v1465
    %1472 = vmatprep.subr.mxu0 0.0
    %1473 = vmatpush1.msra.mxu0 %v1466
    %1474 = vmatprep.subr.mxu0 0.0
    %1475 = vmatpush1.msra.mxu0 %v1467
    %1476 = vmatprep.subr.mxu0 0.0
    %1477 = vmatpush1.msra.mxu0 0.0
    %1478 = vmatprep.subr.mxu0 0.0
    %1479 = vmatpush1.msra.mxu0 0.0
    %1480 = vmatprep.subr.mxu0 0.0
    %1481 = vmatpush1.msra.mxu0 0.0
    %1482 = vmatprep.subr.mxu0 0.0
    %1483 = vmatpush1.msra.mxu0 0.0
    %1484 = vmatprep.subr.mxu0 0.0
    %1485 = vmatpush1.msra.mxu0 0.0
    %1486 = vmatprep.subr.mxu0 0.0
    %1487 = vmatpush1.msra.mxu0 0.0
    %1488 = vmatprep.subr.mxu0 0.0
    %1489 = vmatpush1.msra.mxu0 0.0
    %1490 = vmatprep.subr.mxu0 0.0
    %1491 = vmatpush1.msra.mxu0 0.0
    %1492 = vmatprep.subr.mxu0 0.0
    %1493 = vmatpush1.msra.mxu0 0.0
    %1494 = vmatprep.subr.mxu0 0.0
    %1495 = vmatpush1.msra.mxu0 0.0
    %1496 = vmatprep.subr.mxu0 0.0
    %1497 = vmatpush1.msra.mxu0 0.0
    %1498 = vmatprep.subr.mxu0 0.0
    %1499 = vmatpush1.msra.mxu0 0.0
    %1500 = vmatprep.subr.mxu0 0.0
    %1501 = vmatpush1.msra.mxu0 0.0
    %1502 = vmatprep.subr.mxu0 0.0
    %1503 = vmatpush1.msra.mxu0 0.0
    %1504 = vmatprep.subr.mxu0 0.0
    %1505 = vmatpush1.msra.mxu0 0.0
    %1506 = vmatprep.subr.mxu0 0.0
    %1507 = vmatpush1.msra.mxu0 0.0
    %1508 = vmatprep.subr.mxu0 0.0
    %1509 = vmatpush1.msra.mxu0 0.0
    %1510 = vmatprep.subr.mxu0 0.0
    %1511 = vmatpush1.msra.mxu0 0.0
    %1512 = vmatprep.subr.mxu0 0.0
    %1513 = vmatpush1.msra.mxu0 0.0
    %1514 = vmatprep.subr.mxu0 0.0
    %1515 = vmatpush1.msra.mxu0 0.0
    %1516 = vmatprep.subr.mxu0 0.0
    %1517 = vmatpush1.msra.mxu0 0.0
    %1518 = vmatprep.subr.mxu0 0.0
    %1519 = vmatpush1.msra.mxu0 0.0
    %1520 = vmatprep.subr.mxu0 0.0
    %1521 = vmatpush1.msra.mxu0 0.0
    %1522 = vmatprep.subr.mxu0 0.0
    %1523 = vmatpush1.msra.mxu0 0.0
    %1524 = vmatprep.subr.mxu0 0.0
    %1525 = vmatpush1.msra.mxu0 0.0
    %1526 = vmatprep.subr.mxu0 0.0
    %1527 = vmatpush1.msra.mxu0 0.0
    %1528 = vmatprep.subr.mxu0 0.0
    %1529 = vmatpush1.msra.mxu0 0.0
    %1530 = vmatprep.subr.mxu0 0.0
    %1531 = vmatpush1.msra.mxu0 0.0
    %1532 = vmatprep.mubr.f32.mxu0 0.0
    %1533 = vmatmul.mubr.f32.gmra.mrb[0].mxu0 %v178
    %v1534 = vpop.f32.mrb[0].mxu0
    %v1535 = vadd.f32 0.0, %v1534
    %v1536 = vpop.f32.mrb[0].mxu0
    %1537 = vmatprep.mubr.f32.mxu0 0.0
    %1538 = vmatmul.mubr.f32.gmra.mrb[0].mxu0 %v181
    %v1539 = vpop.f32.mrb[0].mxu0
    %v1540 = vadd.f32 0.0, %v1539
    %v1541 = vpop.f32.mrb[0].mxu0
    %1542 = vmatprep.mubr.f32.mxu0 0.0
    %1543 = vmatmul.mubr.f32.gmra.mrb[0].mxu0 %v184
    %v1544 = vpop.f32.mrb[0].mxu0
    %v1545 = vadd.f32 0.0, %v1544
    %v1546 = vpop.f32.mrb[0].mxu0
    %1547 = vmatprep.mubr.f32.mxu0 0.0
    %1548 = vmatmul.mubr.f32.gmra.mrb[0].mxu0 %v187
    %v1549 = vpop.f32.mrb[0].mxu0
    %v1550 = vadd.f32 0.0, %v1549
    %v1551 = vpop.f32.mrb[0].mxu0
    %1552 = vdwg.mxu0
    %v1554 = vsel %vm363, %v1364, 0
    %v1557 = vsel %vm363, %v1445, 0
    %v1560 = vsel %vm363, %v1450, 0
    %1562 = vmatprep.subr.mxu0 0.0
    %1563 = vmatpush1.xpose.msra.mxu0 %v1557
    %1564 = vmatprep.subr.mxu0 0.0
    %1565 = vmatpush1.xpose.msra.mxu0 %v1560
    %1566 = vmatprep.subr.mxu0 0.0
    %1567 = vmatpush1.xpose.msra.mxu0 0.0
    %1568 = vmatprep.subr.mxu0 0.0
    %1569 = vmatpush1.xpose.msra.mxu0 0.0
    %1570 = vmatprep.subr.mxu0 0.0
    %1571 = vmatpush1.xpose.msra.mxu0 0.0
    %1572 = vmatprep.subr.mxu0 0.0
    %1573 = vmatpush1.xpose.msra.mxu0 0.0
    %1574 = vmatprep.subr.mxu0 0.0
    %1575 = vmatpush1.xpose.msra.mxu0 0.0
    %1576 = vmatprep.subr.mxu0 0.0
    %1577 = vmatpush1.xpose.msra.mxu0 0.0
    %1578 = vmatprep.subr.mxu0 0.0
    %1579 = vmatpush1.xpose.msra.mxu0 0.0
    %1580 = vmatprep.subr.mxu0 0.0
    %1581 = vmatpush1.xpose.msra.mxu0 0.0
    %1582 = vmatprep.subr.mxu0 0.0
    %1583 = vmatpush1.xpose.msra.mxu0 0.0
    %1584 = vmatprep.subr.mxu0 0.0
    %1585 = vmatpush1.xpose.msra.mxu0 0.0
    %1586 = vmatprep.subr.mxu0 0.0
    %1587 = vmatpush1.xpose.msra.mxu0 0.0
    %1588 = vmatprep.subr.mxu0 0.0
    %1589 = vmatpush1.xpose.msra.mxu0 0.0
    %1590 = vmatprep.subr.mxu0 0.0
    %1591 = vmatpush1.xpose.msra.mxu0 0.0
    %1592 = vmatprep.subr.mxu0 0.0
    %1593 = vmatpush1.xpose.msra.mxu0 0.0
    %1594 = vmatprep.subr.mxu0 0.0
    %1595 = vmatpush1.xpose.msra.mxu0 0.0
    %1596 = vmatprep.subr.mxu0 0.0
    %1597 = vmatpush1.xpose.msra.mxu0 0.0
    %1598 = vmatprep.subr.mxu0 0.0
    %1599 = vmatpush1.xpose.msra.mxu0 0.0
    %1600 = vmatprep.subr.mxu0 0.0
    %1601 = vmatpush1.xpose.msra.mxu0 0.0
    %1602 = vmatprep.subr.mxu0 0.0
    %1603 = vmatpush1.xpose.msra.mxu0 0.0
    %1604 = vmatprep.subr.mxu0 0.0
    %1605 = vmatpush1.xpose.msra.mxu0 0.0
    %1606 = vmatprep.subr.mxu0 0.0
    %1607 = vmatpush1.xpose.msra.mxu0 0.0
    %1608 = vmatprep.subr.mxu0 0.0
    %1609 = vmatpush1.xpose.msra.mxu0 0.0
    %1610 = vmatprep.subr.mxu0 0.0
    %1611 = vmatpush1.xpose.msra.mxu0 0.0
    %1612 = vmatprep.subr.mxu0 0.0
    %1613 = vmatpush1.xpose.msra.mxu0 0.0
    %1614 = vmatprep.subr.mxu0 0.0
    %1615 = vmatpush1.xpose.msra.mxu0 0.0
    %1616 = vmatprep.subr.mxu0 0.0
    %1617 = vmatpush1.xpose.msra.mxu0 0.0
    %1618 = vmatprep.subr.mxu0 0.0
    %1619 = vmatpush1.xpose.msra.mxu0 0.0
    %1620 = vmatprep.subr.mxu0 0.0
    %1621 = vmatpush1.xpose.msra.mxu0 0.0
    %1622 = vmatprep.subr.mxu0 0.0
    %1623 = vmatpush1.xpose.msra.mxu0 0.0
    %1624 = vmatprep.subr.mxu0 0.0
    %1625 = vmatpush1.xpose.msra.mxu0 0.0
    %1626 = vmatprep.mubr.f32.mxu0 0.0
    %1627 = vmatmul.mubr.f32.gmra.mrb[0].mxu0 %v1554
    %v1628 = vpop.f32.mrb[0].mxu0
    %v1629 = vadd.f32 0.0, %v1628
    %v1630 = vpop.f32.mrb[0].mxu0
    %1631 = vdwg.mxu0
    %v1632 = vsel %vm443, %v1629, -inf
    %1633 = vmax.xlane.f32.xlu0 %v1632
    %v1634 = vpop.xlane.xlu0 %1633
    %v1635 = vsub.f32 %v1629, %v1634
    %v1636 = vmul.f32 %v1635, 1.442695
    %v1637 = vpow.pop %v1636
    %v1638 = vsel %vm443, %v1637, 0.0
    %1639 = vadd.xlane.f32.xlu0 %v1638
    %v1640 = vpop.xlane.xlu0 %1639
    %v1641 = vrcp.pop %v1640
    %v1642 = vmul.f32 %v1637, %v1641
    %v1643 = vld [vmem:[#allocation2] sm:$0xff]
    %v1645 = vsel %vm443, %v1642, 0
    %1647 = vmatprep.subr.mxu0 0.0
    %1648 = vmatpush1.msra.mxu0 %v1535
    %1649 = vmatprep.subr.mxu0 0.0
    %1650 = vmatpush1.msra.mxu0 %v1540
    %1651 = vmatprep.subr.mxu0 0.0
    %1652 = vmatpush1.msra.mxu0 0.0
    %1653 = vmatprep.subr.mxu0 0.0
    %1654 = vmatpush1.msra.mxu0 0.0
    %1655 = vmatprep.subr.mxu0 0.0
    %1656 = vmatpush1.msra.mxu0 0.0
    %1657 = vmatprep.subr.mxu0 0.0
    %1658 = vmatpush1.msra.mxu0 0.0
    %1659 = vmatprep.subr.mxu0 0.0
    %1660 = vmatpush1.msra.mxu0 0.0
    %1661 = vmatprep.subr.mxu0 0.0
    %1662 = vmatpush1.msra.mxu0 0.0
    %1663 = vmatprep.subr.mxu0 0.0
    %1664 = vmatpush1.msra.mxu0 0.0
    %1665 = vmatprep.subr.mxu0 0.0
    %1666 = vmatpush1.msra.mxu0 0.0
    %1667 = vmatprep.subr.mxu0 0.0
    %1668 = vmatpush1.msra.mxu0 0.0
    %1669 = vmatprep.subr.mxu0 0.0
    %1670 = vmatpush1.msra.mxu0 0.0
    %1671 = vmatprep.subr.mxu0 0.0
    %1672 = vmatpush1.msra.mxu0 0.0
    %1673 = vmatprep.subr.mxu0 0.0
    %1674 = vmatpush1.msra.mxu0 0.0
    %1675 = vmatprep.subr.mxu0 0.0
    %1676 = vmatpush1.msra.mxu0 0.0
    %1677 = vmatprep.subr.mxu0 0.0
    %1678 = vmatpush1.msra.mxu0 0.0
    %1679 = vmatprep.subr.mxu0 0.0
    %1680 = vmatpush1.msra.mxu0 0.0
    %1681 = vmatprep.subr.mxu0 0.0
    %1682 = vmatpush1.msra.mxu0 0.0
    %1683 = vmatprep.subr.mxu0 0.0
    %1684 = vmatpush1.msra.mxu0 0.0
    %1685 = vmatprep.subr.mxu0 0.0
    %1686 = vmatpush1.msra.mxu0 0.0
    %1687 = vmatprep.subr.mxu0 0.0
    %1688 = vmatpush1.msra.mxu0 0.0
    %1689 = vmatprep.subr.mxu0 0.0
    %1690 = vmatpush1.msra.mxu0 0.0
    %1691 = vmatprep.subr.mxu0 0.0
    %1692 = vmatpush1.msra.mxu0 0.0
    %1693 = vmatprep.subr.mxu0 0.0
    %1694 = vmatpush1.msra.mxu0 0.0
    %1695 = vmatprep.subr.mxu0 0.0
    %1696 = vmatpush1.msra.mxu0 0.0
    %1697 = vmatprep.subr.mxu0 0.0
    %1698 = vmatpush1.msra.mxu0 0.0
    %1699 = vmatprep.subr.mxu0 0.0
    %1700 = vmatpush1.msra.mxu0 0.0
    %1701 = vmatprep.subr.mxu0 0.0
    %1702 = vmatpush1.msra.mxu0 0.0
    %1703 = vmatprep.subr.mxu0 0.0
    %1704 = vmatpush1.msra.mxu0 0.0
    %1705 = vmatprep.subr.mxu0 0.0
    %1706 = vmatpush1.msra.mxu0 0.0
    %1707 = vmatprep.subr.mxu0 0.0
    %1708 = vmatpush1.msra.mxu0 0.0
    %1709 = vmatprep.subr.mxu0 0.0
    %1710 = vmatpush1.msra.mxu0 0.0
    %1711 = vmatprep.mubr.f32.mxu0 0.0
    %1712 = vmatmul.mubr.f32.gmra.mrb[0].mxu0 %v1645
    %v1713 = vpop.f32.mrb[0].mxu0
    %v1714 = vadd.f32 0.0, %v1713
    %v1715 = vpop.f32.mrb[0].mxu0
    %1716 = vdwg.mxu0
    %v1717 = vadd.f32 %v1643, %v1714
    %1718 = vst.msk [vmem:[#allocation2] sm:$0xff] %vm81, %v1717
    %v1720 = vsel %vm363, %v1369, 0
    %v1723 = vsel %vm363, %v1455, 0
    %v1726 = vsel %vm363, %v1460, 0
    %1728 = vmatprep.subr.mxu0 0.0
    %1729 = vmatpush1.xpose.msra.mxu0 %v1723
    %1730 = vmatprep.subr.mxu0 0.0
    %1731 = vmatpush1.xpose.msra.mxu0 %v1726
    %1732 = vmatprep.subr.mxu0 0.0
    %1733 = vmatpush1.xpose.msra.mxu0 0.0
    %1734 = vmatprep.subr.mxu0 0.0
    %1735 = vmatpush1.xpose.msra.mxu0 0.0
    %1736 = vmatprep.subr.mxu0 0.0
    %1737 = vmatpush1.xpose.msra.mxu0 0.0
    %1738 = vmatprep.subr.mxu0 0.0
    %1739 = vmatpush1.xpose.msra.mxu0 0.0
    %1740 = vmatprep.subr.mxu0 0.0
    %1741 = vmatpush1.xpose.msra.mxu0 0.0
    %1742 = vmatprep.subr.mxu0 0.0
    %1743 = vmatpush1.xpose.msra.mxu0 0.0
    %1744 = vmatprep.subr.mxu0 0.0
    %1745 = vmatpush1.xpose.msra.mxu0 0.0
    %1746 = vmatprep.subr.mxu0 0.0
    %1747 = vmatpush1.xpose.msra.mxu0 0.0
    %1748 = vmatprep.subr.mxu0 0.0
    %1749 = vmatpush1.xpose.msra.mxu0 0.0
    %1750 = vmatprep.subr.mxu0 0.0
    %1751 = vmatpush1.xpose.msra.mxu0 0.0
    %1752 = vmatprep.subr.mxu0 0.0
    %1753 = vmatpush1.xpose.msra.mxu0 0.0
    %1754 = vmatprep.subr.mxu0 0.0
    %1755 = vmatpush1.xpose.msra.mxu0 0.0
    %1756 = vmatprep.subr.mxu0 0.0
    %1757 = vmatpush1.xpose.msra.mxu0 0.0
    %1758 = vmatprep.subr.mxu0 0.0
    %1759 = vmatpush1.xpose.msra.mxu0 0.0
    %1760 = vmatprep.subr.mxu0 0.0
    %1761 = vmatpush1.xpose.msra.mxu0 0.0
    %1762 = vmatprep.subr.mxu0 0.0
    %1763 = vmatpush1.xpose.msra.mxu0 0.0
    %1764 = vmatprep.subr.mxu0 0.0
    %1765 = vmatpush1.xpose.msra.mxu0 0.0
    %1766 = vmatprep.subr.mxu0 0.0
    %1767 = vmatpush1.xpose.msra.mxu0 0.0
    %1768 = vmatprep.subr.mxu0 0.0
    %1769 = vmatpush1.xpose.msra.mxu0 0.0
    %1770 = vmatprep.subr.mxu0 0.0
    %1771 = vmatpush1.xpose.msra.mxu0 0.0
    %1772 = vmatprep.subr.mxu0 0.0
    %1773 = vmatpush1.xpose.msra.mxu0 0.0
    %1774 = vmatprep.subr.mxu0 0.0
    %1775 = vmatpush1.xpose.msra.mxu0 0.0
    %1776 = vmatprep.subr.mxu0 0.0
    %1777 = vmatpush1.xpose.msra.mxu0 0.0
    %1778 = vmatprep.subr.mxu0 0.0
    %1779 = vmatpush1.xpose.msra.mxu0 0.0
    %1780 = vmatprep.subr.mxu0 0.0
    %1781 = vmatpush1.xpose.msra.mxu0 0.0
    %1782 = vmatprep.subr.mxu0 0.0
    %1783 = vmatpush1.xpose.msra.mxu0 0.0
    %1784 = vmatprep.subr.mxu0 0.0
    %1785 = vmatpush1.xpose.msra.mxu0 0.0
    %1786 = vmatprep.subr.mxu0 0.0
    %1787 = vmatpush1.xpose.msra.mxu0 0.0
    %1788 = vmatprep.subr.mxu0 0.0
    %1789 = vmatpush1.xpose.msra.mxu0 0.0
    %1790 = vmatprep.subr.mxu0 0.0
    %1791 = vmatpush1.xpose.msra.mxu0 0.0
    %1792 = vmatprep.mubr.f32.mxu0 0.0
    %1793 = vmatmul.mubr.f32.gmra.mrb[0].mxu0 %v1720
    %v1794 = vpop.f32.mrb[0].mxu0
    %v1795 = vadd.f32 0.0, %v1794
    %v1796 = vpop.f32.mrb[0].mxu0
    %1797 = vdwg.mxu0
    %v1798 = vsel %vm443, %v1795, -inf
    %1799 = vmax.xlane.f32.xlu0 %v1798
    %v1800 = vpop.xlane.xlu0 %1799
    %v1801 = vsub.f32 %v1795, %v1800
    %v1802 = vmul.f32 %v1801, 1.442695
    %v1803 = vpow.pop %v1802
    %v1804 = vsel %vm443, %v1803, 0.0
    %1805 = vadd.xlane.f32.xlu0 %v1804
    %v1806 = vpop.xlane.xlu0 %1805
    %v1807 = vrcp.pop %v1806
    %v1808 = vmul.f32 %v1803, %v1807
    %v1809 = vld [vmem:[#allocation2 + $0x8] sm:$0xff]
    %v1811 = vsel %vm443, %v1808, 0
    %1813 = vmatprep.subr.mxu0 0.0
    %1814 = vmatpush1.msra.mxu0 %v1545
    %1815 = vmatprep.subr.mxu0 0.0
    %1816 = vmatpush1.msra.mxu0 %v1550
    %1817 = vmatprep.subr.mxu0 0.0
    %1818 = vmatpush1.msra.mxu0 0.0
    %1819 = vmatprep.subr.mxu0 0.0
    %1820 = vmatpush1.msra.mxu0 0.0
    %1821 = vmatprep.subr.mxu0 0.0
    %1822 = vmatpush1.msra.mxu0 0.0
    %1823 = vmatprep.subr.mxu0 0.0
    %1824 = vmatpush1.msra.mxu0 0.0
    %1825 = vmatprep.subr.mxu0 0.0
    %1826 = vmatpush1.msra.mxu0 0.0
    %1827 = vmatprep.subr.mxu0 0.0
    %1828 = vmatpush1.msra.mxu0 0.0
    %1829 = vmatprep.subr.mxu0 0.0
    %1830 = vmatpush1.msra.mxu0 0.0
    %1831 = vmatprep.subr.mxu0 0.0
    %1832 = vmatpush1.msra.mxu0 0.0
    %1833 = vmatprep.subr.mxu0 0.0
    %1834 = vmatpush1.msra.mxu0 0.0
    %1835 = vmatprep.subr.mxu0 0.0
    %1836 = vmatpush1.msra.mxu0 0.0
    %1837 = vmatprep.subr.mxu0 0.0
    %1838 = vmatpush1.msra.mxu0 0.0
    %1839 = vmatprep.subr.mxu0 0.0
    %1840 = vmatpush1.msra.mxu0 0.0
    %1841 = vmatprep.subr.mxu0 0.0
    %1842 = vmatpush1.msra.mxu0 0.0
    %1843 = vmatprep.subr.mxu0 0.0
    %1844 = vmatpush1.msra.mxu0 0.0
    %1845 = vmatprep.subr.mxu0 0.0
    %1846 = vmatpush1.msra.mxu0 0.0
    %1847 = vmatprep.subr.mxu0 0.0
    %1848 = vmatpush1.msra.mxu0 0.0
    %1849 = vmatprep.subr.mxu0 0.0
    %1850 = vmatpush1.msra.mxu0 0.0
    %1851 = vmatprep.subr.mxu0 0.0
    %1852 = vmatpush1.msra.mxu0 0.0
    %1853 = vmatprep.subr.mxu0 0.0
    %1854 = vmatpush1.msra.mxu0 0.0
    %1855 = vmatprep.subr.mxu0 0.0
    %1856 = vmatpush1.msra.mxu0 0.0
    %1857 = vmatprep.subr.mxu0 0.0
    %1858 = vmatpush1.msra.mxu0 0.0
    %1859 = vmatprep.subr.mxu0 0.0
    %1860 = vmatpush1.msra.mxu0 0.0
    %1861 = vmatprep.subr.mxu0 0.0
    %1862 = vmatpush1.msra.mxu0 0.0
    %1863 = vmatprep.subr.mxu0 0.0
    %1864 = vmatpush1.msra.mxu0 0.0
    %1865 = vmatprep.subr.mxu0 0.0
    %1866 = vmatpush1.msra.mxu0 0.0
    %1867 = vmatprep.subr.mxu0 0.0
    %1868 = vmatpush1.msra.mxu0 0.0
    %1869 = vmatprep.subr.mxu0 0.0
    %1870 = vmatpush1.msra.mxu0 0.0
    %1871 = vmatprep.subr.mxu0 0.0
    %1872 = vmatpush1.msra.mxu0 0.0
    %1873 = vmatprep.subr.mxu0 0.0
    %1874 = vmatpush1.msra.mxu0 0.0
    %1875 = vmatprep.subr.mxu0 0.0
    %1876 = vmatpush1.msra.mxu0 0.0
    %1877 = vmatprep.mubr.f32.mxu0 0.0
    %1878 = vmatmul.mubr.f32.gmra.mrb[0].mxu0 %v1811
    %v1879 = vpop.f32.mrb[0].mxu0
    %v1880 = vadd.f32 0.0, %v1879
    %v1881 = vpop.f32.mrb[0].mxu0
    %1882 = vdwg.mxu0
    %v1883 = vadd.f32 %v1809, %v1880
    %1884 = vst.msk [vmem:[#allocation2 + $0x8] sm:$0xff] %vm81, %v1883
    %v1886 = vlaneseq
    %v1887 = vshrl.u32 %v1886, 7
    %v1888 = vsub.s32 0, %v1887
    %v1889 = vrot.slane %v75, %v1888
    %1891 = vmatprep.subr.mxu0 0.0
    %1892 = vmatpush1.msra.mxu0 %v51
    %1893 = vmatprep.subr.mxu0 0.0
    %1894 = vmatpush1.msra.mxu0 %v52
    %1895 = vmatprep.subr.mxu0 0.0
    %1896 = vmatpush1.msra.mxu0 %v53
    %1897 = vmatprep.subr.mxu0 0.0
    %1898 = vmatpush1.msra.mxu0 %v54
    %1899 = vmatprep.subr.mxu0 0.0
    %1900 = vmatpush1.msra.mxu0 0.0
    %1901 = vmatprep.subr.mxu0 0.0
    %1902 = vmatpush1.msra.mxu0 0.0
    %1903 = vmatprep.subr.mxu0 0.0
    %1904 = vmatpush1.msra.mxu0 0.0
    %1905 = vmatprep.subr.mxu0 0.0
    %1906 = vmatpush1.msra.mxu0 0.0
    %1907 = vmatprep.subr.mxu0 0.0
    %1908 = vmatpush1.msra.mxu0 0.0
    %1909 = vmatprep.subr.mxu0 0.0
    %1910 = vmatpush1.msra.mxu0 0.0
    %1911 = vmatprep.subr.mxu0 0.0
    %1912 = vmatpush1.msra.mxu0 0.0
    %1913 = vmatprep.subr.mxu0 0.0
    %1914 = vmatpush1.msra.mxu0 0.0
    %1915 = vmatprep.subr.mxu0 0.0
    %1916 = vmatpush1.msra.mxu0 0.0
    %1917 = vmatprep.subr.mxu0 0.0
    %1918 = vmatpush1.msra.mxu0 0.0
    %1919 = vmatprep.subr.mxu0 0.0
    %1920 = vmatpush1.msra.mxu0 0.0
    %1921 = vmatprep.subr.mxu0 0.0
    %1922 = vmatpush1.msra.mxu0 0.0
    %1923 = vmatprep.subr.mxu0 0.0
    %1924 = vmatpush1.msra.mxu0 0.0
    %1925 = vmatprep.subr.mxu0 0.0
    %1926 = vmatpush1.msra.mxu0 0.0
    %1927 = vmatprep.subr.mxu0 0.0
    %1928 = vmatpush1.msra.mxu0 0.0
    %1929 = vmatprep.subr.mxu0 0.0
    %1930 = vmatpush1.msra.mxu0 0.0
    %1931 = vmatprep.subr.mxu0 0.0
    %1932 = vmatpush1.msra.mxu0 0.0
    %1933 = vmatprep.subr.mxu0 0.0
    %1934 = vmatpush1.msra.mxu0 0.0
    %1935 = vmatprep.subr.mxu0 0.0
    %1936 = vmatpush1.msra.mxu0 0.0
    %1937 = vmatprep.subr.mxu0 0.0
    %1938 = vmatpush1.msra.mxu0 0.0
    %1939 = vmatprep.subr.mxu0 0.0
    %1940 = vmatpush1.msra.mxu0 0.0
    %1941 = vmatprep.subr.mxu0 0.0
    %1942 = vmatpush1.msra.mxu0 0.0
    %1943 = vmatprep.subr.mxu0 0.0
    %1944 = vmatpush1.msra.mxu0 0.0
    %1945 = vmatprep.subr.mxu0 0.0
    %1946 = vmatpush1.msra.mxu0 0.0
    %1947 = vmatprep.subr.mxu0 0.0
    %1948 = vmatpush1.msra.mxu0 0.0
    %1949 = vmatprep.subr.mxu0 0.0
    %1950 = vmatpush1.msra.mxu0 0.0
    %1951 = vmatprep.subr.mxu0 0.0
    %1952 = vmatpush1.msra.mxu0 0.0
    %1953 = vmatprep.subr.mxu0 0.0
    %1954 = vmatpush1.msra.mxu0 0.0
    %1955 = vmatprep.mubr.f32.mxu0 0.0
    %1956 = vmatmul.mubr.f32.gmra.mrb[0].mxu0 %v91
    %v1957 = vpop.f32.mrb[0].mxu0
    %v1958 = vadd.f32 %v1889, %v1957
    %v1959 = vpop.f32.mrb[0].mxu0
    %1960 = vmatprep.mubr.f32.mxu0 0.0
    %1961 = vmatmul.mubr.f32.gmra.mrb[0].mxu0 %v94
    %v1962 = vpop.f32.mrb[0].mxu0
    %v1963 = vadd.f32 %v1889, %v1962
    %v1964 = vpop.f32.mrb[0].mxu0
    %1965 = vdwg.mxu0
    %v1967 = vlaneseq
    %v1968 = vshrl.u32 %v1967, 7
    %v1969 = vsub.s32 0, %v1968
    %v1970 = vrot.slane %v80, %v1969
    %1972 = vmatprep.subr.mxu0 0.0
    %1973 = vmatpush1.msra.mxu0 %v68
    %1974 = vmatprep.subr.mxu0 0.0
    %1975 = vmatpush1.msra.mxu0 %v69
    %1976 = vmatprep.subr.mxu0 0.0
    %1977 = vmatpush1.msra.mxu0 %v70
    %1978 = vmatprep.subr.mxu0 0.0
    %1979 = vmatpush1.msra.mxu0 %v71
    %1980 = vmatprep.subr.mxu0 0.0
    %1981 = vmatpush1.msra.mxu0 0.0
    %1982 = vmatprep.subr.mxu0 0.0
    %1983 = vmatpush1.msra.mxu0 0.0
    %1984 = vmatprep.subr.mxu0 0.0
    %1985 = vmatpush1.msra.mxu0 0.0
    %1986 = vmatprep.subr.mxu0 0.0
    %1987 = vmatpush1.msra.mxu0 0.0
    %1988 = vmatprep.subr.mxu0 0.0
    %1989 = vmatpush1.msra.mxu0 0.0
    %1990 = vmatprep.subr.mxu0 0.0
    %1991 = vmatpush1.msra.mxu0 0.0
    %1992 = vmatprep.subr.mxu0 0.0
    %1993 = vmatpush1.msra.mxu0 0.0
    %1994 = vmatprep.subr.mxu0 0.0
    %1995 = vmatpush1.msra.mxu0 0.0
    %1996 = vmatprep.subr.mxu0 0.0
    %1997 = vmatpush1.msra.mxu0 0.0
    %1998 = vmatprep.subr.mxu0 0.0
    %1999 = vmatpush1.msra.mxu0 0.0
    %2000 = vmatprep.subr.mxu0 0.0
    %2001 = vmatpush1.msra.mxu0 0.0
    %2002 = vmatprep.subr.mxu0 0.0
    %2003 = vmatpush1.msra.mxu0 0.0
    %2004 = vmatprep.subr.mxu0 0.0
    %2005 = vmatpush1.msra.mxu0 0.0
    %2006 = vmatprep.subr.mxu0 0.0
    %2007 = vmatpush1.msra.mxu0 0.0
    %2008 = vmatprep.subr.mxu0 0.0
    %2009 = vmatpush1.msra.mxu0 0.0
    %2010 = vmatprep.subr.mxu0 0.0
    %2011 = vmatpush1.msra.mxu0 0.0
    %2012 = vmatprep.subr.mxu0 0.0
    %2013 = vmatpush1.msra.mxu0 0.0
    %2014 = vmatprep.subr.mxu0 0.0
    %2015 = vmatpush1.msra.mxu0 0.0
    %2016 = vmatprep.subr.mxu0 0.0
    %2017 = vmatpush1.msra.mxu0 0.0
    %2018 = vmatprep.subr.mxu0 0.0
    %2019 = vmatpush1.msra.mxu0 0.0
    %2020 = vmatprep.subr.mxu0 0.0
    %2021 = vmatpush1.msra.mxu0 0.0
    %2022 = vmatprep.subr.mxu0 0.0
    %2023 = vmatpush1.msra.mxu0 0.0
    %2024 = vmatprep.subr.mxu0 0.0
    %2025 = vmatpush1.msra.mxu0 0.0
    %2026 = vmatprep.subr.mxu0 0.0
    %2027 = vmatpush1.msra.mxu0 0.0
    %2028 = vmatprep.subr.mxu0 0.0
    %2029 = vmatpush1.msra.mxu0 0.0
    %2030 = vmatprep.subr.mxu0 0.0
    %2031 = vmatpush1.msra.mxu0 0.0
    %2032 = vmatprep.subr.mxu0 0.0
    %2033 = vmatpush1.msra.mxu0 0.0
    %2034 = vmatprep.subr.mxu0 0.0
    %2035 = vmatpush1.msra.mxu0 0.0
    %2036 = vmatprep.mubr.f32.mxu0 0.0
    %2037 = vmatmul.mubr.f32.gmra.mrb[0].mxu0 %v178
    %v2038 = vpop.f32.mrb[0].mxu0
    %v2039 = vadd.f32 %v1970, %v2038
    %v2040 = vpop.f32.mrb[0].mxu0
    %2041 = vmatprep.mubr.f32.mxu0 0.0
    %2042 = vmatmul.mubr.f32.gmra.mrb[0].mxu0 %v181
    %v2043 = vpop.f32.mrb[0].mxu0
    %v2044 = vadd.f32 %v1970, %v2043
    %v2045 = vpop.f32.mrb[0].mxu0
    %2046 = vmatprep.mubr.f32.mxu0 0.0
    %2047 = vmatmul.mubr.f32.gmra.mrb[0].mxu0 %v184
    %v2048 = vpop.f32.mrb[0].mxu0
    %v2049 = vadd.f32 %v1970, %v2048
    %v2050 = vpop.f32.mrb[0].mxu0
    %2051 = vmatprep.mubr.f32.mxu0 0.0
    %2052 = vmatmul.mubr.f32.gmra.mrb[0].mxu0 %v187
    %v2053 = vpop.f32.mrb[0].mxu0
    %v2054 = vadd.f32 %v1970, %v2053
    %v2055 = vpop.f32.mrb[0].mxu0
    %2056 = vdwg.mxu0
    %s2057 = scalar_lea.vmem %s4, 96
    %v2058 = vld [vmem:[%s2057] sm:$0xff]
    %v2059 = vld [vmem:[%s2057 + $0x8] sm:$0xff]
    %v2060 = vld [vmem:[%s2057 + $0x10] sm:$0xff]
    %v2061 = vld [vmem:[%s2057 + $0x18] sm:$0xff]
    %2062 = vmatprep.subr.mxu0 0.0
    %2063 = vmatpush1.msra.mxu0 %v2058
    %2064 = vmatprep.subr.mxu0 0.0
    %2065 = vmatpush1.msra.mxu0 %v2059
    %2066 = vmatprep.subr.mxu0 0.0
    %2067 = vmatpush1.msra.mxu0 %v2060
    %2068 = vmatprep.subr.mxu0 0.0
    %2069 = vmatpush1.msra.mxu0 %v2061
    %2070 = vmatprep.subr.mxu0 0.0
    %2071 = vmatpush1.msra.mxu0 0.0
    %2072 = vmatprep.subr.mxu0 0.0
    %2073 = vmatpush1.msra.mxu0 0.0
    %2074 = vmatprep.subr.mxu0 0.0
    %2075 = vmatpush1.msra.mxu0 0.0
    %2076 = vmatprep.subr.mxu0 0.0
    %2077 = vmatpush1.msra.mxu0 0.0
    %2078 = vmatprep.subr.mxu0 0.0
    %2079 = vmatpush1.msra.mxu0 0.0
    %2080 = vmatprep.subr.mxu0 0.0
    %2081 = vmatpush1.msra.mxu0 0.0
    %2082 = vmatprep.subr.mxu0 0.0
    %2083 = vmatpush1.msra.mxu0 0.0
    %2084 = vmatprep.subr.mxu0 0.0
    %2085 = vmatpush1.msra.mxu0 0.0
    %2086 = vmatprep.subr.mxu0 0.0
    %2087 = vmatpush1.msra.mxu0 0.0
    %2088 = vmatprep.subr.mxu0 0.0
    %2089 = vmatpush1.msra.mxu0 0.0
    %2090 = vmatprep.subr.mxu0 0.0
    %2091 = vmatpush1.msra.mxu0 0.0
    %2092 = vmatprep.subr.mxu0 0.0
    %2093 = vmatpush1.msra.mxu0 0.0
    %2094 = vmatprep.subr.mxu0 0.0
    %2095 = vmatpush1.msra.mxu0 0.0
    %2096 = vmatprep.subr.mxu0 0.0
    %2097 = vmatpush1.msra.mxu0 0.0
    %2098 = vmatprep.subr.mxu0 0.0
    %2099 = vmatpush1.msra.mxu0 0.0
    %2100 = vmatprep.subr.mxu0 0.0
    %2101 = vmatpush1.msra.mxu0 0.0
    %2102 = vmatprep.subr.mxu0 0.0
    %2103 = vmatpush1.msra.mxu0 0.0
    %2104 = vmatprep.subr.mxu0 0.0
    %2105 = vmatpush1.msra.mxu0 0.0
    %2106 = vmatprep.subr.mxu0 0.0
    %2107 = vmatpush1.msra.mxu0 0.0
    %2108 = vmatprep.subr.mxu0 0.0
    %2109 = vmatpush1.msra.mxu0 0.0
    %2110 = vmatprep.subr.mxu0 0.0
    %2111 = vmatpush1.msra.mxu0 0.0
    %2112 = vmatprep.subr.mxu0 0.0
    %2113 = vmatpush1.msra.mxu0 0.0
    %2114 = vmatprep.subr.mxu0 0.0
    %2115 = vmatpush1.msra.mxu0 0.0
    %2116 = vmatprep.subr.mxu0 0.0
    %2117 = vmatpush1.msra.mxu0 0.0
    %2118 = vmatprep.subr.mxu0 0.0
    %2119 = vmatpush1.msra.mxu0 0.0
    %2120 = vmatprep.subr.mxu0 0.0
    %2121 = vmatpush1.msra.mxu0 0.0
    %2122 = vmatprep.subr.mxu0 0.0
    %2123 = vmatpush1.msra.mxu0 0.0
    %2124 = vmatprep.subr.mxu0 0.0
    %2125 = vmatpush1.msra.mxu0 0.0
    %2126 = vmatprep.mubr.f32.mxu0 0.0
    %2127 = vmatmul.mubr.f32.gmra.mrb[0].mxu0 %v178
    %v2128 = vpop.f32.mrb[0].mxu0
    %v2129 = vadd.f32 0.0, %v2128
    %v2130 = vpop.f32.mrb[0].mxu0
    %2131 = vmatprep.mubr.f32.mxu0 0.0
    %2132 = vmatmul.mubr.f32.gmra.mrb[0].mxu0 %v181
    %v2133 = vpop.f32.mrb[0].mxu0
    %v2134 = vadd.f32 0.0, %v2133
    %v2135 = vpop.f32.mrb[0].mxu0
    %2136 = vmatprep.mubr.f32.mxu0 0.0
    %2137 = vmatmul.mubr.f32.gmra.mrb[0].mxu0 %v184
    %v2138 = vpop.f32.mrb[0].mxu0
    %v2139 = vadd.f32 0.0, %v2138
    %v2140 = vpop.f32.mrb[0].mxu0
    %2141 = vmatprep.mubr.f32.mxu0 0.0
    %2142 = vmatmul.mubr.f32.gmra.mrb[0].mxu0 %v187
    %v2143 = vpop.f32.mrb[0].mxu0
    %v2144 = vadd.f32 0.0, %v2143
    %v2145 = vpop.f32.mrb[0].mxu0
    %2146 = vdwg.mxu0
    %v2148 = vsel %vm363, %v1958, 0
    %v2151 = vsel %vm363, %v2039, 0
    %v2154 = vsel %vm363, %v2044, 0
    %2156 = vmatprep.subr.mxu0 0.0
    %2157 = vmatpush1.xpose.msra.mxu0 %v2151
    %2158 = vmatprep.subr.mxu0 0.0
    %2159 = vmatpush1.xpose.msra.mxu0 %v2154
    %2160 = vmatprep.subr.mxu0 0.0
    %2161 = vmatpush1.xpose.msra.mxu0 0.0
    %2162 = vmatprep.subr.mxu0 0.0
    %2163 = vmatpush1.xpose.msra.mxu0 0.0
    %2164 = vmatprep.subr.mxu0 0.0
    %2165 = vmatpush1.xpose.msra.mxu0 0.0
    %2166 = vmatprep.subr.mxu0 0.0
    %2167 = vmatpush1.xpose.msra.mxu0 0.0
    %2168 = vmatprep.subr.mxu0 0.0
    %2169 = vmatpush1.xpose.msra.mxu0 0.0
    %2170 = vmatprep.subr.mxu0 0.0
    %2171 = vmatpush1.xpose.msra.mxu0 0.0
    %2172 = vmatprep.subr.mxu0 0.0
    %2173 = vmatpush1.xpose.msra.mxu0 0.0
    %2174 = vmatprep.subr.mxu0 0.0
    %2175 = vmatpush1.xpose.msra.mxu0 0.0
    %2176 = vmatprep.subr.mxu0 0.0
    %2177 = vmatpush1.xpose.msra.mxu0 0.0
    %2178 = vmatprep.subr.mxu0 0.0
    %2179 = vmatpush1.xpose.msra.mxu0 0.0
    %2180 = vmatprep.subr.mxu0 0.0
    %2181 = vmatpush1.xpose.msra.mxu0 0.0
    %2182 = vmatprep.subr.mxu0 0.0
    %2183 = vmatpush1.xpose.msra.mxu0 0.0
    %2184 = vmatprep.subr.mxu0 0.0
    %2185 = vmatpush1.xpose.msra.mxu0 0.0
    %2186 = vmatprep.subr.mxu0 0.0
    %2187 = vmatpush1.xpose.msra.mxu0 0.0
    %2188 = vmatprep.subr.mxu0 0.0
    %2189 = vmatpush1.xpose.msra.mxu0 0.0
    %2190 = vmatprep.subr.mxu0 0.0
    %2191 = vmatpush1.xpose.msra.mxu0 0.0
    %2192 = vmatprep.subr.mxu0 0.0
    %2193 = vmatpush1.xpose.msra.mxu0 0.0
    %2194 = vmatprep.subr.mxu0 0.0
    %2195 = vmatpush1.xpose.msra.mxu0 0.0
    %2196 = vmatprep.subr.mxu0 0.0
    %2197 = vmatpush1.xpose.msra.mxu0 0.0
    %2198 = vmatprep.subr.mxu0 0.0
    %2199 = vmatpush1.xpose.msra.mxu0 0.0
    %2200 = vmatprep.subr.mxu0 0.0
    %2201 = vmatpush1.xpose.msra.mxu0 0.0
    %2202 = vmatprep.subr.mxu0 0.0
    %2203 = vmatpush1.xpose.msra.mxu0 0.0
    %2204 = vmatprep.subr.mxu0 0.0
    %2205 = vmatpush1.xpose.msra.mxu0 0.0
    %2206 = vmatprep.subr.mxu0 0.0
    %2207 = vmatpush1.xpose.msra.mxu0 0.0
    %2208 = vmatprep.subr.mxu0 0.0
    %2209 = vmatpush1.xpose.msra.mxu0 0.0
    %2210 = vmatprep.subr.mxu0 0.0
    %2211 = vmatpush1.xpose.msra.mxu0 0.0
    %2212 = vmatprep.subr.mxu0 0.0
    %2213 = vmatpush1.xpose.msra.mxu0 0.0
    %2214 = vmatprep.subr.mxu0 0.0
    %2215 = vmatpush1.xpose.msra.mxu0 0.0
    %2216 = vmatprep.subr.mxu0 0.0
    %2217 = vmatpush1.xpose.msra.mxu0 0.0
    %2218 = vmatprep.subr.mxu0 0.0
    %2219 = vmatpush1.xpose.msra.mxu0 0.0
    %2220 = vmatprep.mubr.f32.mxu0 0.0
    %2221 = vmatmul.mubr.f32.gmra.mrb[0].mxu0 %v2148
    %v2222 = vpop.f32.mrb[0].mxu0
    %v2223 = vadd.f32 0.0, %v2222
    %v2224 = vpop.f32.mrb[0].mxu0
    %2225 = vdwg.mxu0
    %v2226 = vsel %vm443, %v2223, -inf
    %2227 = vmax.xlane.f32.xlu0 %v2226
    %v2228 = vpop.xlane.xlu0 %2227
    %v2229 = vsub.f32 %v2223, %v2228
    %v2230 = vmul.f32 %v2229, 1.442695
    %v2231 = vpow.pop %v2230
    %v2232 = vsel %vm443, %v2231, 0.0
    %2233 = vadd.xlane.f32.xlu0 %v2232
    %v2234 = vpop.xlane.xlu0 %2233
    %v2235 = vrcp.pop %v2234
    %v2236 = vmul.f32 %v2231, %v2235
    %v2237 = vld [vmem:[#allocation2] sm:$0xff]
    %v2239 = vsel %vm443, %v2236, 0
    %2241 = vmatprep.subr.mxu0 0.0
    %2242 = vmatpush1.msra.mxu0 %v2129
    %2243 = vmatprep.subr.mxu0 0.0
    %2244 = vmatpush1.msra.mxu0 %v2134
    %2245 = vmatprep.subr.mxu0 0.0
    %2246 = vmatpush1.msra.mxu0 0.0
    %2247 = vmatprep.subr.mxu0 0.0
    %2248 = vmatpush1.msra.mxu0 0.0
    %2249 = vmatprep.subr.mxu0 0.0
    %2250 = vmatpush1.msra.mxu0 0.0
    %2251 = vmatprep.subr.mxu0 0.0
    %2252 = vmatpush1.msra.mxu0 0.0
    %2253 = vmatprep.subr.mxu0 0.0
    %2254 = vmatpush1.msra.mxu0 0.0
    %2255 = vmatprep.subr.mxu0 0.0
    %2256 = vmatpush1.msra.mxu0 0.0
    %2257 = vmatprep.subr.mxu0 0.0
    %2258 = vmatpush1.msra.mxu0 0.0
    %2259 = vmatprep.subr.mxu0 0.0
    %2260 = vmatpush1.msra.mxu0 0.0
    %2261 = vmatprep.subr.mxu0 0.0
    %2262 = vmatpush1.msra.mxu0 0.0
    %2263 = vmatprep.subr.mxu0 0.0
    %2264 = vmatpush1.msra.mxu0 0.0
    %2265 = vmatprep.subr.mxu0 0.0
    %2266 = vmatpush1.msra.mxu0 0.0
    %2267 = vmatprep.subr.mxu0 0.0
    %2268 = vmatpush1.msra.mxu0 0.0
    %2269 = vmatprep.subr.mxu0 0.0
    %2270 = vmatpush1.msra.mxu0 0.0
    %2271 = vmatprep.subr.mxu0 0.0
    %2272 = vmatpush1.msra.mxu0 0.0
    %2273 = vmatprep.subr.mxu0 0.0
    %2274 = vmatpush1.msra.mxu0 0.0
    %2275 = vmatprep.subr.mxu0 0.0
    %2276 = vmatpush1.msra.mxu0 0.0
    %2277 = vmatprep.subr.mxu0 0.0
    %2278 = vmatpush1.msra.mxu0 0.0
    %2279 = vmatprep.subr.mxu0 0.0
    %2280 = vmatpush1.msra.mxu0 0.0
    %2281 = vmatprep.subr.mxu0 0.0
    %2282 = vmatpush1.msra.mxu0 0.0
    %2283 = vmatprep.subr.mxu0 0.0
    %2284 = vmatpush1.msra.mxu0 0.0
    %2285 = vmatprep.subr.mxu0 0.0
    %2286 = vmatpush1.msra.mxu0 0.0
    %2287 = vmatprep.subr.mxu0 0.0
    %2288 = vmatpush1.msra.mxu0 0.0
    %2289 = vmatprep.subr.mxu0 0.0
    %2290 = vmatpush1.msra.mxu0 0.0
    %2291 = vmatprep.subr.mxu0 0.0
    %2292 = vmatpush1.msra.mxu0 0.0
    %2293 = vmatprep.subr.mxu0 0.0
    %2294 = vmatpush1.msra.mxu0 0.0
    %2295 = vmatprep.subr.mxu0 0.0
    %2296 = vmatpush1.msra.mxu0 0.0
    %2297 = vmatprep.subr.mxu0 0.0
    %2298 = vmatpush1.msra.mxu0 0.0
    %2299 = vmatprep.subr.mxu0 0.0
    %2300 = vmatpush1.msra.mxu0 0.0
    %2301 = vmatprep.subr.mxu0 0.0
    %2302 = vmatpush1.msra.mxu0 0.0
    %2303 = vmatprep.subr.mxu0 0.0
    %2304 = vmatpush1.msra.mxu0 0.0
    %2305 = vmatprep.mubr.f32.mxu0 0.0
    %2306 = vmatmul.mubr.f32.gmra.mrb[0].mxu0 %v2239
    %v2307 = vpop.f32.mrb[0].mxu0
    %v2308 = vadd.f32 0.0, %v2307
    %v2309 = vpop.f32.mrb[0].mxu0
    %2310 = vdwg.mxu0
    %v2311 = vadd.f32 %v2237, %v2308
    %2312 = vst.msk [vmem:[#allocation2] sm:$0xff] %vm81, %v2311
    %v2314 = vsel %vm363, %v1963, 0
    %v2317 = vsel %vm363, %v2049, 0
    %v2320 = vsel %vm363, %v2054, 0
    %2322 = vmatprep.subr.mxu0 0.0
    %2323 = vmatpush1.xpose.msra.mxu0 %v2317
    %2324 = vmatprep.subr.mxu0 0.0
    %2325 = vmatpush1.xpose.msra.mxu0 %v2320
    %2326 = vmatprep.subr.mxu0 0.0
    %2327 = vmatpush1.xpose.msra.mxu0 0.0
    %2328 = vmatprep.subr.mxu0 0.0
    %2329 = vmatpush1.xpose.msra.mxu0 0.0
    %2330 = vmatprep.subr.mxu0 0.0
    %2331 = vmatpush1.xpose.msra.mxu0 0.0
    %2332 = vmatprep.subr.mxu0 0.0
    %2333 = vmatpush1.xpose.msra.mxu0 0.0
    %2334 = vmatprep.subr.mxu0 0.0
    %2335 = vmatpush1.xpose.msra.mxu0 0.0
    %2336 = vmatprep.subr.mxu0 0.0
    %2337 = vmatpush1.xpose.msra.mxu0 0.0
    %2338 = vmatprep.subr.mxu0 0.0
    %2339 = vmatpush1.xpose.msra.mxu0 0.0
    %2340 = vmatprep.subr.mxu0 0.0
    %2341 = vmatpush1.xpose.msra.mxu0 0.0
    %2342 = vmatprep.subr.mxu0 0.0
    %2343 = vmatpush1.xpose.msra.mxu0 0.0
    %2344 = vmatprep.subr.mxu0 0.0
    %2345 = vmatpush1.xpose.msra.mxu0 0.0
    %2346 = vmatprep.subr.mxu0 0.0
    %2347 = vmatpush1.xpose.msra.mxu0 0.0
    %2348 = vmatprep.subr.mxu0 0.0
    %2349 = vmatpush1.xpose.msra.mxu0 0.0
    %2350 = vmatprep.subr.mxu0 0.0
    %2351 = vmatpush1.xpose.msra.mxu0 0.0
    %2352 = vmatprep.subr.mxu0 0.0
    %2353 = vmatpush1.xpose.msra.mxu0 0.0
    %2354 = vmatprep.subr.mxu0 0.0
    %2355 = vmatpush1.xpose.msra.mxu0 0.0
    %2356 = vmatprep.subr.mxu0 0.0
    %2357 = vmatpush1.xpose.msra.mxu0 0.0
    %2358 = vmatprep.subr.mxu0 0.0
    %2359 = vmatpush1.xpose.msra.mxu0 0.0
    %2360 = vmatprep.subr.mxu0 0.0
    %2361 = vmatpush1.xpose.msra.mxu0 0.0
    %2362 = vmatprep.subr.mxu0 0.0
    %2363 = vmatpush1.xpose.msra.mxu0 0.0
    %2364 = vmatprep.subr.mxu0 0.0
    %2365 = vmatpush1.xpose.msra.mxu0 0.0
    %2366 = vmatprep.subr.mxu0 0.0
    %2367 = vmatpush1.xpose.msra.mxu0 0.0
    %2368 = vmatprep.subr.mxu0 0.0
    %2369 = vmatpush1.xpose.msra.mxu0 0.0
    %2370 = vmatprep.subr.mxu0 0.0
    %2371 = vmatpush1.xpose.msra.mxu0 0.0
    %2372 = vmatprep.subr.mxu0 0.0
    %2373 = vmatpush1.xpose.msra.mxu0 0.0
    %2374 = vmatprep.subr.mxu0 0.0
    %2375 = vmatpush1.xpose.msra.mxu0 0.0
    %2376 = vmatprep.subr.mxu0 0.0
    %2377 = vmatpush1.xpose.msra.mxu0 0.0
    %2378 = vmatprep.subr.mxu0 0.0
    %2379 = vmatpush1.xpose.msra.mxu0 0.0
    %2380 = vmatprep.subr.mxu0 0.0
    %2381 = vmatpush1.xpose.msra.mxu0 0.0
    %2382 = vmatprep.subr.mxu0 0.0
    %2383 = vmatpush1.xpose.msra.mxu0 0.0
    %2384 = vmatprep.subr.mxu0 0.0
    %2385 = vmatpush1.xpose.msra.mxu0 0.0
    %2386 = vmatprep.mubr.f32.mxu0 0.0
    %2387 = vmatmul.mubr.f32.gmra.mrb[0].mxu0 %v2314
    %v2388 = vpop.f32.mrb[0].mxu0
    %v2389 = vadd.f32 0.0, %v2388
    %v2390 = vpop.f32.mrb[0].mxu0
    %2391 = vdwg.mxu0
    %v2392 = vsel %vm443, %v2389, -inf
    %2393 = vmax.xlane.f32.xlu0 %v2392
    %v2394 = vpop.xlane.xlu0 %2393
    %v2395 = vsub.f32 %v2389, %v2394
    %v2396 = vmul.f32 %v2395, 1.442695
    %v2397 = vpow.pop %v2396
    %v2398 = vsel %vm443, %v2397, 0.0
    %2399 = vadd.xlane.f32.xlu0 %v2398
    %v2400 = vpop.xlane.xlu0 %2399
    %v2401 = vrcp.pop %v2400
    %v2402 = vmul.f32 %v2397, %v2401
    %v2403 = vld [vmem:[#allocation2 + $0x8] sm:$0xff]
    %v2405 = vsel %vm443, %v2402, 0
    %2407 = vmatprep.subr.mxu0 0.0
    %2408 = vmatpush1.msra.mxu0 %v2139
    %2409 = vmatprep.subr.mxu0 0.0
    %2410 = vmatpush1.msra.mxu0 %v2144
    %2411 = vmatprep.subr.mxu0 0.0
    %2412 = vmatpush1.msra.mxu0 0.0
    %2413 = vmatprep.subr.mxu0 0.0
    %2414 = vmatpush1.msra.mxu0 0.0
    %2415 = vmatprep.subr.mxu0 0.0
    %2416 = vmatpush1.msra.mxu0 0.0
    %2417 = vmatprep.subr.mxu0 0.0
    %2418 = vmatpush1.msra.mxu0 0.0
    %2419 = vmatprep.subr.mxu0 0.0
    %2420 = vmatpush1.msra.mxu0 0.0
    %2421 = vmatprep.subr.mxu0 0.0
    %2422 = vmatpush1.msra.mxu0 0.0
    %2423 = vmatprep.subr.mxu0 0.0
    %2424 = vmatpush1.msra.mxu0 0.0
    %2425 = vmatprep.subr.mxu0 0.0
    %2426 = vmatpush1.msra.mxu0 0.0
    %2427 = vmatprep.subr.mxu0 0.0
    %2428 = vmatpush1.msra.mxu0 0.0
    %2429 = vmatprep.subr.mxu0 0.0
    %2430 = vmatpush1.msra.mxu0 0.0
    %2431 = vmatprep.subr.mxu0 0.0
    %2432 = vmatpush1.msra.mxu0 0.0
    %2433 = vmatprep.subr.mxu0 0.0
    %2434 = vmatpush1.msra.mxu0 0.0
    %2435 = vmatprep.subr.mxu0 0.0
    %2436 = vmatpush1.msra.mxu0 0.0
    %2437 = vmatprep.subr.mxu0 0.0
    %2438 = vmatpush1.msra.mxu0 0.0
    %2439 = vmatprep.subr.mxu0 0.0
    %2440 = vmatpush1.msra.mxu0 0.0
    %2441 = vmatprep.subr.mxu0 0.0
    %2442 = vmatpush1.msra.mxu0 0.0
    %2443 = vmatprep.subr.mxu0 0.0
    %2444 = vmatpush1.msra.mxu0 0.0
    %2445 = vmatprep.subr.mxu0 0.0
    %2446 = vmatpush1.msra.mxu0 0.0
    %2447 = vmatprep.subr.mxu0 0.0
    %2448 = vmatpush1.msra.mxu0 0.0
    %2449 = vmatprep.subr.mxu0 0.0
    %2450 = vmatpush1.msra.mxu0 0.0
    %2451 = vmatprep.subr.mxu0 0.0
    %2452 = vmatpush1.msra.mxu0 0.0
    %2453 = vmatprep.subr.mxu0 0.0
    %2454 = vmatpush1.msra.mxu0 0.0
    %2455 = vmatprep.subr.mxu0 0.0
    %2456 = vmatpush1.msra.mxu0 0.0
    %2457 = vmatprep.subr.mxu0 0.0
    %2458 = vmatpush1.msra.mxu0 0.0
    %2459 = vmatprep.subr.mxu0 0.0
    %2460 = vmatpush1.msra.mxu0 0.0
    %2461 = vmatprep.subr.mxu0 0.0
    %2462 = vmatpush1.msra.mxu0 0.0
    %2463 = vmatprep.subr.mxu0 0.0
    %2464 = vmatpush1.msra.mxu0 0.0
    %2465 = vmatprep.subr.mxu0 0.0
    %2466 = vmatpush1.msra.mxu0 0.0
    %2467 = vmatprep.subr.mxu0 0.0
    %2468 = vmatpush1.msra.mxu0 0.0
    %2469 = vmatprep.subr.mxu0 0.0
    %2470 = vmatpush1.msra.mxu0 0.0
    %2471 = vmatprep.mubr.f32.mxu0 0.0
    %2472 = vmatmul.mubr.f32.gmra.mrb[0].mxu0 %v2405
    %v2473 = vpop.f32.mrb[0].mxu0
    %v2474 = vadd.f32 0.0, %v2473
    %v2475 = vpop.f32.mrb[0].mxu0
    %2476 = vdwg.mxu0
    %v2477 = vadd.f32 %v2403, %v2474
    %2478 = vst.msk [vmem:[#allocation2 + $0x8] sm:$0xff] %vm81, %v2477
    %v2479 = vld [vmem:[%s5] sm:$0x1]
    %s2480 = scalar_lea.vmem %s5, 1
    %v2481 = vld [vmem:[%s2480] sm:$0x1]
    %s2482 = scalar_lea.vmem %s5, 2
    %v2483 = vld [vmem:[%s2482] sm:$0x1]
    %s2484 = scalar_lea.vmem %s5, 3
    %v2485 = vld [vmem:[%s2484] sm:$0x1]
    %s2486 = scalar_lea.vmem %s5, 4
    %v2487 = vld [vmem:[%s2486] sm:$0x1]
    %s2488 = scalar_lea.vmem %s5, 5
    %v2489 = vld [vmem:[%s2488] sm:$0x1]
    %v2490 = vld [vmem:[#allocation2] sm:$0xff]
    %v2491 = vld [vmem:[#allocation2 + $0x8] sm:$0xff]
    %v2493 = vlaneseq
    %v2494 = vshrl.u32 %v2493, 7
    %v2495 = vsub.s32 0, %v2494
    %v2496 = vrot.slane %v2479, %v2495
    %v2498 = vadd.f32 %v2490, %v2496
    %v2499 = vadd.f32 %v2491, %v2496
    %v2500 = vsel %vm81, %v2498, 0.0
    %2501 = vadd.xlane.f32.xlu0 %v2500
    %v2502 = vpop.xlane.xlu0 %2501
    %v2503 = vsel %vm81, %v2499, 0.0
    %2504 = vadd.xlane.f32.xlu0 %v2503
    %v2505 = vpop.xlane.xlu0 %2504
    %v2506 = vrcp.pop 32.0
    %v2507 = vmul.f32 %v2502, %v2506
    %v2508 = vmul.f32 %v2505, %v2506
    %v2509 = vsub.f32 %v2498, %v2507
    %v2510 = vsub.f32 %v2499, %v2508
    %v2511 = vmul.f32 %v2509, %v2509
    %v2512 = vmul.f32 %v2510, %v2510
    %v2513 = vsel %vm81, %v2511, 0.0
    %2514 = vadd.xlane.f32.xlu0 %v2513
    %v2515 = vpop.xlane.xlu0 %2514
    %v2516 = vsel %vm81, %v2512, 0.0
    %2517 = vadd.xlane.f32.xlu0 %v2516
    %v2518 = vpop.xlane.xlu0 %2517
    %v2519 = vmul.f32 %v2515, %v2506
    %v2520 = vmul.f32 %v2518, %v2506
    %v2521 = vadd.f32 %v2519, 0.001
    %v2522 = vadd.f32 %v2520, 0.001
    %v2523 = vrsqrt.pop %v2521
    %v2524 = vrsqrt.pop %v2522
    %v2525 = vmul.f32 %v2509, %v2523
    %v2526 = vmul.f32 %v2510, %v2524
    %v2528 = vlaneseq
    %v2529 = vshrl.u32 %v2528, 7
    %v2530 = vsub.s32 0, %v2529
    %v2531 = vrot.slane %v2481, %v2530
    %v2533 = vmul.f32 %v2525, %v2531
    %v2534 = vmul.f32 %v2526, %v2531
    %v2536 = vlaneseq
    %v2537 = vshrl.u32 %v2536, 7
    %v2538 = vsub.s32 0, %v2537
    %v2539 = vrot.slane %v2483, %v2538
    %v2541 = vadd.f32 %v2533, %v2539
    %v2542 = vadd.f32 %v2534, %v2539
    %v2543 = vld [vmem:[%s6] sm:$0xff]
    %v2544 = vld [vmem:[%s6 + $0x8] sm:$0xff]
    %v2545 = vld [vmem:[%s6 + $0x10] sm:$0xff]
    %v2546 = vld [vmem:[%s6 + $0x18] sm:$0xff]
    %v2547 = vld [vmem:[%s7] sm:$0x1]
    %v2549 = vlaneseq
    %v2550 = vshrl.u32 %v2549, 7
    %v2551 = vsub.s32 0, %v2550
    %v2552 = vrot.slane %v2547, %v2551
    %v2555 = vsel %vm81, %v2541, 0
    %v2558 = vsel %vm81, %v2542, 0
    %2560 = vmatprep.subr.mxu0 0.0
    %2561 = vmatpush1.msra.mxu0 %v2543
    %2562 = vmatprep.subr.mxu0 0.0
    %2563 = vmatpush1.msra.mxu0 %v2544
    %2564 = vmatprep.subr.mxu0 0.0
    %2565 = vmatpush1.msra.mxu0 %v2545
    %2566 = vmatprep.subr.mxu0 0.0
    %2567 = vmatpush1.msra.mxu0 %v2546
    %2568 = vmatprep.subr.mxu0 0.0
    %2569 = vmatpush1.msra.mxu0 0.0
    %2570 = vmatprep.subr.mxu0 0.0
    %2571 = vmatpush1.msra.mxu0 0.0
    %2572 = vmatprep.subr.mxu0 0.0
    %2573 = vmatpush1.msra.mxu0 0.0
    %2574 = vmatprep.subr.mxu0 0.0
    %2575 = vmatpush1.msra.mxu0 0.0
    %2576 = vmatprep.subr.mxu0 0.0
    %2577 = vmatpush1.msra.mxu0 0.0
    %2578 = vmatprep.subr.mxu0 0.0
    %2579 = vmatpush1.msra.mxu0 0.0
    %2580 = vmatprep.subr.mxu0 0.0
    %2581 = vmatpush1.msra.mxu0 0.0
    %2582 = vmatprep.subr.mxu0 0.0
    %2583 = vmatpush1.msra.mxu0 0.0
    %2584 = vmatprep.subr.mxu0 0.0
    %2585 = vmatpush1.msra.mxu0 0.0
    %2586 = vmatprep.subr.mxu0 0.0
    %2587 = vmatpush1.msra.mxu0 0.0
    %2588 = vmatprep.subr.mxu0 0.0
    %2589 = vmatpush1.msra.mxu0 0.0
    %2590 = vmatprep.subr.mxu0 0.0
    %2591 = vmatpush1.msra.mxu0 0.0
    %2592 = vmatprep.subr.mxu0 0.0
    %2593 = vmatpush1.msra.mxu0 0.0
    %2594 = vmatprep.subr.mxu0 0.0
    %2595 = vmatpush1.msra.mxu0 0.0
    %2596 = vmatprep.subr.mxu0 0.0
    %2597 = vmatpush1.msra.mxu0 0.0
    %2598 = vmatprep.subr.mxu0 0.0
    %2599 = vmatpush1.msra.mxu0 0.0
    %2600 = vmatprep.subr.mxu0 0.0
    %2601 = vmatpush1.msra.mxu0 0.0
    %2602 = vmatprep.subr.mxu0 0.0
    %2603 = vmatpush1.msra.mxu0 0.0
    %2604 = vmatprep.subr.mxu0 0.0
    %2605 = vmatpush1.msra.mxu0 0.0
    %2606 = vmatprep.subr.mxu0 0.0
    %2607 = vmatpush1.msra.mxu0 0.0
    %2608 = vmatprep.subr.mxu0 0.0
    %2609 = vmatpush1.msra.mxu0 0.0
    %2610 = vmatprep.subr.mxu0 0.0
    %2611 = vmatpush1.msra.mxu0 0.0
    %2612 = vmatprep.subr.mxu0 0.0
    %2613 = vmatpush1.msra.mxu0 0.0
    %2614 = vmatprep.subr.mxu0 0.0
    %2615 = vmatpush1.msra.mxu0 0.0
    %2616 = vmatprep.subr.mxu0 0.0
    %2617 = vmatpush1.msra.mxu0 0.0
    %2618 = vmatprep.subr.mxu0 0.0
    %2619 = vmatpush1.msra.mxu0 0.0
    %2620 = vmatprep.subr.mxu0 0.0
    %2621 = vmatpush1.msra.mxu0 0.0
    %2622 = vmatprep.subr.mxu0 0.0
    %2623 = vmatpush1.msra.mxu0 0.0
    %2624 = vmatprep.mubr.f32.mxu0 0.0
    %2625 = vmatmul.mubr.f32.gmra.mrb[0].mxu0 %v2555
    %v2626 = vpop.f32.mrb[0].mxu0
    %v2627 = vadd.f32 %v2552, %v2626
    %v2628 = vpop.f32.mrb[0].mxu0
    %2629 = vmatprep.mubr.f32.mxu0 0.0
    %2630 = vmatmul.mubr.f32.gmra.mrb[0].mxu0 %v2558
    %v2631 = vpop.f32.mrb[0].mxu0
    %v2632 = vadd.f32 %v2552, %v2631
    %v2633 = vpop.f32.mrb[0].mxu0
    %2634 = vdwg.mxu0
    %vm2635 = vcmp.gt.f32.partialorder %v2627, 0.0
    %vm2636 = vcmp.gt.f32.partialorder %v2632, 0.0
    %v2637 = vmin.f32 %v2627, 0.0
    %v2638 = vmin.f32 %v2632, 0.0
    %v2639 = vmul.f32 %v2637, 1.442695
    %v2640 = vpow.pop %v2639
    %v2641 = vmul.f32 %v2638, 1.442695
    %v2642 = vpow.pop %v2641
    %v2643 = vsub.f32 %v2640, 1.0
    %v2644 = vsub.f32 %v2642, 1.0
    %v2645 = vsel %vm2635, %v2627, %v2643
    %v2646 = vsel %vm2636, %v2632, %v2644
    %v2647 = vld [vmem:[%s8] sm:$0xff]
    %v2648 = vld [vmem:[%s8 + $0x8] sm:$0xff]
    %v2649 = vld [vmem:[%s8 + $0x10] sm:$0xff]
    %v2650 = vld [vmem:[%s8 + $0x18] sm:$0xff]
    %v2651 = vld [vmem:[%s8 + $0x20] sm:$0xff]
    %v2652 = vld [vmem:[%s8 + $0x28] sm:$0xff]
    %v2653 = vld [vmem:[%s8 + $0x30] sm:$0xff]
    %v2654 = vld [vmem:[%s8 + $0x38] sm:$0xff]
    %v2655 = vld [vmem:[%s8 + $0x40] sm:$0xff]
    %v2656 = vld [vmem:[%s8 + $0x48] sm:$0xff]
    %v2657 = vld [vmem:[%s8 + $0x50] sm:$0xff]
    %v2658 = vld [vmem:[%s8 + $0x58] sm:$0xff]
    %v2659 = vld [vmem:[%s8 + $0x60] sm:$0xff]
    %v2660 = vld [vmem:[%s8 + $0x68] sm:$0xff]
    %v2661 = vld [vmem:[%s8 + $0x70] sm:$0xff]
    %v2662 = vld [vmem:[%s8 + $0x78] sm:$0xff]
    %v2664 = vlaneseq
    %v2665 = vshrl.u32 %v2664, 7
    %v2666 = vsub.s32 0, %v2665
    %v2667 = vrot.slane %v2485, %v2666
    %2669 = vmatprep.subr.mxu0 0.0
    %2670 = vmatpush1.msra.mxu0 %v2647
    %2671 = vmatprep.subr.mxu0 0.0
    %2672 = vmatpush1.msra.mxu0 %v2648
    %2673 = vmatprep.subr.mxu0 0.0
    %2674 = vmatpush1.msra.mxu0 %v2649
    %2675 = vmatprep.subr.mxu0 0.0
    %2676 = vmatpush1.msra.mxu0 %v2650
    %2677 = vmatprep.subr.mxu0 0.0
    %2678 = vmatpush1.msra.mxu0 %v2651
    %2679 = vmatprep.subr.mxu0 0.0
    %2680 = vmatpush1.msra.mxu0 %v2652
    %2681 = vmatprep.subr.mxu0 0.0
    %2682 = vmatpush1.msra.mxu0 %v2653
    %2683 = vmatprep.subr.mxu0 0.0
    %2684 = vmatpush1.msra.mxu0 %v2654
    %2685 = vmatprep.subr.mxu0 0.0
    %2686 = vmatpush1.msra.mxu0 %v2655
    %2687 = vmatprep.subr.mxu0 0.0
    %2688 = vmatpush1.msra.mxu0 %v2656
    %2689 = vmatprep.subr.mxu0 0.0
    %2690 = vmatpush1.msra.mxu0 %v2657
    %2691 = vmatprep.subr.mxu0 0.0
    %2692 = vmatpush1.msra.mxu0 %v2658
    %2693 = vmatprep.subr.mxu0 0.0
    %2694 = vmatpush1.msra.mxu0 %v2659
    %2695 = vmatprep.subr.mxu0 0.0
    %2696 = vmatpush1.msra.mxu0 %v2660
    %2697 = vmatprep.subr.mxu0 0.0
    %2698 = vmatpush1.msra.mxu0 %v2661
    %2699 = vmatprep.subr.mxu0 0.0
    %2700 = vmatpush1.msra.mxu0 %v2662
    %2701 = vmatprep.subr.mxu0 0.0
    %2702 = vmatpush1.msra.mxu0 0.0
    %2703 = vmatprep.subr.mxu0 0.0
    %2704 = vmatpush1.msra.mxu0 0.0
    %2705 = vmatprep.subr.mxu0 0.0
    %2706 = vmatpush1.msra.mxu0 0.0
    %2707 = vmatprep.subr.mxu0 0.0
    %2708 = vmatpush1.msra.mxu0 0.0
    %2709 = vmatprep.subr.mxu0 0.0
    %2710 = vmatpush1.msra.mxu0 0.0
    %2711 = vmatprep.subr.mxu0 0.0
    %2712 = vmatpush1.msra.mxu0 0.0
    %2713 = vmatprep.subr.mxu0 0.0
    %2714 = vmatpush1.msra.mxu0 0.0
    %2715 = vmatprep.subr.mxu0 0.0
    %2716 = vmatpush1.msra.mxu0 0.0
    %2717 = vmatprep.subr.mxu0 0.0
    %2718 = vmatpush1.msra.mxu0 0.0
    %2719 = vmatprep.subr.mxu0 0.0
    %2720 = vmatpush1.msra.mxu0 0.0
    %2721 = vmatprep.subr.mxu0 0.0
    %2722 = vmatpush1.msra.mxu0 0.0
    %2723 = vmatprep.subr.mxu0 0.0
    %2724 = vmatpush1.msra.mxu0 0.0
    %2725 = vmatprep.subr.mxu0 0.0
    %2726 = vmatpush1.msra.mxu0 0.0
    %2727 = vmatprep.subr.mxu0 0.0
    %2728 = vmatpush1.msra.mxu0 0.0
    %2729 = vmatprep.subr.mxu0 0.0
    %2730 = vmatpush1.msra.mxu0 0.0
    %2731 = vmatprep.subr.mxu0 0.0
    %2732 = vmatpush1.msra.mxu0 0.0
    %2733 = vmatprep.mubr.f32.mxu0 0.0
    %2734 = vmatmul.mubr.f32.gmra.mrb[0].mxu0 %v2645
    %v2735 = vpop.f32.mrb[0].mxu0
    %v2736 = vadd.f32 %v2667, %v2735
    %v2737 = vpop.f32.mrb[0].mxu0
    %2738 = vmatprep.mubr.f32.mxu0 0.0
    %2739 = vmatmul.mubr.f32.gmra.mrb[0].mxu0 %v2646
    %v2740 = vpop.f32.mrb[0].mxu0
    %v2741 = vadd.f32 %v2667, %v2740
    %v2742 = vpop.f32.mrb[0].mxu0
    %2743 = vdwg.mxu0
    %vm2744 = vcmp.gt.f32.partialorder %v2736, 0.0
    %vm2745 = vcmp.gt.f32.partialorder %v2741, 0.0
    %v2746 = vmin.f32 %v2736, 0.0
    %v2747 = vmin.f32 %v2741, 0.0
    %v2748 = vmul.f32 %v2746, 1.442695
    %v2749 = vpow.pop %v2748
    %v2750 = vmul.f32 %v2747, 1.442695
    %v2751 = vpow.pop %v2750
    %v2752 = vsub.f32 %v2749, 1.0
    %v2753 = vsub.f32 %v2751, 1.0
    %v2754 = vsel %vm2744, %v2736, %v2752
    %v2755 = vsel %vm2745, %v2741, %v2753
    %v2756 = vsel %vm81, %v2754, 0.0
    %2757 = vadd.xlane.f32.xlu0 %v2756
    %v2758 = vpop.xlane.xlu0 %2757
    %v2759 = vsel %vm81, %v2755, 0.0
    %2760 = vadd.xlane.f32.xlu0 %v2759
    %v2761 = vpop.xlane.xlu0 %2760
    %v2762 = vmul.f32 %v2758, %v2506
    %v2763 = vmul.f32 %v2761, %v2506
    %v2764 = vsub.f32 %v2754, %v2762
    %v2765 = vsub.f32 %v2755, %v2763
    %v2766 = vmul.f32 %v2764, %v2764
    %v2767 = vmul.f32 %v2765, %v2765
    %v2768 = vsel %vm81, %v2766, 0.0
    %2769 = vadd.xlane.f32.xlu0 %v2768
    %v2770 = vpop.xlane.xlu0 %2769
    %v2771 = vsel %vm81, %v2767, 0.0
    %2772 = vadd.xlane.f32.xlu0 %v2771
    %v2773 = vpop.xlane.xlu0 %2772
    %v2774 = vmul.f32 %v2770, %v2506
    %v2775 = vmul.f32 %v2773, %v2506
    %v2776 = vadd.f32 %v2774, 0.001
    %v2777 = vadd.f32 %v2775, 0.001
    %v2778 = vrsqrt.pop %v2776
    %v2779 = vrsqrt.pop %v2777
    %v2780 = vmul.f32 %v2764, %v2778
    %v2781 = vmul.f32 %v2765, %v2779
    %v2783 = vlaneseq
    %v2784 = vshrl.u32 %v2783, 7
    %v2785 = vsub.s32 0, %v2784
    %v2786 = vrot.slane %v2487, %v2785
    %v2788 = vmul.f32 %v2780, %v2786
    %v2789 = vmul.f32 %v2781, %v2786
    %v2791 = vlaneseq
    %v2792 = vshrl.u32 %v2791, 7
    %v2793 = vsub.s32 0, %v2792
    %v2794 = vrot.slane %v2489, %v2793
    %v2796 = vadd.f32 %v2788, %v2794
    %v2797 = vadd.f32 %v2789, %v2794
    %2798 = vst.msk [vmem:[#allocation3] sm:$0xff] %vm81, %v2796
    %2799 = vst.msk [vmem:[#allocation3 + $0x8] sm:$0xff] %vm81, %v2797
    // Predicated region
    $region38: #{tpu_custom_call.1} parent=1 // pred_check
      _
    $region39: #{tpu_custom_call.1} parent=1 // pred_check_branch
      %2801 = sbr.rel (0) target = $region41
    $region40: #{tpu_custom_call.1} parent=1 // pred_region
      %s2803 = ssub.s32 256, 256
      %2804 = vsyncadd [#allocation4], %s2803
      %s2805 = sshll.u32 [#allocation3], 4
      %s2806 = int_to_ptr.vmem [resolvable:$true] %s2805
      %2811 = dma.vmem_to_hbm [thread:$0]  %s2806, 256, %s9, [#allocation4], 128, 128, 8
    $region41: #{tpu_custom_call.1} parent=1 // pred_fallthru
      _
    // Predicated region
    $region42: #{tpu_custom_call.1} parent=1 // pred_check
      _
    $region43: #{tpu_custom_call.1} parent=1 // pred_check_branch
      %2813 = sbr.rel (0) target = $region45
    $region44: #{tpu_custom_call.1} parent=1 // pred_region
      %2814 = dma.done [#allocation4], 256
    $region45: #{tpu_custom_call.1} parent=1 // pred_fallthru
      _
    %2815 = vsyncpa [#allocation4], 1

</llo_original>
